<compile_context>
chip_gen: v7x
topology: tpu7x:2x2x1
jax: 0.10.0
libtpu: 0.0.40
codegen_flags: <defaults>
</compile_context>

<pallas_src>
import functools

import jax
import jax.numpy as jnp
from jax.experimental import pallas as pl
from jax.experimental.pallas import tpu as pltpu


def _round_up(x, m):
    return ((x + m - 1) // m) * m


# ----------------------------------------------------------------------------
# Pallas kernels
# ----------------------------------------------------------------------------
def _conv_matmul_kernel(a_ref, w_ref, shift_ref, o_ref, *, apply_relu):
    """out = relu?( A @ W + shift ).  BN scale is pre-folded into W in the wrapper."""
    acc = jnp.dot(a_ref[...], w_ref[...], preferred_element_type=jnp.float32)
    acc = acc + shift_ref[...]
    if apply_relu:
        acc = jnp.maximum(acc, 0.0)
    o_ref[...] = acc.astype(o_ref.dtype)


def conv_matmul(a_bf16, w_bf16, shift, *, apply_relu=True):
    """(M,K)bf16 @ (K,Cp)bf16 + shift (+ ReLU), Cp a multiple of 128 (lane-dense).

    M is split into exactly 2 whole blocks: on v7x the parallel grid axis shards
    across the 2 TensorCores; on v5e/v6e the extra step is one cheap grid
    iteration on top of a whole-layer-sized tile.
    """
    M, K = a_bf16.shape
    _, Cp = w_bf16.shape
    Mp = _round_up(M, 16)             # 2 blocks, each a multiple of 8 sublanes
    bm = Mp // 2
    a_p = jnp.pad(a_bf16, ((0, Mp - M), (0, 0)))
    shift2 = shift.reshape(1, Cp).astype(jnp.float32)

    out = pl.pallas_call(
        functools.partial(_conv_matmul_kernel, apply_relu=apply_relu),
        out_shape=jax.ShapeDtypeStruct((Mp, Cp), jnp.float32),
        grid=(2,),
        in_specs=[
            pl.BlockSpec((bm, K), lambda i: (i, 0)),
            pl.BlockSpec((K, Cp), lambda i: (0, 0)),
            pl.BlockSpec((1, Cp), lambda i: (0, 0)),
        ],
        out_specs=pl.BlockSpec((bm, Cp), lambda i: (i, 0)),
        compiler_params=pltpu.CompilerParams(dimension_semantics=("parallel",)),
    )(a_p, w_bf16, shift2)
    return out[:M]


def _fc_head_kernel(x_ref, *refs, num_layers):
    """Fused MLP head: x -> [Linear + ReLU] * (L-1) -> Linear.

    refs = (w0, b0, w1, b1, ..., w_{L-1}, b_{L-1}, o_ref).  All weights live in
    VMEM for the whole kernel; intermediates never leave VMEM.
    """
    o_ref = refs[-1]
    h = x_ref[...]                                    # bf16
    for li in range(num_layers):
        w = refs[2 * li][...]
        b = refs[2 * li + 1][...]
        acc = jnp.dot(h, w, preferred_element_type=jnp.float32) + b
        if li < num_layers - 1:
            h = jnp.maximum(acc, 0.0).astype(jnp.bfloat16)
        else:
            o_ref[...] = acc.astype(o_ref.dtype)


def fc_head(x, fc_params, final_params):
    """Run the whole FC head in one Pallas call (all dims padded to 128 lanes)."""
    N, F = x.shape
    num_classes = final_params[0].shape[0]
    layers = list(fc_params) + [final_params]

    ws, bs = [], []
    in_dim = F
    for (w, b) in layers:
        out_f = w.shape[0]
        out_p = _round_up(out_f, 128)
        wmat = w.T                                               # (in_real, out_real)
        # Zero-pad rows for the previous layer's padded outputs and columns for
        # this layer's padded outputs -> padded lanes stay exactly zero.
        wmat = jnp.pad(wmat, ((0, in_dim - wmat.shape[0]), (0, out_p - out_f)))
        ws.append(wmat.astype(jnp.bfloat16))
        bs.append(jnp.pad(b, (0, out_p - out_f)).reshape(1, out_p).astype(jnp.float32))
        in_dim = out_p

    Np = _round_up(N, 8)
    x_p = jnp.pad(x, ((0, Np - N), (0, 0))).astype(jnp.bfloat16)

    args = [x_p]
    for w_, b_ in zip(ws, bs):
        args.extend((w_, b_))

    out = pl.pallas_call(
        functools.partial(_fc_head_kernel, num_layers=len(layers)),
        out_shape=jax.ShapeDtypeStruct((Np, ws[-1].shape[1]), jnp.float32),
    )(*args)
    return out[:N, :num_classes]


# ----------------------------------------------------------------------------
# Glue: im2col and maxpool (layout plumbing / fused XLA elementwise, per review)
# ----------------------------------------------------------------------------
def im2col(x_nhwc, k, stride, padding):
    N, H, W, C = x_nhwc.shape
    OH = (H - k + 2 * padding) // stride + 1
    OW = (W - k + 2 * padding) // stride + 1
    xp = jnp.pad(x_nhwc, ((0, 0), (padding, padding), (padding, padding), (0, 0)))
    patches = []
    for i in range(k):
        for j in range(k):
            patches.append(
                xp[:, i:i + stride * (OH - 1) + 1:stride, j:j + stride * (OW - 1) + 1:stride, :]
            )
    pat = jnp.stack(patches, axis=3)                  # (N, OH, OW, k*k, C), order (kh, kw, cin)
    return pat.reshape(N * OH * OW, k * k * C), OH, OW


def maxpool_3x3_s2(x_nhwc):
    """MaxPool2d(kernel_size=3, stride=2, padding=0) as a fused XLA max tree.

    Pairwise maximum over the 9 strided window slices; XLA fuses the slices into
    the reduction so the conv output is read once and only the pooled result is
    written (no 9x HBM materialization, no extra kernel launch).
    """
    N, H, W, C = x_nhwc.shape
    PH = (H - 3) // 2 + 1
    PW = (W - 3) // 2 + 1
    out = None
    for i in range(3):
        for j in range(3):
            win = x_nhwc[:, i:i + 2 * (PH - 1) + 1:2, j:j + 2 * (PW - 1) + 1:2, :]
            out = win if out is None else jnp.maximum(out, win)
    return out


# ----------------------------------------------------------------------------
# Parameters (deterministic synthetic init, shapes match the PyTorch module)
# ----------------------------------------------------------------------------
def init_params(key, input_size, conv_layers, fc_layers, num_classes):
    params = {"conv": [], "fc": [], "final": None}
    in_ch = 3
    size = input_size
    for (out_ch, k, stride, padding) in conv_layers:
        key, kw, kb = jax.random.split(key, 3)
        fan_in = in_ch * k * k
        w = jax.random.normal(kw, (out_ch, in_ch, k, k), jnp.float32) / jnp.sqrt(fan_in)
        b = jax.random.normal(kb, (out_ch,), jnp.float32) * 0.01
        gamma = jnp.ones((out_ch,), jnp.float32)
        beta = jnp.zeros((out_ch,), jnp.float32)
        rmean = jnp.zeros((out_ch,), jnp.float32)
        rvar = jnp.ones((out_ch,), jnp.float32)
        params["conv"].append((w, b, gamma, beta, rmean, rvar))
        in_ch = out_ch
        size = (size - k + 2 * padding) // stride + 1
        size = (size - 3) // 2 + 1
    feat = size * size * in_ch
    for out_f in fc_layers:
        key, kw, kb = jax.random.split(key, 3)
        w = jax.random.normal(kw, (out_f, feat), jnp.float32) / jnp.sqrt(feat)
        b = jax.random.normal(kb, (out_f,), jnp.float32) * 0.01
        params["fc"].append((w, b))
        feat = out_f
    key, kw, kb = jax.random.split(key, 3)
    w = jax.random.normal(kw, (num_classes, feat), jnp.float32) / jnp.sqrt(feat)
    b = jax.random.normal(kb, (num_classes,), jnp.float32) * 0.01
    params["final"] = (w, b)
    return params


# ----------------------------------------------------------------------------
# Forward pass
# ----------------------------------------------------------------------------
def custom_cnn_forward(x_nchw, params, conv_layers):
    N = x_nchw.shape[0]
    x = jnp.transpose(x_nchw, (0, 2, 3, 1))           # NCHW -> NHWC
    eps = 1e-5
    for (w, b, gamma, beta, rmean, rvar), (out_ch, k, stride, padding) in zip(
        params["conv"], conv_layers
    ):
        cin = w.shape[1]
        patches, OH, OW = im2col(x, k, stride, padding)          # (N*OH*OW, k*k*cin)
        # (Cout, Cin, KH, KW) -> (KH*KW*Cin, Cout) to match patch ordering (kh, kw, cin)
        wmat = jnp.transpose(w, (2, 3, 1, 0)).reshape(k * k * cin, out_ch)
        bn_scale = gamma / jnp.sqrt(rvar + eps)
        w_eff = wmat * bn_scale[None, :]                         # fold BN scale into W
        shift = beta - rmean * bn_scale + bn_scale * b           # BN(conv + bias) folded
        cp = _round_up(out_ch, 128)                              # lane-dense output channels
        w_eff = jnp.pad(w_eff, ((0, 0), (0, cp - out_ch)))
        shift = jnp.pad(shift, (0, cp - out_ch))
        y = conv_matmul(patches.astype(jnp.bfloat16), w_eff.astype(jnp.bfloat16),
                        shift, apply_relu=True)                  # (N*OH*OW, cp) f32
        y = y.reshape(N, OH, OW, cp)
        y = maxpool_3x3_s2(y)                                    # pool on padded (lane-dense) channels
        x = y[..., :out_ch]                                      # drop channel padding

    # Flatten in PyTorch (N, C, H, W) order.
    x = jnp.transpose(x, (0, 3, 1, 2)).reshape(N, -1)
    return fc_head(x, params["fc"], params["final"])


# ----------------------------------------------------------------------------
if __name__ == "__main__":
    input_size = 32
    conv_config = [(16, 3, 1, 1), (32, 3, 1, 1)]   # (out_channels, kernel, stride, padding)
    fc_config = [120, 60]
    num_classes = 10
    batch = 2

    key = jax.random.PRNGKey(0)
    key_p, key_x = jax.random.split(key)
    params = init_params(key_p, input_size, conv_config, fc_config, num_classes)
    x = jax.random.normal(key_x, (batch, 3, input_size, input_size), jnp.float32)

    fwd = jax.jit(functools.partial(custom_cnn_forward, conv_layers=tuple(conv_config)))
    out = fwd(x, params)
    out = jax.block_until_ready(out)
    assert out.shape == (batch, num_classes), out.shape
    assert jnp.all(jnp.isfinite(out))
    print("KERNEL_OK")
</pallas_src>

<mosaic_0001>
module attributes {stable_mosaic.version = 11 : i64} {
  func.func @_conv_matmul_kernel(%arg0: i32, %arg1: memref<1024x27xbf16, #tpu.memory_space<vmem>>, %arg2: memref<27x128xbf16, #tpu.memory_space<vmem>>, %arg3: memref<1x128xf32, #tpu.memory_space<vmem>>, %arg4: memref<1024x128xf32, #tpu.memory_space<vmem>>) attributes {dimension_semantics = [#tpu.dimension_semantics<parallel>], iteration_bounds = array<i64: 2>, scalar_prefetch = 0 : i64, scratch_operands = 0 : i64, tpu.core_type = #tpu.core_type<tc>, window_params = [{transform_indices = @transform_0, window_bounds = array<i64: 1024, 27>}, {pipeline_mode = #tpu.pipeline_mode<synchronous>, transform_indices = @transform_1, window_bounds = array<i64: 27, 128>}, {pipeline_mode = #tpu.pipeline_mode<synchronous>, transform_indices = @transform_2, window_bounds = array<i64: 1, 128>}, {transform_indices = @transform_3, window_bounds = array<i64: 1024, 128>}]} {
    %c0 = arith.constant 0 : index
    %c0_0 = arith.constant 0 : index
    %0 = vector.load %arg1[%c0, %c0_0] : memref<1024x27xbf16, #tpu.memory_space<vmem>>, vector<1024x27xbf16>
    %c0_1 = arith.constant 0 : index
    %c0_2 = arith.constant 0 : index
    %1 = vector.load %arg2[%c0_1, %c0_2] : memref<27x128xbf16, #tpu.memory_space<vmem>>, vector<27x128xbf16>
    %cst = arith.constant dense<0.000000e+00> : vector<1024x128xf32>
    %2 = tpu.matmul %0, %1, %cst {dimension_numbers = #tpu.dot_dimension_numbers<[1], [0], [0], [1], [0, 0, 1, 1], [], []>} : vector<1024x27xbf16>, vector<27x128xbf16>, vector<1024x128xf32> -> vector<1024x128xf32>
    %c0_3 = arith.constant 0 : index
    %c0_4 = arith.constant 0 : index
    %3 = vector.load %arg3[%c0_3, %c0_4] : memref<1x128xf32, #tpu.memory_space<vmem>>, vector<1x128xf32>
    %4 = vector.broadcast %3 : vector<1x128xf32> to vector<1024x128xf32>
    %5 = arith.addf %2, %4 : vector<1024x128xf32>
    %cst_5 = arith.constant 0.000000e+00 : f32
    %6 = vector.broadcast %cst_5 : f32 to vector<1024x128xf32>
    %7 = arith.maximumf %5, %6 : vector<1024x128xf32>
    %c0_6 = arith.constant 0 : index
    %c0_7 = arith.constant 0 : index
    %8 = vector.load %arg4[%c0_6, %c0_7] : memref<1024x128xf32, #tpu.memory_space<vmem>>, vector<1024x128xf32>
    tpu.vector_store %arg4[%c0_6, %c0_7], %7 {strides = array<i32>} : memref<1024x128xf32, #tpu.memory_space<vmem>>, vector<1024x128xf32>,
    return
  }
  func.func @transform_0(%arg0: i32) -> (i32, i32) {
    %c0_i32 = arith.constant 0 : i32
    %c0_i32_0 = arith.constant 0 : i32
    return %arg0, %c0_i32 : i32, i32
  }
  func.func @transform_1(%arg0: i32) -> (i32, i32) {
    %c0_i32 = arith.constant 0 : i32
    %c0_i32_0 = arith.constant 0 : i32
    %c0_i32_1 = arith.constant 0 : i32
    return %c0_i32, %c0_i32_0 : i32, i32
  }
  func.func @transform_2(%arg0: i32) -> (i32, i32) {
    %c0_i32 = arith.constant 0 : i32
    %c0_i32_0 = arith.constant 0 : i32
    %c0_i32_1 = arith.constant 0 : i32
    return %c0_i32, %c0_i32_0 : i32, i32
  }
  func.func @transform_3(%arg0: i32) -> (i32, i32) {
    %c0_i32 = arith.constant 0 : i32
    %c0_i32_0 = arith.constant 0 : i32
    return %arg0, %c0_i32 : i32, i32
  }
}

module attributes {stable_mosaic.version = 11 : i64} {
  func.func @_conv_matmul_kernel(%arg0: i32, %arg1: memref<232x144xbf16, #tpu.memory_space<vmem>>, %arg2: memref<144x128xbf16, #tpu.memory_space<vmem>>, %arg3: memref<1x128xf32, #tpu.memory_space<vmem>>, %arg4: memref<232x128xf32, #tpu.memory_space<vmem>>) attributes {dimension_semantics = [#tpu.dimension_semantics<parallel>], iteration_bounds = array<i64: 2>, scalar_prefetch = 0 : i64, scratch_operands = 0 : i64, tpu.core_type = #tpu.core_type<tc>, window_params = [{transform_indices = @transform_0, window_bounds = array<i64: 232, 144>}, {pipeline_mode = #tpu.pipeline_mode<synchronous>, transform_indices = @transform_1, window_bounds = array<i64: 144, 128>}, {pipeline_mode = #tpu.pipeline_mode<synchronous>, transform_indices = @transform_2, window_bounds = array<i64: 1, 128>}, {transform_indices = @transform_3, window_bounds = array<i64: 232, 128>}]} {
    %c0 = arith.constant 0 : index
    %c0_0 = arith.constant 0 : index
    %0 = vector.load %arg1[%c0, %c0_0] : memref<232x144xbf16, #tpu.memory_space<vmem>>, vector<232x144xbf16>
    %c0_1 = arith.constant 0 : index
    %c0_2 = arith.constant 0 : index
    %1 = vector.load %arg2[%c0_1, %c0_2] : memref<144x128xbf16, #tpu.memory_space<vmem>>, vector<144x128xbf16>
    %cst = arith.constant dense<0.000000e+00> : vector<232x128xf32>
    %2 = tpu.matmul %0, %1, %cst {dimension_numbers = #tpu.dot_dimension_numbers<[1], [0], [0], [1], [0, 0, 1, 1], [], []>} : vector<232x144xbf16>, vector<144x128xbf16>, vector<232x128xf32> -> vector<232x128xf32>
    %c0_3 = arith.constant 0 : index
    %c0_4 = arith.constant 0 : index
    %3 = vector.load %arg3[%c0_3, %c0_4] : memref<1x128xf32, #tpu.memory_space<vmem>>, vector<1x128xf32>
    %4 = vector.broadcast %3 : vector<1x128xf32> to vector<232x128xf32>
    %5 = arith.addf %2, %4 : vector<232x128xf32>
    %cst_5 = arith.constant 0.000000e+00 : f32
    %6 = vector.broadcast %cst_5 : f32 to vector<232x128xf32>
    %7 = arith.maximumf %5, %6 : vector<232x128xf32>
    %c0_6 = arith.constant 0 : index
    %c0_7 = arith.constant 0 : index
    %8 = vector.load %arg4[%c0_6, %c0_7] : memref<232x128xf32, #tpu.memory_space<vmem>>, vector<232x128xf32>
    tpu.vector_store %arg4[%c0_6, %c0_7], %7 {strides = array<i32>} : memref<232x128xf32, #tpu.memory_space<vmem>>, vector<232x128xf32>,
    return
  }
  func.func @transform_0(%arg0: i32) -> (i32, i32) {
    %c0_i32 = arith.constant 0 : i32
    %c0_i32_0 = arith.constant 0 : i32
    return %arg0, %c0_i32 : i32, i32
  }
  func.func @transform_1(%arg0: i32) -> (i32, i32) {
    %c0_i32 = arith.constant 0 : i32
    %c0_i32_0 = arith.constant 0 : i32
    %c0_i32_1 = arith.constant 0 : i32
    return %c0_i32, %c0_i32_0 : i32, i32
  }
  func.func @transform_2(%arg0: i32) -> (i32, i32) {
    %c0_i32 = arith.constant 0 : i32
    %c0_i32_0 = arith.constant 0 : i32
    %c0_i32_1 = arith.constant 0 : i32
    return %c0_i32, %c0_i32_0 : i32, i32
  }
  func.func @transform_3(%arg0: i32) -> (i32, i32) {
    %c0_i32 = arith.constant 0 : i32
    %c0_i32_0 = arith.constant 0 : i32
    return %arg0, %c0_i32 : i32, i32
  }
}

module attributes {stable_mosaic.version = 11 : i64} {
  func.func @_fc_head_kernel(%arg0: memref<8x1568xbf16, #tpu.memory_space<vmem>>, %arg1: memref<1568x128xbf16, #tpu.memory_space<vmem>>, %arg2: memref<1x128xf32, #tpu.memory_space<vmem>>, %arg3: memref<128x128xbf16, #tpu.memory_space<vmem>>, %arg4: memref<1x128xf32, #tpu.memory_space<vmem>>, %arg5: memref<128x128xbf16, #tpu.memory_space<vmem>>, %arg6: memref<1x128xf32, #tpu.memory_space<vmem>>, %arg7: memref<8x128xf32, #tpu.memory_space<vmem>>) attributes {dimension_semantics = [], scalar_prefetch = 0 : i64, scratch_operands = 0 : i64, tpu.core_type = #tpu.core_type<tc>} {
    %c0 = arith.constant 0 : index
    %c0_0 = arith.constant 0 : index
    %0 = vector.load %arg0[%c0, %c0_0] : memref<8x1568xbf16, #tpu.memory_space<vmem>>, vector<8x1568xbf16>
    %c0_1 = arith.constant 0 : index
    %c0_2 = arith.constant 0 : index
    %1 = vector.load %arg1[%c0_1, %c0_2] : memref<1568x128xbf16, #tpu.memory_space<vmem>>, vector<1568x128xbf16>
    %c0_3 = arith.constant 0 : index
    %c0_4 = arith.constant 0 : index
    %2 = vector.load %arg2[%c0_3, %c0_4] : memref<1x128xf32, #tpu.memory_space<vmem>>, vector<1x128xf32>
    %cst = arith.constant dense<0.000000e+00> : vector<8x128xf32>
    %3 = tpu.matmul %0, %1, %cst {dimension_numbers = #tpu.dot_dimension_numbers<[1], [0], [0], [1], [0, 0, 1, 1], [], []>} : vector<8x1568xbf16>, vector<1568x128xbf16>, vector<8x128xf32> -> vector<8x128xf32>
    %4 = vector.broadcast %2 : vector<1x128xf32> to vector<8x128xf32>
    %5 = arith.addf %3, %4 : vector<8x128xf32>
    %cst_5 = arith.constant 0.000000e+00 : f32
    %6 = vector.broadcast %cst_5 : f32 to vector<8x128xf32>
    %7 = arith.maximumf %5, %6 : vector<8x128xf32>
    %8 = arith.truncf %7 : vector<8x128xf32> to vector<8x128xbf16>
    %c0_6 = arith.constant 0 : index
    %c0_7 = arith.constant 0 : index
    %9 = vector.load %arg3[%c0_6, %c0_7] : memref<128x128xbf16, #tpu.memory_space<vmem>>, vector<128x128xbf16>
    %c0_8 = arith.constant 0 : index
    %c0_9 = arith.constant 0 : index
    %10 = vector.load %arg4[%c0_8, %c0_9] : memref<1x128xf32, #tpu.memory_space<vmem>>, vector<1x128xf32>
    %cst_10 = arith.constant dense<0.000000e+00> : vector<8x128xf32>
    %11 = tpu.matmul %8, %9, %cst_10 {dimension_numbers = #tpu.dot_dimension_numbers<[1], [0], [0], [1], [0, 0, 1, 1], [], []>} : vector<8x128xbf16>, vector<128x128xbf16>, vector<8x128xf32> -> vector<8x128xf32>
    %12 = vector.broadcast %10 : vector<1x128xf32> to vector<8x128xf32>
    %13 = arith.addf %11, %12 : vector<8x128xf32>
    %cst_11 = arith.constant 0.000000e+00 : f32
    %14 = vector.broadcast %cst_11 : f32 to vector<8x128xf32>
    %15 = arith.maximumf %13, %14 : vector<8x128xf32>
    %16 = arith.truncf %15 : vector<8x128xf32> to vector<8x128xbf16>
    %c0_12 = arith.constant 0 : index
    %c0_13 = arith.constant 0 : index
    %17 = vector.load %arg5[%c0_12, %c0_13] : memref<128x128xbf16, #tpu.memory_space<vmem>>, vector<128x128xbf16>
    %c0_14 = arith.constant 0 : index
    %c0_15 = arith.constant 0 : index
    %18 = vector.load %arg6[%c0_14, %c0_15] : memref<1x128xf32, #tpu.memory_space<vmem>>, vector<1x128xf32>
    %cst_16 = arith.constant dense<0.000000e+00> : vector<8x128xf32>
    %19 = tpu.matmul %16, %17, %cst_16 {dimension_numbers = #tpu.dot_dimension_numbers<[1], [0], [0], [1], [0, 0, 1, 1], [], []>} : vector<8x128xbf16>, vector<128x128xbf16>, vector<8x128xf32> -> vector<8x128xf32>
    %20 = vector.broadcast %18 : vector<1x128xf32> to vector<8x128xf32>
    %21 = arith.addf %19, %20 : vector<8x128xf32>
    %c0_17 = arith.constant 0 : index
    %c0_18 = arith.constant 0 : index
    %22 = vector.load %arg7[%c0_17, %c0_18] : memref<8x128xf32, #tpu.memory_space<vmem>>, vector<8x128xf32>
    tpu.vector_store %arg7[%c0_17, %c0_18], %21 {strides = array<i32>} : memref<8x128xf32, #tpu.memory_space<vmem>>, vector<8x128xf32>,
    return
  }
}

</mosaic_0001>

<llo_original>
// kernel: custom_cnn_forward.3
$region0: #{custom_cnn_forward.3}
  #allocation0 [shape = 'u32[]', space=smem, size = 0x4, offset = 0x4, fixed_abs, tag = 'smem constant byte address 0x4 - core index']
  #allocation1 [shape = 'u32[144,128]{1,0:T(1,128)}', space=vmem, size = 0x12000, scoped, tag = 'internal scratch']
  %s0 = inlined_call_operand.vmem [shape: bf16[2048,27], index: 0, kind: input, shape index: {}]
  %s1 = inlined_call_operand.vmem [shape: bf16[27,128], index: 1, kind: input, shape index: {}]
  %s2 = inlined_call_operand.vmem [shape: f32[1,128], index: 2, kind: input, shape index: {}]
  %s3 = inlined_call_operand.vmem [shape: f32[2048,128], index: 3, kind: output, shape index: {}]
  %s4 = sld [smem:[#allocation0]]
  $region45: #{custom_cnn_forward.3} parent=0
    _
  %s6 = ssub.s32 1, %s4
  %s7 = scalar_select 0, %s6, %s4
  loop: start=0, step=1, limit=4
  $region2: #{custom_cnn_forward.3} parent=0 // loop_pre_header
    _
  $region3: #{custom_cnn_forward.3} parent=0 // loop_header
    %s9 = sphi 0, %s13
    %p10 = scmp.ge.s32.totalorder %s9, 4
    %s19 = sphi 0, %s21
    %s22 = sphi 0, %s19
    %s23 = sphi 0, %s22
    %s39 = sphi 0, %s23
    %s43 = sphi 0, %s43
    %s45 = sphi 0, %s43
    %s46 = sphi 0, %s45
    %s60 = sphi 0, %s46
    %s64 = sphi 0, %s64
    %s66 = sphi 0, %s64
    %s67 = sphi 0, %s66
    %s81 = sphi 0, %s67
    %s87 = sphi 0, %s89
    %s90 = sphi 0, %s87
    %s91 = sphi 0, %s90
    %s107 = sphi 0, %s91
  $region4: #{custom_cnn_forward.3} parent=0 // loop_header_branch
    %12 = sbr.rel (%p10) target = $region8
  $region5: #{custom_cnn_forward.3} parent=0 // loop_body
    %s14 = ssub.s32 %s9, 1
    %s15 = ssub.s32 %s9, 2
    %s16 = sadd.s32 %s9, 1
    %s17 = ssub.s32 %s9, %s16
    %p18 = scmp.eq.s32.totalorder %s17, 0
    %s20 = sadd.s32 %s19, 1
    %s21 = scalar_select %p18, %s19, %s20
    %p24 = pneg %p18
    %p25 = scmp.eq.s32.totalorder %s9, 1
    %p26 = por %p24, %p25
    %p27 = scmp.ne.s32.totalorder %s19, %s22
    %p28 = scmp.eq.s32.totalorder %s9, 0
    %p29 = por %p27, %p28
    %p30 = scmp.ne.s32.totalorder %s19, %s22
    %p31 = scmp.eq.s32.totalorder %s14, 1
    %p32 = por %p30, %p31
    %p33 = scmp.ne.s32.totalorder %s22, %s23
    %p34 = scmp.eq.s32.totalorder %s14, 0
    %p35 = por %p33, %p34
    %p36 = scmp.ne.s32.totalorder %s22, %s23
    %p37 = scmp.eq.s32.totalorder %s15, 1
    %p38 = por %p36, %p37
    %p40 = scmp.ne.s32.totalorder %s23, %s39
    %p41 = scmp.eq.s32.totalorder %s15, 0
    %p42 = por %p40, %p41
    %s44 = sadd.s32 %s43, 1
    %p47 = scmp.eq.s32.totalorder %s9, 1
    %p48 = scmp.ne.s32.totalorder %s43, %s45
    %p49 = scmp.eq.s32.totalorder %s9, 0
    %p50 = por %p48, %p49
    %p51 = scmp.ne.s32.totalorder %s43, %s45
    %p52 = scmp.eq.s32.totalorder %s14, 1
    %p53 = por %p51, %p52
    %p54 = scmp.ne.s32.totalorder %s45, %s46
    %p55 = scmp.eq.s32.totalorder %s14, 0
    %p56 = por %p54, %p55
    %p57 = scmp.ne.s32.totalorder %s45, %s46
    %p58 = scmp.eq.s32.totalorder %s15, 1
    %p59 = por %p57, %p58
    %p61 = scmp.ne.s32.totalorder %s46, %s60
    %p62 = scmp.eq.s32.totalorder %s15, 0
    %p63 = por %p61, %p62
    %s65 = sadd.s32 %s64, 1
    %p68 = scmp.eq.s32.totalorder %s9, 1
    %p69 = scmp.ne.s32.totalorder %s64, %s66
    %p70 = scmp.eq.s32.totalorder %s9, 0
    %p71 = por %p69, %p70
    %p72 = scmp.ne.s32.totalorder %s64, %s66
    %p73 = scmp.eq.s32.totalorder %s14, 1
    %p74 = por %p72, %p73
    %p75 = scmp.ne.s32.totalorder %s66, %s67
    %p76 = scmp.eq.s32.totalorder %s14, 0
    %p77 = por %p75, %p76
    %p78 = scmp.ne.s32.totalorder %s66, %s67
    %p79 = scmp.eq.s32.totalorder %s15, 1
    %p80 = por %p78, %p79
    %p82 = scmp.ne.s32.totalorder %s67, %s81
    %p83 = scmp.eq.s32.totalorder %s15, 0
    %p84 = por %p82, %p83
    %s85 = ssub.s32 %s9, %s16
    %p86 = scmp.eq.s32.totalorder %s85, 0
    %s88 = sadd.s32 %s87, 1
    %s89 = scalar_select %p86, %s87, %s88
    %p92 = pneg %p86
    %p93 = scmp.eq.s32.totalorder %s9, 1
    %p94 = por %p92, %p93
    %p95 = scmp.ne.s32.totalorder %s87, %s90
    %p96 = scmp.eq.s32.totalorder %s9, 0
    %p97 = por %p95, %p96
    %p98 = scmp.ne.s32.totalorder %s87, %s90
    %p99 = scmp.eq.s32.totalorder %s14, 1
    %p100 = por %p98, %p99
    %p101 = scmp.ne.s32.totalorder %s90, %s91
    %p102 = scmp.eq.s32.totalorder %s14, 0
    %p103 = por %p101, %p102
    %p104 = scmp.ne.s32.totalorder %s90, %s91
    %p105 = scmp.eq.s32.totalorder %s15, 1
    %p106 = por %p104, %p105
    %p108 = scmp.ne.s32.totalorder %s91, %s107
    %p109 = scmp.eq.s32.totalorder %s15, 0
    %p110 = por %p108, %p109
    %p111 = scmp.le.s32.totalorder 1, %s9
    %p112 = scmp.lt.s32.totalorder %s9, 3
    %p113 = pnand %p111, %p112
    %p114 = pneg %p113
    // Predicated region
    $region9: #{custom_cnn_forward.3} parent=5 // pred_check
      _
    $region10: #{custom_cnn_forward.3} parent=5 // pred_check_branch
      %116 = sbr.rel (%p113) target = $region12
    $region11: #{custom_cnn_forward.3} parent=5 // pred_region
      %s117 = ssub.s32 %s9, 1
      // Predicated region
      $region13: #{custom_cnn_forward.3} parent=11 // pred_check
        %p118 = pneg %p56
      $region14: #{custom_cnn_forward.3} parent=11 // pred_check_branch
        %120 = sbr.rel (%p118) target = $region16
      $region15: #{custom_cnn_forward.3} parent=11 // pred_region
        _
      $region16: #{custom_cnn_forward.3} parent=11 // pred_fallthru
        _
      // Predicated region
      $region17: #{custom_cnn_forward.3} parent=11 // pred_check
        %p121 = pneg %p77
      $region18: #{custom_cnn_forward.3} parent=11 // pred_check_branch
        %123 = sbr.rel (%p121) target = $region20
      $region19: #{custom_cnn_forward.3} parent=11 // pred_region
        _
      $region20: #{custom_cnn_forward.3} parent=11 // pred_fallthru
        _
    $region12: #{custom_cnn_forward.3} parent=5 // pred_fallthru
      _
    %p124 = scmp.lt.s32.totalorder %s9, 2
    // Predicated region
    $region21: #{custom_cnn_forward.3} parent=5 // pred_check
      %p125 = pneg %p124
    $region22: #{custom_cnn_forward.3} parent=5 // pred_check_branch
      %127 = sbr.rel (%p125) target = $region24
    $region23: #{custom_cnn_forward.3} parent=5 // pred_region
      // Predicated region
      $region25: #{custom_cnn_forward.3} parent=23 // pred_check
        %p128 = pneg %p29
      $region26: #{custom_cnn_forward.3} parent=23 // pred_check_branch
        %130 = sbr.rel (%p128) target = $region28
      $region27: #{custom_cnn_forward.3} parent=23 // pred_region
        %s131 = smul.u32 128, %s9
        %p132 = scmp.lt.s32.totalorder %s131, 255
        %s133 = scalar_select %p132, %s131, 255
        %s134 = smul.addr %s133, 4
        %s135 = scalar_lea.vmem %s0, %s134
        %s136 = smul.u32 128, %s9
      $region28: #{custom_cnn_forward.3} parent=23 // pred_fallthru
        _
    $region24: #{custom_cnn_forward.3} parent=5 // pred_fallthru
      _
    %p137 = scmp.le.s32.totalorder 1, %s9
    %p138 = scmp.lt.s32.totalorder %s9, 3
    %p139 = pnand %p137, %p138
    %p140 = pneg %p139
    // Predicated region
    $region29: #{custom_cnn_forward.3} parent=5 // pred_check
      _
    $region30: #{custom_cnn_forward.3} parent=5 // pred_check_branch
      %142 = sbr.rel (%p139) target = $region32
    $region31: #{custom_cnn_forward.3} parent=5 // pred_region
      %s143 = ssub.s32 %s9, 1
      %s144 = smul.u32 128, %s14
      %p145 = scmp.lt.s32.totalorder %s144, 255
      %s146 = scalar_select %p145, %s144, 255
      %s147 = smul.addr %s146, 4
      %s148 = scalar_lea.vmem %s0, %s147
      %p149 = pneg %p35
      %p150 = pneg %p32
      %p151 = pneg %p56
      %p152 = pneg %p53
      %p153 = pneg %p77
      %p154 = pneg %p74
      %p155 = pneg %p103
      %p156 = pneg %p100
      %s157 = smul.u32 128, %s14
      %p158 = scmp.lt.s32.totalorder %s157, 255
      %s159 = scalar_select %p158, %s157, 255
      %s160 = smul.addr %s159, 8
      %s161 = scalar_lea.vmem %s3, %s160
      %s162 = smul.u32 128, %s14
      %p163 = scmp.lt.s32.totalorder %s162, 255
      %s164 = scalar_select %p163, %s162, 255
      %s165 = smul.addr %s164, 4
      %s166 = scalar_lea.vmem %s0, %s165
      %s167 = smul.u32 128, %s14
      %s168 = smul.u32 128, %s14
      %p169 = scmp.lt.s32.totalorder %s168, 255
      %s170 = scalar_select %p169, %s168, 255
      %s171 = smul.addr %s170, 8
      %s172 = scalar_lea.vmem %s3, %s171
      %s173 = smul.u32 128, %s14
      %v175 = vld [vmem:[%s166] sm:$0xf]
      %v176 = vld [vmem:[%s166 + $0x4] sm:$0xf]
      %v177 = vld [vmem:[%s166 + $0x8] sm:$0xf]
      %v178 = vld [vmem:[%s166 + $0xc] sm:$0xf]
      %v179 = vld [vmem:[%s166 + $0x10] sm:$0xf]
      %v180 = vld [vmem:[%s166 + $0x14] sm:$0xf]
      %v181 = vld [vmem:[%s166 + $0x18] sm:$0xf]
      %v182 = vld [vmem:[%s166 + $0x1c] sm:$0xf]
      %v183 = vld [vmem:[%s166 + $0x20] sm:$0xf]
      %v184 = vld [vmem:[%s166 + $0x24] sm:$0xf]
      %v185 = vld [vmem:[%s166 + $0x28] sm:$0xf]
      %v186 = vld [vmem:[%s166 + $0x2c] sm:$0xf]
      %v187 = vld [vmem:[%s166 + $0x30] sm:$0xf]
      %v188 = vld [vmem:[%s166 + $0x34] sm:$0xf]
      %v189 = vld [vmem:[%s166 + $0x38] sm:$0xf]
      %v190 = vld [vmem:[%s166 + $0x3c] sm:$0xf]
      %v191 = vld [vmem:[%s166 + $0x40] sm:$0xf]
      %v192 = vld [vmem:[%s166 + $0x44] sm:$0xf]
      %v193 = vld [vmem:[%s166 + $0x48] sm:$0xf]
      %v194 = vld [vmem:[%s166 + $0x4c] sm:$0xf]
      %v195 = vld [vmem:[%s166 + $0x50] sm:$0xf]
      %v196 = vld [vmem:[%s166 + $0x54] sm:$0xf]
      %v197 = vld [vmem:[%s166 + $0x58] sm:$0xf]
      %v198 = vld [vmem:[%s166 + $0x5c] sm:$0xf]
      %v199 = vld [vmem:[%s166 + $0x60] sm:$0xf]
      %v200 = vld [vmem:[%s166 + $0x64] sm:$0xf]
      %v201 = vld [vmem:[%s166 + $0x68] sm:$0xf]
      %v202 = vld [vmem:[%s166 + $0x6c] sm:$0xf]
      %v203 = vld [vmem:[%s166 + $0x70] sm:$0xf]
      %v204 = vld [vmem:[%s166 + $0x74] sm:$0xf]
      %v205 = vld [vmem:[%s166 + $0x78] sm:$0xf]
      %v206 = vld [vmem:[%s166 + $0x7c] sm:$0xf]
      %v207 = vld [vmem:[%s166 + $0x80] sm:$0xf]
      %v208 = vld [vmem:[%s166 + $0x84] sm:$0xf]
      %v209 = vld [vmem:[%s166 + $0x88] sm:$0xf]
      %v210 = vld [vmem:[%s166 + $0x8c] sm:$0xf]
      %v211 = vld [vmem:[%s166 + $0x90] sm:$0xf]
      %v212 = vld [vmem:[%s166 + $0x94] sm:$0xf]
      %v213 = vld [vmem:[%s166 + $0x98] sm:$0xf]
      %v214 = vld [vmem:[%s166 + $0x9c] sm:$0xf]
      %v215 = vld [vmem:[%s166 + $0xa0] sm:$0xf]
      %v216 = vld [vmem:[%s166 + $0xa4] sm:$0xf]
      %v217 = vld [vmem:[%s166 + $0xa8] sm:$0xf]
      %v218 = vld [vmem:[%s166 + $0xac] sm:$0xf]
      %v219 = vld [vmem:[%s166 + $0xb0] sm:$0xf]
      %v220 = vld [vmem:[%s166 + $0xb4] sm:$0xf]
      %v221 = vld [vmem:[%s166 + $0xb8] sm:$0xf]
      %v222 = vld [vmem:[%s166 + $0xbc] sm:$0xf]
      %v223 = vld [vmem:[%s166 + $0xc0] sm:$0xf]
      %v224 = vld [vmem:[%s166 + $0xc4] sm:$0xf]
      %v225 = vld [vmem:[%s166 + $0xc8] sm:$0xf]
      %v226 = vld [vmem:[%s166 + $0xcc] sm:$0xf]
      %v227 = vld [vmem:[%s166 + $0xd0] sm:$0xf]
      %v228 = vld [vmem:[%s166 + $0xd4] sm:$0xf]
      %v229 = vld [vmem:[%s166 + $0xd8] sm:$0xf]
      %v230 = vld [vmem:[%s166 + $0xdc] sm:$0xf]
      %v231 = vld [vmem:[%s166 + $0xe0] sm:$0xf]
      %v232 = vld [vmem:[%s166 + $0xe4] sm:$0xf]
      %v233 = vld [vmem:[%s166 + $0xe8] sm:$0xf]
      %v234 = vld [vmem:[%s166 + $0xec] sm:$0xf]
      %v235 = vld [vmem:[%s166 + $0xf0] sm:$0xf]
      %v236 = vld [vmem:[%s166 + $0xf4] sm:$0xf]
      %v237 = vld [vmem:[%s166 + $0xf8] sm:$0xf]
      %v238 = vld [vmem:[%s166 + $0xfc] sm:$0xf]
      %v239 = vld [vmem:[%s166 + $0x100] sm:$0xf]
      %v240 = vld [vmem:[%s166 + $0x104] sm:$0xf]
      %v241 = vld [vmem:[%s166 + $0x108] sm:$0xf]
      %v242 = vld [vmem:[%s166 + $0x10c] sm:$0xf]
      %v243 = vld [vmem:[%s166 + $0x110] sm:$0xf]
      %v244 = vld [vmem:[%s166 + $0x114] sm:$0xf]
      %v245 = vld [vmem:[%s166 + $0x118] sm:$0xf]
      %v246 = vld [vmem:[%s166 + $0x11c] sm:$0xf]
      %v247 = vld [vmem:[%s166 + $0x120] sm:$0xf]
      %v248 = vld [vmem:[%s166 + $0x124] sm:$0xf]
      %v249 = vld [vmem:[%s166 + $0x128] sm:$0xf]
      %v250 = vld [vmem:[%s166 + $0x12c] sm:$0xf]
      %v251 = vld [vmem:[%s166 + $0x130] sm:$0xf]
      %v252 = vld [vmem:[%s166 + $0x134] sm:$0xf]
      %v253 = vld [vmem:[%s166 + $0x138] sm:$0xf]
      %v254 = vld [vmem:[%s166 + $0x13c] sm:$0xf]
      %v255 = vld [vmem:[%s166 + $0x140] sm:$0xf]
      %v256 = vld [vmem:[%s166 + $0x144] sm:$0xf]
      %v257 = vld [vmem:[%s166 + $0x148] sm:$0xf]
      %v258 = vld [vmem:[%s166 + $0x14c] sm:$0xf]
      %v259 = vld [vmem:[%s166 + $0x150] sm:$0xf]
      %v260 = vld [vmem:[%s166 + $0x154] sm:$0xf]
      %v261 = vld [vmem:[%s166 + $0x158] sm:$0xf]
      %v262 = vld [vmem:[%s166 + $0x15c] sm:$0xf]
      %v263 = vld [vmem:[%s166 + $0x160] sm:$0xf]
      %v264 = vld [vmem:[%s166 + $0x164] sm:$0xf]
      %v265 = vld [vmem:[%s166 + $0x168] sm:$0xf]
      %v266 = vld [vmem:[%s166 + $0x16c] sm:$0xf]
      %v267 = vld [vmem:[%s166 + $0x170] sm:$0xf]
      %v268 = vld [vmem:[%s166 + $0x174] sm:$0xf]
      %v269 = vld [vmem:[%s166 + $0x178] sm:$0xf]
      %v270 = vld [vmem:[%s166 + $0x17c] sm:$0xf]
      %v271 = vld [vmem:[%s166 + $0x180] sm:$0xf]
      %v272 = vld [vmem:[%s166 + $0x184] sm:$0xf]
      %v273 = vld [vmem:[%s166 + $0x188] sm:$0xf]
      %v274 = vld [vmem:[%s166 + $0x18c] sm:$0xf]
      %v275 = vld [vmem:[%s166 + $0x190] sm:$0xf]
      %v276 = vld [vmem:[%s166 + $0x194] sm:$0xf]
      %v277 = vld [vmem:[%s166 + $0x198] sm:$0xf]
      %v278 = vld [vmem:[%s166 + $0x19c] sm:$0xf]
      %v279 = vld [vmem:[%s166 + $0x1a0] sm:$0xf]
      %v280 = vld [vmem:[%s166 + $0x1a4] sm:$0xf]
      %v281 = vld [vmem:[%s166 + $0x1a8] sm:$0xf]
      %v282 = vld [vmem:[%s166 + $0x1ac] sm:$0xf]
      %v283 = vld [vmem:[%s166 + $0x1b0] sm:$0xf]
      %v284 = vld [vmem:[%s166 + $0x1b4] sm:$0xf]
      %v285 = vld [vmem:[%s166 + $0x1b8] sm:$0xf]
      %v286 = vld [vmem:[%s166 + $0x1bc] sm:$0xf]
      %v287 = vld [vmem:[%s166 + $0x1c0] sm:$0xf]
      %v288 = vld [vmem:[%s166 + $0x1c4] sm:$0xf]
      %v289 = vld [vmem:[%s166 + $0x1c8] sm:$0xf]
      %v290 = vld [vmem:[%s166 + $0x1cc] sm:$0xf]
      %v291 = vld [vmem:[%s166 + $0x1d0] sm:$0xf]
      %v292 = vld [vmem:[%s166 + $0x1d4] sm:$0xf]
      %v293 = vld [vmem:[%s166 + $0x1d8] sm:$0xf]
      %v294 = vld [vmem:[%s166 + $0x1dc] sm:$0xf]
      %v295 = vld [vmem:[%s166 + $0x1e0] sm:$0xf]
      %v296 = vld [vmem:[%s166 + $0x1e4] sm:$0xf]
      %v297 = vld [vmem:[%s166 + $0x1e8] sm:$0xf]
      %v298 = vld [vmem:[%s166 + $0x1ec] sm:$0xf]
      %v299 = vld [vmem:[%s166 + $0x1f0] sm:$0xf]
      %v300 = vld [vmem:[%s166 + $0x1f4] sm:$0xf]
      %v301 = vld [vmem:[%s166 + $0x1f8] sm:$0xf]
      %v302 = vld [vmem:[%s166 + $0x1fc] sm:$0xf]
      %v303 = vld [vmem:[%s1] sm:$0xf]
      %v304 = vld [vmem:[%s1 + $0x4] sm:$0xf]
      %v305 = vld [vmem:[%s1 + $0x8] sm:$0xf]
      %v306 = vld [vmem:[%s1 + $0xc] sm:$0x3]
      %v307 = vld [vmem:[%s2] sm:$0x1]
      %v309 = vlaneseq
      %v310 = vshrl.u32 %v309, 7
      %v311 = vsub.s32 0, %v310
      %v312 = vrot.slane %v307, %v311
      %v442 = vunpack.c.l.b16 %v175
      %v443 = vunpack.c.l.b16 %v176
      %v444 = vunpack.c.l.b16 %v177
      %v445 = vunpack.c.l.b16 %v178
      %v446 = vunpack.c.l.b16 %v179
      %v447 = vunpack.c.l.b16 %v180
      %v448 = vunpack.c.l.b16 %v181
      %v449 = vunpack.c.l.b16 %v182
      %v450 = vunpack.c.l.b16 %v183
      %v451 = vunpack.c.l.b16 %v184
      %v452 = vunpack.c.l.b16 %v185
      %v453 = vunpack.c.l.b16 %v186
      %v454 = vunpack.c.l.b16 %v187
      %v455 = vunpack.c.l.b16 %v188
      %v456 = vunpack.c.l.b16 %v189
      %v457 = vunpack.c.l.b16 %v190
      %v458 = vunpack.c.l.b16 %v191
      %v459 = vunpack.c.l.b16 %v192
      %v460 = vunpack.c.l.b16 %v193
      %v461 = vunpack.c.l.b16 %v194
      %v462 = vunpack.c.l.b16 %v195
      %v463 = vunpack.c.l.b16 %v196
      %v464 = vunpack.c.l.b16 %v197
      %v465 = vunpack.c.l.b16 %v198
      %v466 = vunpack.c.l.b16 %v199
      %v467 = vunpack.c.l.b16 %v200
      %v468 = vunpack.c.l.b16 %v201
      %v469 = vunpack.c.l.b16 %v202
      %v470 = vunpack.c.l.b16 %v203
      %v471 = vunpack.c.l.b16 %v204
      %v472 = vunpack.c.l.b16 %v205
      %v473 = vunpack.c.l.b16 %v206
      %v474 = vunpack.c.l.b16 %v207
      %v475 = vunpack.c.l.b16 %v208
      %v476 = vunpack.c.l.b16 %v209
      %v477 = vunpack.c.l.b16 %v210
      %v478 = vunpack.c.l.b16 %v211
      %v479 = vunpack.c.l.b16 %v212
      %v480 = vunpack.c.l.b16 %v213
      %v481 = vunpack.c.l.b16 %v214
      %v482 = vunpack.c.l.b16 %v215
      %v483 = vunpack.c.l.b16 %v216
      %v484 = vunpack.c.l.b16 %v217
      %v485 = vunpack.c.l.b16 %v218
      %v486 = vunpack.c.l.b16 %v219
      %v487 = vunpack.c.l.b16 %v220
      %v488 = vunpack.c.l.b16 %v221
      %v489 = vunpack.c.l.b16 %v222
      %v490 = vunpack.c.l.b16 %v223
      %v491 = vunpack.c.l.b16 %v224
      %v492 = vunpack.c.l.b16 %v225
      %v493 = vunpack.c.l.b16 %v226
      %v494 = vunpack.c.l.b16 %v227
      %v495 = vunpack.c.l.b16 %v228
      %v496 = vunpack.c.l.b16 %v229
      %v497 = vunpack.c.l.b16 %v230
      %v498 = vunpack.c.l.b16 %v231
      %v499 = vunpack.c.l.b16 %v232
      %v500 = vunpack.c.l.b16 %v233
      %v501 = vunpack.c.l.b16 %v234
      %v502 = vunpack.c.l.b16 %v235
      %v503 = vunpack.c.l.b16 %v236
      %v504 = vunpack.c.l.b16 %v237
      %v505 = vunpack.c.l.b16 %v238
      %v506 = vunpack.c.l.b16 %v239
      %v507 = vunpack.c.l.b16 %v240
      %v508 = vunpack.c.l.b16 %v241
      %v509 = vunpack.c.l.b16 %v242
      %v510 = vunpack.c.l.b16 %v243
      %v511 = vunpack.c.l.b16 %v244
      %v512 = vunpack.c.l.b16 %v245
      %v513 = vunpack.c.l.b16 %v246
      %v514 = vunpack.c.l.b16 %v247
      %v515 = vunpack.c.l.b16 %v248
      %v516 = vunpack.c.l.b16 %v249
      %v517 = vunpack.c.l.b16 %v250
      %v518 = vunpack.c.l.b16 %v251
      %v519 = vunpack.c.l.b16 %v252
      %v520 = vunpack.c.l.b16 %v253
      %v521 = vunpack.c.l.b16 %v254
      %v522 = vunpack.c.l.b16 %v255
      %v523 = vunpack.c.l.b16 %v256
      %v524 = vunpack.c.l.b16 %v257
      %v525 = vunpack.c.l.b16 %v258
      %v526 = vunpack.c.l.b16 %v259
      %v527 = vunpack.c.l.b16 %v260
      %v528 = vunpack.c.l.b16 %v261
      %v529 = vunpack.c.l.b16 %v262
      %v530 = vunpack.c.l.b16 %v263
      %v531 = vunpack.c.l.b16 %v264
      %v532 = vunpack.c.l.b16 %v265
      %v533 = vunpack.c.l.b16 %v266
      %v534 = vunpack.c.l.b16 %v267
      %v535 = vunpack.c.l.b16 %v268
      %v536 = vunpack.c.l.b16 %v269
      %v537 = vunpack.c.l.b16 %v270
      %v538 = vunpack.c.l.b16 %v271
      %v539 = vunpack.c.l.b16 %v272
      %v540 = vunpack.c.l.b16 %v273
      %v541 = vunpack.c.l.b16 %v274
      %v542 = vunpack.c.l.b16 %v275
      %v543 = vunpack.c.l.b16 %v276
      %v544 = vunpack.c.l.b16 %v277
      %v545 = vunpack.c.l.b16 %v278
      %v546 = vunpack.c.l.b16 %v279
      %v547 = vunpack.c.l.b16 %v280
      %v548 = vunpack.c.l.b16 %v281
      %v549 = vunpack.c.l.b16 %v282
      %v550 = vunpack.c.l.b16 %v283
      %v551 = vunpack.c.l.b16 %v284
      %v552 = vunpack.c.l.b16 %v285
      %v553 = vunpack.c.l.b16 %v286
      %v554 = vunpack.c.l.b16 %v287
      %v555 = vunpack.c.l.b16 %v288
      %v556 = vunpack.c.l.b16 %v289
      %v557 = vunpack.c.l.b16 %v290
      %v558 = vunpack.c.l.b16 %v291
      %v559 = vunpack.c.l.b16 %v292
      %v560 = vunpack.c.l.b16 %v293
      %v561 = vunpack.c.l.b16 %v294
      %v562 = vunpack.c.l.b16 %v295
      %v563 = vunpack.c.l.b16 %v296
      %v564 = vunpack.c.l.b16 %v297
      %v565 = vunpack.c.l.b16 %v298
      %v566 = vunpack.c.l.b16 %v299
      %v567 = vunpack.c.l.b16 %v300
      %v568 = vunpack.c.l.b16 %v301
      %v569 = vunpack.c.l.b16 %v302
      %v570 = vpack.c.b16 %v443, %v442
      %v571 = vpack.c.b16 %v445, %v444
      %v572 = vpack.c.b16 %v447, %v446
      %v573 = vpack.c.b16 %v449, %v448
      %v574 = vpack.c.b16 %v451, %v450
      %v575 = vpack.c.b16 %v453, %v452
      %v576 = vpack.c.b16 %v455, %v454
      %v577 = vpack.c.b16 %v457, %v456
      %v578 = vpack.c.b16 %v459, %v458
      %v579 = vpack.c.b16 %v461, %v460
      %v580 = vpack.c.b16 %v463, %v462
      %v581 = vpack.c.b16 %v465, %v464
      %v582 = vpack.c.b16 %v467, %v466
      %v583 = vpack.c.b16 %v469, %v468
      %v584 = vpack.c.b16 %v471, %v470
      %v585 = vpack.c.b16 %v473, %v472
      %v586 = vpack.c.b16 %v475, %v474
      %v587 = vpack.c.b16 %v477, %v476
      %v588 = vpack.c.b16 %v479, %v478
      %v589 = vpack.c.b16 %v481, %v480
      %v590 = vpack.c.b16 %v483, %v482
      %v591 = vpack.c.b16 %v485, %v484
      %v592 = vpack.c.b16 %v487, %v486
      %v593 = vpack.c.b16 %v489, %v488
      %v594 = vpack.c.b16 %v491, %v490
      %v595 = vpack.c.b16 %v493, %v492
      %v596 = vpack.c.b16 %v495, %v494
      %v597 = vpack.c.b16 %v497, %v496
      %v598 = vpack.c.b16 %v499, %v498
      %v599 = vpack.c.b16 %v501, %v500
      %v600 = vpack.c.b16 %v503, %v502
      %v601 = vpack.c.b16 %v505, %v504
      %v602 = vpack.c.b16 %v507, %v506
      %v603 = vpack.c.b16 %v509, %v508
      %v604 = vpack.c.b16 %v511, %v510
      %v605 = vpack.c.b16 %v513, %v512
      %v606 = vpack.c.b16 %v515, %v514
      %v607 = vpack.c.b16 %v517, %v516
      %v608 = vpack.c.b16 %v519, %v518
      %v609 = vpack.c.b16 %v521, %v520
      %v610 = vpack.c.b16 %v523, %v522
      %v611 = vpack.c.b16 %v525, %v524
      %v612 = vpack.c.b16 %v527, %v526
      %v613 = vpack.c.b16 %v529, %v528
      %v614 = vpack.c.b16 %v531, %v530
      %v615 = vpack.c.b16 %v533, %v532
      %v616 = vpack.c.b16 %v535, %v534
      %v617 = vpack.c.b16 %v537, %v536
      %v618 = vpack.c.b16 %v539, %v538
      %v619 = vpack.c.b16 %v541, %v540
      %v620 = vpack.c.b16 %v543, %v542
      %v621 = vpack.c.b16 %v545, %v544
      %v622 = vpack.c.b16 %v547, %v546
      %v623 = vpack.c.b16 %v549, %v548
      %v624 = vpack.c.b16 %v551, %v550
      %v625 = vpack.c.b16 %v553, %v552
      %v626 = vpack.c.b16 %v555, %v554
      %v627 = vpack.c.b16 %v557, %v556
      %v628 = vpack.c.b16 %v559, %v558
      %v629 = vpack.c.b16 %v561, %v560
      %v630 = vpack.c.b16 %v563, %v562
      %v631 = vpack.c.b16 %v565, %v564
      %v632 = vpack.c.b16 %v567, %v566
      %v633 = vpack.c.b16 %v569, %v568
      %v638 = vunpack.c.l.b16 %v303
      %v639 = vunpack.c.l.b16 %v304
      %v640 = vunpack.c.l.b16 %v305
      %v641 = vunpack.c.l.b16 %v306
      %v642 = vpack.c.b16 %v639, %v638
      %v643 = vpack.c.b16 %v641, %v640
      %vm645 = vcmask 220160
      %v647 = vsel %vm645, %v570, 0
      %v650 = vsel %vm645, %v571, 0
      %v653 = vsel %vm645, %v572, 0
      %v656 = vsel %vm645, %v573, 0
      %v659 = vsel %vm645, %v574, 0
      %v662 = vsel %vm645, %v575, 0
      %v665 = vsel %vm645, %v576, 0
      %v668 = vsel %vm645, %v577, 0
      %v671 = vsel %vm645, %v578, 0
      %v674 = vsel %vm645, %v579, 0
      %v677 = vsel %vm645, %v580, 0
      %v680 = vsel %vm645, %v581, 0
      %v683 = vsel %vm645, %v582, 0
      %v686 = vsel %vm645, %v583, 0
      %v689 = vsel %vm645, %v584, 0
      %v692 = vsel %vm645, %v585, 0
      %v695 = vsel %vm645, %v586, 0
      %v698 = vsel %vm645, %v587, 0
      %v701 = vsel %vm645, %v588, 0
      %v704 = vsel %vm645, %v589, 0
      %v707 = vsel %vm645, %v590, 0
      %v710 = vsel %vm645, %v591, 0
      %v713 = vsel %vm645, %v592, 0
      %v716 = vsel %vm645, %v593, 0
      %v719 = vsel %vm645, %v594, 0
      %v722 = vsel %vm645, %v595, 0
      %v725 = vsel %vm645, %v596, 0
      %v728 = vsel %vm645, %v597, 0
      %v731 = vsel %vm645, %v598, 0
      %v734 = vsel %vm645, %v599, 0
      %v737 = vsel %vm645, %v600, 0
      %v740 = vsel %vm645, %v601, 0
      %v743 = vsel %vm645, %v602, 0
      %v746 = vsel %vm645, %v603, 0
      %v749 = vsel %vm645, %v604, 0
      %v752 = vsel %vm645, %v605, 0
      %v755 = vsel %vm645, %v606, 0
      %v758 = vsel %vm645, %v607, 0
      %v761 = vsel %vm645, %v608, 0
      %v764 = vsel %vm645, %v609, 0
      %v767 = vsel %vm645, %v610, 0
      %v770 = vsel %vm645, %v611, 0
      %v773 = vsel %vm645, %v612, 0
      %v776 = vsel %vm645, %v613, 0
      %v779 = vsel %vm645, %v614, 0
      %v782 = vsel %vm645, %v615, 0
      %v785 = vsel %vm645, %v616, 0
      %v788 = vsel %vm645, %v617, 0
      %v791 = vsel %vm645, %v618, 0
      %v794 = vsel %vm645, %v619, 0
      %v797 = vsel %vm645, %v620, 0
      %v800 = vsel %vm645, %v621, 0
      %v803 = vsel %vm645, %v622, 0
      %v806 = vsel %vm645, %v623, 0
      %v809 = vsel %vm645, %v624, 0
      %v812 = vsel %vm645, %v625, 0
      %v815 = vsel %vm645, %v626, 0
      %v818 = vsel %vm645, %v627, 0
      %v821 = vsel %vm645, %v628, 0
      %v824 = vsel %vm645, %v629, 0
      %v827 = vsel %vm645, %v630, 0
      %v830 = vsel %vm645, %v631, 0
      %v833 = vsel %vm645, %v632, 0
      %v836 = vsel %vm645, %v633, 0
      %vm838 = vcmask 1044480
      %vm839 = vcmask 1045504
      %v840 = vsel %vm838, 4294967295, 65535
      %v841 = vsel %vm839, %v840, 0
      %v843 = vand.u32 %v643, %v841
      %845 = vmatprep.subr.bf16.mxu0 0
      %846 = vmatpush1.bf16.msra.mxu0 %v642
      %847 = vmatprep.subr.bf16.mxu0 0
      %848 = vmatpush1.bf16.msra.mxu0 %v843
      %849 = vmatprep.subr.bf16.mxu0 0
      %850 = vmatpush1.bf16.msra.mxu0 0
      %851 = vmatprep.subr.bf16.mxu0 0
      %852 = vmatpush1.bf16.msra.mxu0 0
      %853 = vmatprep.subr.bf16.mxu0 0
      %854 = vmatpush1.bf16.msra.mxu0 0
      %855 = vmatprep.subr.bf16.mxu0 0
      %856 = vmatpush1.bf16.msra.mxu0 0
      %857 = vmatprep.subr.bf16.mxu0 0
      %858 = vmatpush1.bf16.msra.mxu0 0
      %859 = vmatprep.subr.bf16.mxu0 0
      %860 = vmatpush1.bf16.msra.mxu0 0
      %861 = vmatprep.subr.bf16.mxu0 0
      %862 = vmatpush1.bf16.msra.mxu0 0
      %863 = vmatprep.subr.bf16.mxu0 0
      %864 = vmatpush1.bf16.msra.mxu0 0
      %865 = vmatprep.subr.bf16.mxu0 0
      %866 = vmatpush1.bf16.msra.mxu0 0
      %867 = vmatprep.subr.bf16.mxu0 0
      %868 = vmatpush1.bf16.msra.mxu0 0
      %869 = vmatprep.subr.bf16.mxu0 0
      %870 = vmatpush1.bf16.msra.mxu0 0
      %871 = vmatprep.subr.bf16.mxu0 0
      %872 = vmatpush1.bf16.msra.mxu0 0
      %873 = vmatprep.subr.bf16.mxu0 0
      %874 = vmatpush1.bf16.msra.mxu0 0
      %875 = vmatprep.subr.bf16.mxu0 0
      %876 = vmatpush1.bf16.msra.mxu0 0
      %877 = vmatprep.mubr.bf16.mxu0 0
      %878 = vmatmul.mubr.bf16.gmra.mrb[0].mxu0 %v647
      %v879 = vpop.f32.mrb[0].mxu0
      %v880 = vadd.f32 %v312, %v879
      %v881 = vpop.f32.mrb[0].mxu0
      %v882 = vpop.f32.mrb[0].mxu0
      %v883 = vadd.f32 %v312, %v882
      %v884 = vpop.f32.mrb[0].mxu0
      %885 = vmatprep.mubr.bf16.mxu0 0
      %886 = vmatmul.mubr.bf16.gmra.mrb[0].mxu0 %v650
      %v887 = vpop.f32.mrb[0].mxu0
      %v888 = vadd.f32 %v312, %v887
      %v889 = vpop.f32.mrb[0].mxu0
      %v890 = vpop.f32.mrb[0].mxu0
      %v891 = vadd.f32 %v312, %v890
      %v892 = vpop.f32.mrb[0].mxu0
      %893 = vmatprep.mubr.bf16.mxu0 0
      %894 = vmatmul.mubr.bf16.gmra.mrb[0].mxu0 %v653
      %v895 = vpop.f32.mrb[0].mxu0
      %v896 = vadd.f32 %v312, %v895
      %v897 = vpop.f32.mrb[0].mxu0
      %v898 = vpop.f32.mrb[0].mxu0
      %v899 = vadd.f32 %v312, %v898
      %v900 = vpop.f32.mrb[0].mxu0
      %901 = vmatprep.mubr.bf16.mxu0 0
      %902 = vmatmul.mubr.bf16.gmra.mrb[0].mxu0 %v656
      %v903 = vpop.f32.mrb[0].mxu0
      %v904 = vadd.f32 %v312, %v903
      %v905 = vpop.f32.mrb[0].mxu0
      %v906 = vpop.f32.mrb[0].mxu0
      %v907 = vadd.f32 %v312, %v906
      %v908 = vpop.f32.mrb[0].mxu0
      %909 = vmatprep.mubr.bf16.mxu0 0
      %910 = vmatmul.mubr.bf16.gmra.mrb[0].mxu0 %v659
      %v911 = vpop.f32.mrb[0].mxu0
      %v912 = vadd.f32 %v312, %v911
      %v913 = vpop.f32.mrb[0].mxu0
      %v914 = vpop.f32.mrb[0].mxu0
      %v915 = vadd.f32 %v312, %v914
      %v916 = vpop.f32.mrb[0].mxu0
      %917 = vmatprep.mubr.bf16.mxu0 0
      %918 = vmatmul.mubr.bf16.gmra.mrb[0].mxu0 %v662
      %v919 = vpop.f32.mrb[0].mxu0
      %v920 = vadd.f32 %v312, %v919
      %v921 = vpop.f32.mrb[0].mxu0
      %v922 = vpop.f32.mrb[0].mxu0
      %v923 = vadd.f32 %v312, %v922
      %v924 = vpop.f32.mrb[0].mxu0
      %925 = vmatprep.mubr.bf16.mxu0 0
      %926 = vmatmul.mubr.bf16.gmra.mrb[0].mxu0 %v665
      %v927 = vpop.f32.mrb[0].mxu0
      %v928 = vadd.f32 %v312, %v927
      %v929 = vpop.f32.mrb[0].mxu0
      %v930 = vpop.f32.mrb[0].mxu0
      %v931 = vadd.f32 %v312, %v930
      %v932 = vpop.f32.mrb[0].mxu0
      %933 = vmatprep.mubr.bf16.mxu0 0
      %934 = vmatmul.mubr.bf16.gmra.mrb[0].mxu0 %v668
      %v935 = vpop.f32.mrb[0].mxu0
      %v936 = vadd.f32 %v312, %v935
      %v937 = vpop.f32.mrb[0].mxu0
      %v938 = vpop.f32.mrb[0].mxu0
      %v939 = vadd.f32 %v312, %v938
      %v940 = vpop.f32.mrb[0].mxu0
      %941 = vmatprep.mubr.bf16.mxu0 0
      %942 = vmatmul.mubr.bf16.gmra.mrb[0].mxu0 %v671
      %v943 = vpop.f32.mrb[0].mxu0
      %v944 = vadd.f32 %v312, %v943
      %v945 = vpop.f32.mrb[0].mxu0
      %v946 = vpop.f32.mrb[0].mxu0
      %v947 = vadd.f32 %v312, %v946
      %v948 = vpop.f32.mrb[0].mxu0
      %949 = vmatprep.mubr.bf16.mxu0 0
      %950 = vmatmul.mubr.bf16.gmra.mrb[0].mxu0 %v674
      %v951 = vpop.f32.mrb[0].mxu0
      %v952 = vadd.f32 %v312, %v951
      %v953 = vpop.f32.mrb[0].mxu0
      %v954 = vpop.f32.mrb[0].mxu0
      %v955 = vadd.f32 %v312, %v954
      %v956 = vpop.f32.mrb[0].mxu0
      %957 = vmatprep.mubr.bf16.mxu0 0
      %958 = vmatmul.mubr.bf16.gmra.mrb[0].mxu0 %v677
      %v959 = vpop.f32.mrb[0].mxu0
      %v960 = vadd.f32 %v312, %v959
      %v961 = vpop.f32.mrb[0].mxu0
      %v962 = vpop.f32.mrb[0].mxu0
      %v963 = vadd.f32 %v312, %v962
      %v964 = vpop.f32.mrb[0].mxu0
      %965 = vmatprep.mubr.bf16.mxu0 0
      %966 = vmatmul.mubr.bf16.gmra.mrb[0].mxu0 %v680
      %v967 = vpop.f32.mrb[0].mxu0
      %v968 = vadd.f32 %v312, %v967
      %v969 = vpop.f32.mrb[0].mxu0
      %v970 = vpop.f32.mrb[0].mxu0
      %v971 = vadd.f32 %v312, %v970
      %v972 = vpop.f32.mrb[0].mxu0
      %973 = vmatprep.mubr.bf16.mxu0 0
      %974 = vmatmul.mubr.bf16.gmra.mrb[0].mxu0 %v683
      %v975 = vpop.f32.mrb[0].mxu0
      %v976 = vadd.f32 %v312, %v975
      %v977 = vpop.f32.mrb[0].mxu0
      %v978 = vpop.f32.mrb[0].mxu0
      %v979 = vadd.f32 %v312, %v978
      %v980 = vpop.f32.mrb[0].mxu0
      %981 = vmatprep.mubr.bf16.mxu0 0
      %982 = vmatmul.mubr.bf16.gmra.mrb[0].mxu0 %v686
      %v983 = vpop.f32.mrb[0].mxu0
      %v984 = vadd.f32 %v312, %v983
      %v985 = vpop.f32.mrb[0].mxu0
      %v986 = vpop.f32.mrb[0].mxu0
      %v987 = vadd.f32 %v312, %v986
      %v988 = vpop.f32.mrb[0].mxu0
      %989 = vmatprep.mubr.bf16.mxu0 0
      %990 = vmatmul.mubr.bf16.gmra.mrb[0].mxu0 %v689
      %v991 = vpop.f32.mrb[0].mxu0
      %v992 = vadd.f32 %v312, %v991
      %v993 = vpop.f32.mrb[0].mxu0
      %v994 = vpop.f32.mrb[0].mxu0
      %v995 = vadd.f32 %v312, %v994
      %v996 = vpop.f32.mrb[0].mxu0
      %997 = vmatprep.mubr.bf16.mxu0 0
      %998 = vmatmul.mubr.bf16.gmra.mrb[0].mxu0 %v692
      %v999 = vpop.f32.mrb[0].mxu0
      %v1000 = vadd.f32 %v312, %v999
      %v1001 = vpop.f32.mrb[0].mxu0
      %v1002 = vpop.f32.mrb[0].mxu0
      %v1003 = vadd.f32 %v312, %v1002
      %v1004 = vpop.f32.mrb[0].mxu0
      %1005 = vmatprep.mubr.bf16.mxu0 0
      %1006 = vmatmul.mubr.bf16.gmra.mrb[0].mxu0 %v695
      %v1007 = vpop.f32.mrb[0].mxu0
      %v1008 = vadd.f32 %v312, %v1007
      %v1009 = vpop.f32.mrb[0].mxu0
      %v1010 = vpop.f32.mrb[0].mxu0
      %v1011 = vadd.f32 %v312, %v1010
      %v1012 = vpop.f32.mrb[0].mxu0
      %1013 = vmatprep.mubr.bf16.mxu0 0
      %1014 = vmatmul.mubr.bf16.gmra.mrb[0].mxu0 %v698
      %v1015 = vpop.f32.mrb[0].mxu0
      %v1016 = vadd.f32 %v312, %v1015
      %v1017 = vpop.f32.mrb[0].mxu0
      %v1018 = vpop.f32.mrb[0].mxu0
      %v1019 = vadd.f32 %v312, %v1018
      %v1020 = vpop.f32.mrb[0].mxu0
      %1021 = vmatprep.mubr.bf16.mxu0 0
      %1022 = vmatmul.mubr.bf16.gmra.mrb[0].mxu0 %v701
      %v1023 = vpop.f32.mrb[0].mxu0
      %v1024 = vadd.f32 %v312, %v1023
      %v1025 = vpop.f32.mrb[0].mxu0
      %v1026 = vpop.f32.mrb[0].mxu0
      %v1027 = vadd.f32 %v312, %v1026
      %v1028 = vpop.f32.mrb[0].mxu0
      %1029 = vmatprep.mubr.bf16.mxu0 0
      %1030 = vmatmul.mubr.bf16.gmra.mrb[0].mxu0 %v704
      %v1031 = vpop.f32.mrb[0].mxu0
      %v1032 = vadd.f32 %v312, %v1031
      %v1033 = vpop.f32.mrb[0].mxu0
      %v1034 = vpop.f32.mrb[0].mxu0
      %v1035 = vadd.f32 %v312, %v1034
      %v1036 = vpop.f32.mrb[0].mxu0
      %1037 = vmatprep.mubr.bf16.mxu0 0
      %1038 = vmatmul.mubr.bf16.gmra.mrb[0].mxu0 %v707
      %v1039 = vpop.f32.mrb[0].mxu0
      %v1040 = vadd.f32 %v312, %v1039
      %v1041 = vpop.f32.mrb[0].mxu0
      %v1042 = vpop.f32.mrb[0].mxu0
      %v1043 = vadd.f32 %v312, %v1042
      %v1044 = vpop.f32.mrb[0].mxu0
      %1045 = vmatprep.mubr.bf16.mxu0 0
      %1046 = vmatmul.mubr.bf16.gmra.mrb[0].mxu0 %v710
      %v1047 = vpop.f32.mrb[0].mxu0
      %v1048 = vadd.f32 %v312, %v1047
      %v1049 = vpop.f32.mrb[0].mxu0
      %v1050 = vpop.f32.mrb[0].mxu0
      %v1051 = vadd.f32 %v312, %v1050
      %v1052 = vpop.f32.mrb[0].mxu0
      %1053 = vmatprep.mubr.bf16.mxu0 0
      %1054 = vmatmul.mubr.bf16.gmra.mrb[0].mxu0 %v713
      %v1055 = vpop.f32.mrb[0].mxu0
      %v1056 = vadd.f32 %v312, %v1055
      %v1057 = vpop.f32.mrb[0].mxu0
      %v1058 = vpop.f32.mrb[0].mxu0
      %v1059 = vadd.f32 %v312, %v1058
      %v1060 = vpop.f32.mrb[0].mxu0
      %1061 = vmatprep.mubr.bf16.mxu0 0
      %1062 = vmatmul.mubr.bf16.gmra.mrb[0].mxu0 %v716
      %v1063 = vpop.f32.mrb[0].mxu0
      %v1064 = vadd.f32 %v312, %v1063
      %v1065 = vpop.f32.mrb[0].mxu0
      %v1066 = vpop.f32.mrb[0].mxu0
      %v1067 = vadd.f32 %v312, %v1066
      %v1068 = vpop.f32.mrb[0].mxu0
      %1069 = vmatprep.mubr.bf16.mxu0 0
      %1070 = vmatmul.mubr.bf16.gmra.mrb[0].mxu0 %v719
      %v1071 = vpop.f32.mrb[0].mxu0
      %v1072 = vadd.f32 %v312, %v1071
      %v1073 = vpop.f32.mrb[0].mxu0
      %v1074 = vpop.f32.mrb[0].mxu0
      %v1075 = vadd.f32 %v312, %v1074
      %v1076 = vpop.f32.mrb[0].mxu0
      %1077 = vmatprep.mubr.bf16.mxu0 0
      %1078 = vmatmul.mubr.bf16.gmra.mrb[0].mxu0 %v722
      %v1079 = vpop.f32.mrb[0].mxu0
      %v1080 = vadd.f32 %v312, %v1079
      %v1081 = vpop.f32.mrb[0].mxu0
      %v1082 = vpop.f32.mrb[0].mxu0
      %v1083 = vadd.f32 %v312, %v1082
      %v1084 = vpop.f32.mrb[0].mxu0
      %1085 = vmatprep.mubr.bf16.mxu0 0
      %1086 = vmatmul.mubr.bf16.gmra.mrb[0].mxu0 %v725
      %v1087 = vpop.f32.mrb[0].mxu0
      %v1088 = vadd.f32 %v312, %v1087
      %v1089 = vpop.f32.mrb[0].mxu0
      %v1090 = vpop.f32.mrb[0].mxu0
      %v1091 = vadd.f32 %v312, %v1090
      %v1092 = vpop.f32.mrb[0].mxu0
      %1093 = vmatprep.mubr.bf16.mxu0 0
      %1094 = vmatmul.mubr.bf16.gmra.mrb[0].mxu0 %v728
      %v1095 = vpop.f32.mrb[0].mxu0
      %v1096 = vadd.f32 %v312, %v1095
      %v1097 = vpop.f32.mrb[0].mxu0
      %v1098 = vpop.f32.mrb[0].mxu0
      %v1099 = vadd.f32 %v312, %v1098
      %v1100 = vpop.f32.mrb[0].mxu0
      %1101 = vmatprep.mubr.bf16.mxu0 0
      %1102 = vmatmul.mubr.bf16.gmra.mrb[0].mxu0 %v731
      %v1103 = vpop.f32.mrb[0].mxu0
      %v1104 = vadd.f32 %v312, %v1103
      %v1105 = vpop.f32.mrb[0].mxu0
      %v1106 = vpop.f32.mrb[0].mxu0
      %v1107 = vadd.f32 %v312, %v1106
      %v1108 = vpop.f32.mrb[0].mxu0
      %1109 = vmatprep.mubr.bf16.mxu0 0
      %1110 = vmatmul.mubr.bf16.gmra.mrb[0].mxu0 %v734
      %v1111 = vpop.f32.mrb[0].mxu0
      %v1112 = vadd.f32 %v312, %v1111
      %v1113 = vpop.f32.mrb[0].mxu0
      %v1114 = vpop.f32.mrb[0].mxu0
      %v1115 = vadd.f32 %v312, %v1114
      %v1116 = vpop.f32.mrb[0].mxu0
      %1117 = vmatprep.mubr.bf16.mxu0 0
      %1118 = vmatmul.mubr.bf16.gmra.mrb[0].mxu0 %v737
      %v1119 = vpop.f32.mrb[0].mxu0
      %v1120 = vadd.f32 %v312, %v1119
      %v1121 = vpop.f32.mrb[0].mxu0
      %v1122 = vpop.f32.mrb[0].mxu0
      %v1123 = vadd.f32 %v312, %v1122
      %v1124 = vpop.f32.mrb[0].mxu0
      %1125 = vmatprep.mubr.bf16.mxu0 0
      %1126 = vmatmul.mubr.bf16.gmra.mrb[0].mxu0 %v740
      %v1127 = vpop.f32.mrb[0].mxu0
      %v1128 = vadd.f32 %v312, %v1127
      %v1129 = vpop.f32.mrb[0].mxu0
      %v1130 = vpop.f32.mrb[0].mxu0
      %v1131 = vadd.f32 %v312, %v1130
      %v1132 = vpop.f32.mrb[0].mxu0
      %1133 = vmatprep.mubr.bf16.mxu0 0
      %1134 = vmatmul.mubr.bf16.gmra.mrb[0].mxu0 %v743
      %v1135 = vpop.f32.mrb[0].mxu0
      %v1136 = vadd.f32 %v312, %v1135
      %v1137 = vpop.f32.mrb[0].mxu0
      %v1138 = vpop.f32.mrb[0].mxu0
      %v1139 = vadd.f32 %v312, %v1138
      %v1140 = vpop.f32.mrb[0].mxu0
      %1141 = vmatprep.mubr.bf16.mxu0 0
      %1142 = vmatmul.mubr.bf16.gmra.mrb[0].mxu0 %v746
      %v1143 = vpop.f32.mrb[0].mxu0
      %v1144 = vadd.f32 %v312, %v1143
      %v1145 = vpop.f32.mrb[0].mxu0
      %v1146 = vpop.f32.mrb[0].mxu0
      %v1147 = vadd.f32 %v312, %v1146
      %v1148 = vpop.f32.mrb[0].mxu0
      %1149 = vmatprep.mubr.bf16.mxu0 0
      %1150 = vmatmul.mubr.bf16.gmra.mrb[0].mxu0 %v749
      %v1151 = vpop.f32.mrb[0].mxu0
      %v1152 = vadd.f32 %v312, %v1151
      %v1153 = vpop.f32.mrb[0].mxu0
      %v1154 = vpop.f32.mrb[0].mxu0
      %v1155 = vadd.f32 %v312, %v1154
      %v1156 = vpop.f32.mrb[0].mxu0
      %1157 = vmatprep.mubr.bf16.mxu0 0
      %1158 = vmatmul.mubr.bf16.gmra.mrb[0].mxu0 %v752
      %v1159 = vpop.f32.mrb[0].mxu0
      %v1160 = vadd.f32 %v312, %v1159
      %v1161 = vpop.f32.mrb[0].mxu0
      %v1162 = vpop.f32.mrb[0].mxu0
      %v1163 = vadd.f32 %v312, %v1162
      %v1164 = vpop.f32.mrb[0].mxu0
      %1165 = vmatprep.mubr.bf16.mxu0 0
      %1166 = vmatmul.mubr.bf16.gmra.mrb[0].mxu0 %v755
      %v1167 = vpop.f32.mrb[0].mxu0
      %v1168 = vadd.f32 %v312, %v1167
      %v1169 = vpop.f32.mrb[0].mxu0
      %v1170 = vpop.f32.mrb[0].mxu0
      %v1171 = vadd.f32 %v312, %v1170
      %v1172 = vpop.f32.mrb[0].mxu0
      %1173 = vmatprep.mubr.bf16.mxu0 0
      %1174 = vmatmul.mubr.bf16.gmra.mrb[0].mxu0 %v758
      %v1175 = vpop.f32.mrb[0].mxu0
      %v1176 = vadd.f32 %v312, %v1175
      %v1177 = vpop.f32.mrb[0].mxu0
      %v1178 = vpop.f32.mrb[0].mxu0
      %v1179 = vadd.f32 %v312, %v1178
      %v1180 = vpop.f32.mrb[0].mxu0
      %1181 = vmatprep.mubr.bf16.mxu0 0
      %1182 = vmatmul.mubr.bf16.gmra.mrb[0].mxu0 %v761
      %v1183 = vpop.f32.mrb[0].mxu0
      %v1184 = vadd.f32 %v312, %v1183
      %v1185 = vpop.f32.mrb[0].mxu0
      %v1186 = vpop.f32.mrb[0].mxu0
      %v1187 = vadd.f32 %v312, %v1186
      %v1188 = vpop.f32.mrb[0].mxu0
      %1189 = vmatprep.mubr.bf16.mxu0 0
      %1190 = vmatmul.mubr.bf16.gmra.mrb[0].mxu0 %v764
      %v1191 = vpop.f32.mrb[0].mxu0
      %v1192 = vadd.f32 %v312, %v1191
      %v1193 = vpop.f32.mrb[0].mxu0
      %v1194 = vpop.f32.mrb[0].mxu0
      %v1195 = vadd.f32 %v312, %v1194
      %v1196 = vpop.f32.mrb[0].mxu0
      %1197 = vmatprep.mubr.bf16.mxu0 0
      %1198 = vmatmul.mubr.bf16.gmra.mrb[0].mxu0 %v767
      %v1199 = vpop.f32.mrb[0].mxu0
      %v1200 = vadd.f32 %v312, %v1199
      %v1201 = vpop.f32.mrb[0].mxu0
      %v1202 = vpop.f32.mrb[0].mxu0
      %v1203 = vadd.f32 %v312, %v1202
      %v1204 = vpop.f32.mrb[0].mxu0
      %1205 = vmatprep.mubr.bf16.mxu0 0
      %1206 = vmatmul.mubr.bf16.gmra.mrb[0].mxu0 %v770
      %v1207 = vpop.f32.mrb[0].mxu0
      %v1208 = vadd.f32 %v312, %v1207
      %v1209 = vpop.f32.mrb[0].mxu0
      %v1210 = vpop.f32.mrb[0].mxu0
      %v1211 = vadd.f32 %v312, %v1210
      %v1212 = vpop.f32.mrb[0].mxu0
      %1213 = vmatprep.mubr.bf16.mxu0 0
      %1214 = vmatmul.mubr.bf16.gmra.mrb[0].mxu0 %v773
      %v1215 = vpop.f32.mrb[0].mxu0
      %v1216 = vadd.f32 %v312, %v1215
      %v1217 = vpop.f32.mrb[0].mxu0
      %v1218 = vpop.f32.mrb[0].mxu0
      %v1219 = vadd.f32 %v312, %v1218
      %v1220 = vpop.f32.mrb[0].mxu0
      %1221 = vmatprep.mubr.bf16.mxu0 0
      %1222 = vmatmul.mubr.bf16.gmra.mrb[0].mxu0 %v776
      %v1223 = vpop.f32.mrb[0].mxu0
      %v1224 = vadd.f32 %v312, %v1223
      %v1225 = vpop.f32.mrb[0].mxu0
      %v1226 = vpop.f32.mrb[0].mxu0
      %v1227 = vadd.f32 %v312, %v1226
      %v1228 = vpop.f32.mrb[0].mxu0
      %1229 = vmatprep.mubr.bf16.mxu0 0
      %1230 = vmatmul.mubr.bf16.gmra.mrb[0].mxu0 %v779
      %v1231 = vpop.f32.mrb[0].mxu0
      %v1232 = vadd.f32 %v312, %v1231
      %v1233 = vpop.f32.mrb[0].mxu0
      %v1234 = vpop.f32.mrb[0].mxu0
      %v1235 = vadd.f32 %v312, %v1234
      %v1236 = vpop.f32.mrb[0].mxu0
      %1237 = vmatprep.mubr.bf16.mxu0 0
      %1238 = vmatmul.mubr.bf16.gmra.mrb[0].mxu0 %v782
      %v1239 = vpop.f32.mrb[0].mxu0
      %v1240 = vadd.f32 %v312, %v1239
      %v1241 = vpop.f32.mrb[0].mxu0
      %v1242 = vpop.f32.mrb[0].mxu0
      %v1243 = vadd.f32 %v312, %v1242
      %v1244 = vpop.f32.mrb[0].mxu0
      %1245 = vmatprep.mubr.bf16.mxu0 0
      %1246 = vmatmul.mubr.bf16.gmra.mrb[0].mxu0 %v785
      %v1247 = vpop.f32.mrb[0].mxu0
      %v1248 = vadd.f32 %v312, %v1247
      %v1249 = vpop.f32.mrb[0].mxu0
      %v1250 = vpop.f32.mrb[0].mxu0
      %v1251 = vadd.f32 %v312, %v1250
      %v1252 = vpop.f32.mrb[0].mxu0
      %1253 = vmatprep.mubr.bf16.mxu0 0
      %1254 = vmatmul.mubr.bf16.gmra.mrb[0].mxu0 %v788
      %v1255 = vpop.f32.mrb[0].mxu0
      %v1256 = vadd.f32 %v312, %v1255
      %v1257 = vpop.f32.mrb[0].mxu0
      %v1258 = vpop.f32.mrb[0].mxu0
      %v1259 = vadd.f32 %v312, %v1258
      %v1260 = vpop.f32.mrb[0].mxu0
      %1261 = vmatprep.mubr.bf16.mxu0 0
      %1262 = vmatmul.mubr.bf16.gmra.mrb[0].mxu0 %v791
      %v1263 = vpop.f32.mrb[0].mxu0
      %v1264 = vadd.f32 %v312, %v1263
      %v1265 = vpop.f32.mrb[0].mxu0
      %v1266 = vpop.f32.mrb[0].mxu0
      %v1267 = vadd.f32 %v312, %v1266
      %v1268 = vpop.f32.mrb[0].mxu0
      %1269 = vmatprep.mubr.bf16.mxu0 0
      %1270 = vmatmul.mubr.bf16.gmra.mrb[0].mxu0 %v794
      %v1271 = vpop.f32.mrb[0].mxu0
      %v1272 = vadd.f32 %v312, %v1271
      %v1273 = vpop.f32.mrb[0].mxu0
      %v1274 = vpop.f32.mrb[0].mxu0
      %v1275 = vadd.f32 %v312, %v1274
      %v1276 = vpop.f32.mrb[0].mxu0
      %1277 = vmatprep.mubr.bf16.mxu0 0
      %1278 = vmatmul.mubr.bf16.gmra.mrb[0].mxu0 %v797
      %v1279 = vpop.f32.mrb[0].mxu0
      %v1280 = vadd.f32 %v312, %v1279
      %v1281 = vpop.f32.mrb[0].mxu0
      %v1282 = vpop.f32.mrb[0].mxu0
      %v1283 = vadd.f32 %v312, %v1282
      %v1284 = vpop.f32.mrb[0].mxu0
      %1285 = vmatprep.mubr.bf16.mxu0 0
      %1286 = vmatmul.mubr.bf16.gmra.mrb[0].mxu0 %v800
      %v1287 = vpop.f32.mrb[0].mxu0
      %v1288 = vadd.f32 %v312, %v1287
      %v1289 = vpop.f32.mrb[0].mxu0
      %v1290 = vpop.f32.mrb[0].mxu0
      %v1291 = vadd.f32 %v312, %v1290
      %v1292 = vpop.f32.mrb[0].mxu0
      %1293 = vmatprep.mubr.bf16.mxu0 0
      %1294 = vmatmul.mubr.bf16.gmra.mrb[0].mxu0 %v803
      %v1295 = vpop.f32.mrb[0].mxu0
      %v1296 = vadd.f32 %v312, %v1295
      %v1297 = vpop.f32.mrb[0].mxu0
      %v1298 = vpop.f32.mrb[0].mxu0
      %v1299 = vadd.f32 %v312, %v1298
      %v1300 = vpop.f32.mrb[0].mxu0
      %1301 = vmatprep.mubr.bf16.mxu0 0
      %1302 = vmatmul.mubr.bf16.gmra.mrb[0].mxu0 %v806
      %v1303 = vpop.f32.mrb[0].mxu0
      %v1304 = vadd.f32 %v312, %v1303
      %v1305 = vpop.f32.mrb[0].mxu0
      %v1306 = vpop.f32.mrb[0].mxu0
      %v1307 = vadd.f32 %v312, %v1306
      %v1308 = vpop.f32.mrb[0].mxu0
      %1309 = vmatprep.mubr.bf16.mxu0 0
      %1310 = vmatmul.mubr.bf16.gmra.mrb[0].mxu0 %v809
      %v1311 = vpop.f32.mrb[0].mxu0
      %v1312 = vadd.f32 %v312, %v1311
      %v1313 = vpop.f32.mrb[0].mxu0
      %v1314 = vpop.f32.mrb[0].mxu0
      %v1315 = vadd.f32 %v312, %v1314
      %v1316 = vpop.f32.mrb[0].mxu0
      %1317 = vmatprep.mubr.bf16.mxu0 0
      %1318 = vmatmul.mubr.bf16.gmra.mrb[0].mxu0 %v812
      %v1319 = vpop.f32.mrb[0].mxu0
      %v1320 = vadd.f32 %v312, %v1319
      %v1321 = vpop.f32.mrb[0].mxu0
      %v1322 = vpop.f32.mrb[0].mxu0
      %v1323 = vadd.f32 %v312, %v1322
      %v1324 = vpop.f32.mrb[0].mxu0
      %1325 = vmatprep.mubr.bf16.mxu0 0
      %1326 = vmatmul.mubr.bf16.gmra.mrb[0].mxu0 %v815
      %v1327 = vpop.f32.mrb[0].mxu0
      %v1328 = vadd.f32 %v312, %v1327
      %v1329 = vpop.f32.mrb[0].mxu0
      %v1330 = vpop.f32.mrb[0].mxu0
      %v1331 = vadd.f32 %v312, %v1330
      %v1332 = vpop.f32.mrb[0].mxu0
      %1333 = vmatprep.mubr.bf16.mxu0 0
      %1334 = vmatmul.mubr.bf16.gmra.mrb[0].mxu0 %v818
      %v1335 = vpop.f32.mrb[0].mxu0
      %v1336 = vadd.f32 %v312, %v1335
      %v1337 = vpop.f32.mrb[0].mxu0
      %v1338 = vpop.f32.mrb[0].mxu0
      %v1339 = vadd.f32 %v312, %v1338
      %v1340 = vpop.f32.mrb[0].mxu0
      %1341 = vmatprep.mubr.bf16.mxu0 0
      %1342 = vmatmul.mubr.bf16.gmra.mrb[0].mxu0 %v821
      %v1343 = vpop.f32.mrb[0].mxu0
      %v1344 = vadd.f32 %v312, %v1343
      %v1345 = vpop.f32.mrb[0].mxu0
      %v1346 = vpop.f32.mrb[0].mxu0
      %v1347 = vadd.f32 %v312, %v1346
      %v1348 = vpop.f32.mrb[0].mxu0
      %1349 = vmatprep.mubr.bf16.mxu0 0
      %1350 = vmatmul.mubr.bf16.gmra.mrb[0].mxu0 %v824
      %v1351 = vpop.f32.mrb[0].mxu0
      %v1352 = vadd.f32 %v312, %v1351
      %v1353 = vpop.f32.mrb[0].mxu0
      %v1354 = vpop.f32.mrb[0].mxu0
      %v1355 = vadd.f32 %v312, %v1354
      %v1356 = vpop.f32.mrb[0].mxu0
      %1357 = vmatprep.mubr.bf16.mxu0 0
      %1358 = vmatmul.mubr.bf16.gmra.mrb[0].mxu0 %v827
      %v1359 = vpop.f32.mrb[0].mxu0
      %v1360 = vadd.f32 %v312, %v1359
      %v1361 = vpop.f32.mrb[0].mxu0
      %v1362 = vpop.f32.mrb[0].mxu0
      %v1363 = vadd.f32 %v312, %v1362
      %v1364 = vpop.f32.mrb[0].mxu0
      %1365 = vmatprep.mubr.bf16.mxu0 0
      %1366 = vmatmul.mubr.bf16.gmra.mrb[0].mxu0 %v830
      %v1367 = vpop.f32.mrb[0].mxu0
      %v1368 = vadd.f32 %v312, %v1367
      %v1369 = vpop.f32.mrb[0].mxu0
      %v1370 = vpop.f32.mrb[0].mxu0
      %v1371 = vadd.f32 %v312, %v1370
      %v1372 = vpop.f32.mrb[0].mxu0
      %1373 = vmatprep.mubr.bf16.mxu0 0
      %1374 = vmatmul.mubr.bf16.gmra.mrb[0].mxu0 %v833
      %v1375 = vpop.f32.mrb[0].mxu0
      %v1376 = vadd.f32 %v312, %v1375
      %v1377 = vpop.f32.mrb[0].mxu0
      %v1378 = vpop.f32.mrb[0].mxu0
      %v1379 = vadd.f32 %v312, %v1378
      %v1380 = vpop.f32.mrb[0].mxu0
      %1381 = vmatprep.mubr.bf16.mxu0 0
      %1382 = vmatmul.mubr.bf16.gmra.mrb[0].mxu0 %v836
      %v1383 = vpop.f32.mrb[0].mxu0
      %v1384 = vadd.f32 %v312, %v1383
      %v1385 = vpop.f32.mrb[0].mxu0
      %v1386 = vpop.f32.mrb[0].mxu0
      %v1387 = vadd.f32 %v312, %v1386
      %v1388 = vpop.f32.mrb[0].mxu0
      %1389 = vdwg.mxu0
      %v1390 = vmax.f32 %v880, 0.0
      %v1391 = vmax.f32 %v883, 0.0
      %v1392 = vmax.f32 %v888, 0.0
      %v1393 = vmax.f32 %v891, 0.0
      %v1394 = vmax.f32 %v896, 0.0
      %v1395 = vmax.f32 %v899, 0.0
      %v1396 = vmax.f32 %v904, 0.0
      %v1397 = vmax.f32 %v907, 0.0
      %v1398 = vmax.f32 %v912, 0.0
      %v1399 = vmax.f32 %v915, 0.0
      %v1400 = vmax.f32 %v920, 0.0
      %v1401 = vmax.f32 %v923, 0.0
      %v1402 = vmax.f32 %v928, 0.0
      %v1403 = vmax.f32 %v931, 0.0
      %v1404 = vmax.f32 %v936, 0.0
      %v1405 = vmax.f32 %v939, 0.0
      %v1406 = vmax.f32 %v944, 0.0
      %v1407 = vmax.f32 %v947, 0.0
      %v1408 = vmax.f32 %v952, 0.0
      %v1409 = vmax.f32 %v955, 0.0
      %v1410 = vmax.f32 %v960, 0.0
      %v1411 = vmax.f32 %v963, 0.0
      %v1412 = vmax.f32 %v968, 0.0
      %v1413 = vmax.f32 %v971, 0.0
      %v1414 = vmax.f32 %v976, 0.0
      %v1415 = vmax.f32 %v979, 0.0
      %v1416 = vmax.f32 %v984, 0.0
      %v1417 = vmax.f32 %v987, 0.0
      %v1418 = vmax.f32 %v992, 0.0
      %v1419 = vmax.f32 %v995, 0.0
      %v1420 = vmax.f32 %v1000, 0.0
      %v1421 = vmax.f32 %v1003, 0.0
      %v1422 = vmax.f32 %v1008, 0.0
      %v1423 = vmax.f32 %v1011, 0.0
      %v1424 = vmax.f32 %v1016, 0.0
      %v1425 = vmax.f32 %v1019, 0.0
      %v1426 = vmax.f32 %v1024, 0.0
      %v1427 = vmax.f32 %v1027, 0.0
      %v1428 = vmax.f32 %v1032, 0.0
      %v1429 = vmax.f32 %v1035, 0.0
      %v1430 = vmax.f32 %v1040, 0.0
      %v1431 = vmax.f32 %v1043, 0.0
      %v1432 = vmax.f32 %v1048, 0.0
      %v1433 = vmax.f32 %v1051, 0.0
      %v1434 = vmax.f32 %v1056, 0.0
      %v1435 = vmax.f32 %v1059, 0.0
      %v1436 = vmax.f32 %v1064, 0.0
      %v1437 = vmax.f32 %v1067, 0.0
      %v1438 = vmax.f32 %v1072, 0.0
      %v1439 = vmax.f32 %v1075, 0.0
      %v1440 = vmax.f32 %v1080, 0.0
      %v1441 = vmax.f32 %v1083, 0.0
      %v1442 = vmax.f32 %v1088, 0.0
      %v1443 = vmax.f32 %v1091, 0.0
      %v1444 = vmax.f32 %v1096, 0.0
      %v1445 = vmax.f32 %v1099, 0.0
      %v1446 = vmax.f32 %v1104, 0.0
      %v1447 = vmax.f32 %v1107, 0.0
      %v1448 = vmax.f32 %v1112, 0.0
      %v1449 = vmax.f32 %v1115, 0.0
      %v1450 = vmax.f32 %v1120, 0.0
      %v1451 = vmax.f32 %v1123, 0.0
      %v1452 = vmax.f32 %v1128, 0.0
      %v1453 = vmax.f32 %v1131, 0.0
      %v1454 = vmax.f32 %v1136, 0.0
      %v1455 = vmax.f32 %v1139, 0.0
      %v1456 = vmax.f32 %v1144, 0.0
      %v1457 = vmax.f32 %v1147, 0.0
      %v1458 = vmax.f32 %v1152, 0.0
      %v1459 = vmax.f32 %v1155, 0.0
      %v1460 = vmax.f32 %v1160, 0.0
      %v1461 = vmax.f32 %v1163, 0.0
      %v1462 = vmax.f32 %v1168, 0.0
      %v1463 = vmax.f32 %v1171, 0.0
      %v1464 = vmax.f32 %v1176, 0.0
      %v1465 = vmax.f32 %v1179, 0.0
      %v1466 = vmax.f32 %v1184, 0.0
      %v1467 = vmax.f32 %v1187, 0.0
      %v1468 = vmax.f32 %v1192, 0.0
      %v1469 = vmax.f32 %v1195, 0.0
      %v1470 = vmax.f32 %v1200, 0.0
      %v1471 = vmax.f32 %v1203, 0.0
      %v1472 = vmax.f32 %v1208, 0.0
      %v1473 = vmax.f32 %v1211, 0.0
      %v1474 = vmax.f32 %v1216, 0.0
      %v1475 = vmax.f32 %v1219, 0.0
      %v1476 = vmax.f32 %v1224, 0.0
      %v1477 = vmax.f32 %v1227, 0.0
      %v1478 = vmax.f32 %v1232, 0.0
      %v1479 = vmax.f32 %v1235, 0.0
      %v1480 = vmax.f32 %v1240, 0.0
      %v1481 = vmax.f32 %v1243, 0.0
      %v1482 = vmax.f32 %v1248, 0.0
      %v1483 = vmax.f32 %v1251, 0.0
      %v1484 = vmax.f32 %v1256, 0.0
      %v1485 = vmax.f32 %v1259, 0.0
      %v1486 = vmax.f32 %v1264, 0.0
      %v1487 = vmax.f32 %v1267, 0.0
      %v1488 = vmax.f32 %v1272, 0.0
      %v1489 = vmax.f32 %v1275, 0.0
      %v1490 = vmax.f32 %v1280, 0.0
      %v1491 = vmax.f32 %v1283, 0.0
      %v1492 = vmax.f32 %v1288, 0.0
      %v1493 = vmax.f32 %v1291, 0.0
      %v1494 = vmax.f32 %v1296, 0.0
      %v1495 = vmax.f32 %v1299, 0.0
      %v1496 = vmax.f32 %v1304, 0.0
      %v1497 = vmax.f32 %v1307, 0.0
      %v1498 = vmax.f32 %v1312, 0.0
      %v1499 = vmax.f32 %v1315, 0.0
      %v1500 = vmax.f32 %v1320, 0.0
      %v1501 = vmax.f32 %v1323, 0.0
      %v1502 = vmax.f32 %v1328, 0.0
      %v1503 = vmax.f32 %v1331, 0.0
      %v1504 = vmax.f32 %v1336, 0.0
      %v1505 = vmax.f32 %v1339, 0.0
      %v1506 = vmax.f32 %v1344, 0.0
      %v1507 = vmax.f32 %v1347, 0.0
      %v1508 = vmax.f32 %v1352, 0.0
      %v1509 = vmax.f32 %v1355, 0.0
      %v1510 = vmax.f32 %v1360, 0.0
      %v1511 = vmax.f32 %v1363, 0.0
      %v1512 = vmax.f32 %v1368, 0.0
      %v1513 = vmax.f32 %v1371, 0.0
      %v1514 = vmax.f32 %v1376, 0.0
      %v1515 = vmax.f32 %v1379, 0.0
      %v1516 = vmax.f32 %v1384, 0.0
      %v1517 = vmax.f32 %v1387, 0.0
      %1518 = vst [vmem:[%s172] sm:$0xff] %v1390
      %1519 = vst [vmem:[%s172 + $0x8] sm:$0xff] %v1391
      %1520 = vst [vmem:[%s172 + $0x10] sm:$0xff] %v1392
      %1521 = vst [vmem:[%s172 + $0x18] sm:$0xff] %v1393
      %1522 = vst [vmem:[%s172 + $0x20] sm:$0xff] %v1394
      %1523 = vst [vmem:[%s172 + $0x28] sm:$0xff] %v1395
      %1524 = vst [vmem:[%s172 + $0x30] sm:$0xff] %v1396
      %1525 = vst [vmem:[%s172 + $0x38] sm:$0xff] %v1397
      %1526 = vst [vmem:[%s172 + $0x40] sm:$0xff] %v1398
      %1527 = vst [vmem:[%s172 + $0x48] sm:$0xff] %v1399
      %1528 = vst [vmem:[%s172 + $0x50] sm:$0xff] %v1400
      %1529 = vst [vmem:[%s172 + $0x58] sm:$0xff] %v1401
      %1530 = vst [vmem:[%s172 + $0x60] sm:$0xff] %v1402
      %1531 = vst [vmem:[%s172 + $0x68] sm:$0xff] %v1403
      %1532 = vst [vmem:[%s172 + $0x70] sm:$0xff] %v1404
      %1533 = vst [vmem:[%s172 + $0x78] sm:$0xff] %v1405
      %1534 = vst [vmem:[%s172 + $0x80] sm:$0xff] %v1406
      %1535 = vst [vmem:[%s172 + $0x88] sm:$0xff] %v1407
      %1536 = vst [vmem:[%s172 + $0x90] sm:$0xff] %v1408
      %1537 = vst [vmem:[%s172 + $0x98] sm:$0xff] %v1409
      %1538 = vst [vmem:[%s172 + $0xa0] sm:$0xff] %v1410
      %1539 = vst [vmem:[%s172 + $0xa8] sm:$0xff] %v1411
      %1540 = vst [vmem:[%s172 + $0xb0] sm:$0xff] %v1412
      %1541 = vst [vmem:[%s172 + $0xb8] sm:$0xff] %v1413
      %1542 = vst [vmem:[%s172 + $0xc0] sm:$0xff] %v1414
      %1543 = vst [vmem:[%s172 + $0xc8] sm:$0xff] %v1415
      %1544 = vst [vmem:[%s172 + $0xd0] sm:$0xff] %v1416
      %1545 = vst [vmem:[%s172 + $0xd8] sm:$0xff] %v1417
      %1546 = vst [vmem:[%s172 + $0xe0] sm:$0xff] %v1418
      %1547 = vst [vmem:[%s172 + $0xe8] sm:$0xff] %v1419
      %1548 = vst [vmem:[%s172 + $0xf0] sm:$0xff] %v1420
      %1549 = vst [vmem:[%s172 + $0xf8] sm:$0xff] %v1421
      %1550 = vst [vmem:[%s172 + $0x100] sm:$0xff] %v1422
      %1551 = vst [vmem:[%s172 + $0x108] sm:$0xff] %v1423
      %1552 = vst [vmem:[%s172 + $0x110] sm:$0xff] %v1424
      %1553 = vst [vmem:[%s172 + $0x118] sm:$0xff] %v1425
      %1554 = vst [vmem:[%s172 + $0x120] sm:$0xff] %v1426
      %1555 = vst [vmem:[%s172 + $0x128] sm:$0xff] %v1427
      %1556 = vst [vmem:[%s172 + $0x130] sm:$0xff] %v1428
      %1557 = vst [vmem:[%s172 + $0x138] sm:$0xff] %v1429
      %1558 = vst [vmem:[%s172 + $0x140] sm:$0xff] %v1430
      %1559 = vst [vmem:[%s172 + $0x148] sm:$0xff] %v1431
      %1560 = vst [vmem:[%s172 + $0x150] sm:$0xff] %v1432
      %1561 = vst [vmem:[%s172 + $0x158] sm:$0xff] %v1433
      %1562 = vst [vmem:[%s172 + $0x160] sm:$0xff] %v1434
      %1563 = vst [vmem:[%s172 + $0x168] sm:$0xff] %v1435
      %1564 = vst [vmem:[%s172 + $0x170] sm:$0xff] %v1436
      %1565 = vst [vmem:[%s172 + $0x178] sm:$0xff] %v1437
      %1566 = vst [vmem:[%s172 + $0x180] sm:$0xff] %v1438
      %1567 = vst [vmem:[%s172 + $0x188] sm:$0xff] %v1439
      %1568 = vst [vmem:[%s172 + $0x190] sm:$0xff] %v1440
      %1569 = vst [vmem:[%s172 + $0x198] sm:$0xff] %v1441
      %1570 = vst [vmem:[%s172 + $0x1a0] sm:$0xff] %v1442
      %1571 = vst [vmem:[%s172 + $0x1a8] sm:$0xff] %v1443
      %1572 = vst [vmem:[%s172 + $0x1b0] sm:$0xff] %v1444
      %1573 = vst [vmem:[%s172 + $0x1b8] sm:$0xff] %v1445
      %1574 = vst [vmem:[%s172 + $0x1c0] sm:$0xff] %v1446
      %1575 = vst [vmem:[%s172 + $0x1c8] sm:$0xff] %v1447
      %1576 = vst [vmem:[%s172 + $0x1d0] sm:$0xff] %v1448
      %1577 = vst [vmem:[%s172 + $0x1d8] sm:$0xff] %v1449
      %1578 = vst [vmem:[%s172 + $0x1e0] sm:$0xff] %v1450
      %1579 = vst [vmem:[%s172 + $0x1e8] sm:$0xff] %v1451
      %1580 = vst [vmem:[%s172 + $0x1f0] sm:$0xff] %v1452
      %1581 = vst [vmem:[%s172 + $0x1f8] sm:$0xff] %v1453
      %1582 = vst [vmem:[%s172 + $0x200] sm:$0xff] %v1454
      %1583 = vst [vmem:[%s172 + $0x208] sm:$0xff] %v1455
      %1584 = vst [vmem:[%s172 + $0x210] sm:$0xff] %v1456
      %1585 = vst [vmem:[%s172 + $0x218] sm:$0xff] %v1457
      %1586 = vst [vmem:[%s172 + $0x220] sm:$0xff] %v1458
      %1587 = vst [vmem:[%s172 + $0x228] sm:$0xff] %v1459
      %1588 = vst [vmem:[%s172 + $0x230] sm:$0xff] %v1460
      %1589 = vst [vmem:[%s172 + $0x238] sm:$0xff] %v1461
      %1590 = vst [vmem:[%s172 + $0x240] sm:$0xff] %v1462
      %1591 = vst [vmem:[%s172 + $0x248] sm:$0xff] %v1463
      %1592 = vst [vmem:[%s172 + $0x250] sm:$0xff] %v1464
      %1593 = vst [vmem:[%s172 + $0x258] sm:$0xff] %v1465
      %1594 = vst [vmem:[%s172 + $0x260] sm:$0xff] %v1466
      %1595 = vst [vmem:[%s172 + $0x268] sm:$0xff] %v1467
      %1596 = vst [vmem:[%s172 + $0x270] sm:$0xff] %v1468
      %1597 = vst [vmem:[%s172 + $0x278] sm:$0xff] %v1469
      %1598 = vst [vmem:[%s172 + $0x280] sm:$0xff] %v1470
      %1599 = vst [vmem:[%s172 + $0x288] sm:$0xff] %v1471
      %1600 = vst [vmem:[%s172 + $0x290] sm:$0xff] %v1472
      %1601 = vst [vmem:[%s172 + $0x298] sm:$0xff] %v1473
      %1602 = vst [vmem:[%s172 + $0x2a0] sm:$0xff] %v1474
      %1603 = vst [vmem:[%s172 + $0x2a8] sm:$0xff] %v1475
      %1604 = vst [vmem:[%s172 + $0x2b0] sm:$0xff] %v1476
      %1605 = vst [vmem:[%s172 + $0x2b8] sm:$0xff] %v1477
      %1606 = vst [vmem:[%s172 + $0x2c0] sm:$0xff] %v1478
      %1607 = vst [vmem:[%s172 + $0x2c8] sm:$0xff] %v1479
      %1608 = vst [vmem:[%s172 + $0x2d0] sm:$0xff] %v1480
      %1609 = vst [vmem:[%s172 + $0x2d8] sm:$0xff] %v1481
      %1610 = vst [vmem:[%s172 + $0x2e0] sm:$0xff] %v1482
      %1611 = vst [vmem:[%s172 + $0x2e8] sm:$0xff] %v1483
      %1612 = vst [vmem:[%s172 + $0x2f0] sm:$0xff] %v1484
      %1613 = vst [vmem:[%s172 + $0x2f8] sm:$0xff] %v1485
      %1614 = vst [vmem:[%s172 + $0x300] sm:$0xff] %v1486
      %1615 = vst [vmem:[%s172 + $0x308] sm:$0xff] %v1487
      %1616 = vst [vmem:[%s172 + $0x310] sm:$0xff] %v1488
      %1617 = vst [vmem:[%s172 + $0x318] sm:$0xff] %v1489
      %1618 = vst [vmem:[%s172 + $0x320] sm:$0xff] %v1490
      %1619 = vst [vmem:[%s172 + $0x328] sm:$0xff] %v1491
      %1620 = vst [vmem:[%s172 + $0x330] sm:$0xff] %v1492
      %1621 = vst [vmem:[%s172 + $0x338] sm:$0xff] %v1493
      %1622 = vst [vmem:[%s172 + $0x340] sm:$0xff] %v1494
      %1623 = vst [vmem:[%s172 + $0x348] sm:$0xff] %v1495
      %1624 = vst [vmem:[%s172 + $0x350] sm:$0xff] %v1496
      %1625 = vst [vmem:[%s172 + $0x358] sm:$0xff] %v1497
      %1626 = vst [vmem:[%s172 + $0x360] sm:$0xff] %v1498
      %1627 = vst [vmem:[%s172 + $0x368] sm:$0xff] %v1499
      %1628 = vst [vmem:[%s172 + $0x370] sm:$0xff] %v1500
      %1629 = vst [vmem:[%s172 + $0x378] sm:$0xff] %v1501
      %1630 = vst [vmem:[%s172 + $0x380] sm:$0xff] %v1502
      %1631 = vst [vmem:[%s172 + $0x388] sm:$0xff] %v1503
      %1632 = vst [vmem:[%s172 + $0x390] sm:$0xff] %v1504
      %1633 = vst [vmem:[%s172 + $0x398] sm:$0xff] %v1505
      %1634 = vst [vmem:[%s172 + $0x3a0] sm:$0xff] %v1506
      %1635 = vst [vmem:[%s172 + $0x3a8] sm:$0xff] %v1507
      %1636 = vst [vmem:[%s172 + $0x3b0] sm:$0xff] %v1508
      %1637 = vst [vmem:[%s172 + $0x3b8] sm:$0xff] %v1509
      %1638 = vst [vmem:[%s172 + $0x3c0] sm:$0xff] %v1510
      %1639 = vst [vmem:[%s172 + $0x3c8] sm:$0xff] %v1511
      %1640 = vst [vmem:[%s172 + $0x3d0] sm:$0xff] %v1512
      %1641 = vst [vmem:[%s172 + $0x3d8] sm:$0xff] %v1513
      %1642 = vst [vmem:[%s172 + $0x3e0] sm:$0xff] %v1514
      %1643 = vst [vmem:[%s172 + $0x3e8] sm:$0xff] %v1515
      %1644 = vst [vmem:[%s172 + $0x3f0] sm:$0xff] %v1516
      %1645 = vst [vmem:[%s172 + $0x3f8] sm:$0xff] %v1517
      %s1646 = smul.u32 128, %s14
      %p1647 = scmp.lt.s32.totalorder %s1646, 255
      %s1648 = scalar_select %p1647, %s1646, 255
      %s1649 = smul.addr %s1648, 8
      %s1650 = scalar_lea.vmem %s3, %s1649
      // Predicated region
      $region33: #{custom_cnn_forward.3} parent=31 // pred_check
        %p1651 = pneg %p100
      $region34: #{custom_cnn_forward.3} parent=31 // pred_check_branch
        %1653 = sbr.rel (%p1651) target = $region36
      $region35: #{custom_cnn_forward.3} parent=31 // pred_region
        %s1654 = smul.u32 128, %s14
      $region36: #{custom_cnn_forward.3} parent=31 // pred_fallthru
        _
    $region32: #{custom_cnn_forward.3} parent=5 // pred_fallthru
      _
    %p1655 = scmp.le.s32.totalorder 2, %s9
    // Predicated region
    $region37: #{custom_cnn_forward.3} parent=5 // pred_check
      %p1656 = pneg %p1655
    $region38: #{custom_cnn_forward.3} parent=5 // pred_check_branch
      %1658 = sbr.rel (%p1656) target = $region40
    $region39: #{custom_cnn_forward.3} parent=5 // pred_region
      %s1659 = ssub.s32 %s9, 2
      // Predicated region
      $region41: #{custom_cnn_forward.3} parent=39 // pred_check
        %p1660 = pneg %p106
      $region42: #{custom_cnn_forward.3} parent=39 // pred_check_branch
        %1662 = sbr.rel (%p1660) target = $region44
      $region43: #{custom_cnn_forward.3} parent=39 // pred_region
        %s1663 = smul.u32 128, %s15
        %p1664 = scmp.lt.s32.totalorder %s1663, 255
        %s1665 = scalar_select %p1664, %s1663, 255
        %s1666 = smul.addr %s1665, 8
        %s1667 = scalar_lea.vmem %s3, %s1666
      $region44: #{custom_cnn_forward.3} parent=39 // pred_fallthru
        _
    $region40: #{custom_cnn_forward.3} parent=5 // pred_fallthru
      _
  $region6: #{custom_cnn_forward.3} parent=0 // loop_footer
    %s13 = sadd.s32 1, %s9
  $region7: #{custom_cnn_forward.3} parent=0 // loop_footer_branch
    %8 = sbr.rel target = $region3
  $region8: #{custom_cnn_forward.3} parent=0 // loop_exit
    _

// kernel: custom_cnn_forward.4
$region0: #{custom_cnn_forward.4}
  #allocation0 [shape = 'u32[]', space=smem, size = 0x4, offset = 0x4, fixed_abs, tag = 'smem constant byte address 0x4 - core index']
  #allocation1 [shape = 'u32[144,128]{1,0:T(1,128)}', space=vmem, size = 0x12000, scoped, tag = 'internal scratch']
  %s0 = inlined_call_operand.vmem [shape: bf16[464,144], index: 0, kind: input, shape index: {}]
  %s1 = inlined_call_operand.vmem [shape: bf16[144,128], index: 1, kind: input, shape index: {}]
  %s2 = inlined_call_operand.vmem [shape: f32[1,128], index: 2, kind: input, shape index: {}]
  %s3 = inlined_call_operand.vmem [shape: f32[464,128], index: 3, kind: output, shape index: {}]
  %s4 = sld [smem:[#allocation0]]
  $region45: #{custom_cnn_forward.4} parent=0
    _
  %s6 = ssub.s32 1, %s4
  %s7 = scalar_select 0, %s6, %s4
  loop: start=0, step=1, limit=4
  $region2: #{custom_cnn_forward.4} parent=0 // loop_pre_header
    _
  $region3: #{custom_cnn_forward.4} parent=0 // loop_header
    %s9 = sphi 0, %s13
    %p10 = scmp.ge.s32.totalorder %s9, 4
    %s19 = sphi 0, %s21
    %s22 = sphi 0, %s19
    %s23 = sphi 0, %s22
    %s39 = sphi 0, %s23
    %s43 = sphi 0, %s43
    %s45 = sphi 0, %s43
    %s46 = sphi 0, %s45
    %s60 = sphi 0, %s46
    %s64 = sphi 0, %s64
    %s66 = sphi 0, %s64
    %s67 = sphi 0, %s66
    %s81 = sphi 0, %s67
    %s87 = sphi 0, %s89
    %s90 = sphi 0, %s87
    %s91 = sphi 0, %s90
    %s107 = sphi 0, %s91
  $region4: #{custom_cnn_forward.4} parent=0 // loop_header_branch
    %12 = sbr.rel (%p10) target = $region8
  $region5: #{custom_cnn_forward.4} parent=0 // loop_body
    %s14 = ssub.s32 %s9, 1
    %s15 = ssub.s32 %s9, 2
    %s16 = sadd.s32 %s9, 1
    %s17 = ssub.s32 %s9, %s16
    %p18 = scmp.eq.s32.totalorder %s17, 0
    %s20 = sadd.s32 %s19, 1
    %s21 = scalar_select %p18, %s19, %s20
    %p24 = pneg %p18
    %p25 = scmp.eq.s32.totalorder %s9, 1
    %p26 = por %p24, %p25
    %p27 = scmp.ne.s32.totalorder %s19, %s22
    %p28 = scmp.eq.s32.totalorder %s9, 0
    %p29 = por %p27, %p28
    %p30 = scmp.ne.s32.totalorder %s19, %s22
    %p31 = scmp.eq.s32.totalorder %s14, 1
    %p32 = por %p30, %p31
    %p33 = scmp.ne.s32.totalorder %s22, %s23
    %p34 = scmp.eq.s32.totalorder %s14, 0
    %p35 = por %p33, %p34
    %p36 = scmp.ne.s32.totalorder %s22, %s23
    %p37 = scmp.eq.s32.totalorder %s15, 1
    %p38 = por %p36, %p37
    %p40 = scmp.ne.s32.totalorder %s23, %s39
    %p41 = scmp.eq.s32.totalorder %s15, 0
    %p42 = por %p40, %p41
    %s44 = sadd.s32 %s43, 1
    %p47 = scmp.eq.s32.totalorder %s9, 1
    %p48 = scmp.ne.s32.totalorder %s43, %s45
    %p49 = scmp.eq.s32.totalorder %s9, 0
    %p50 = por %p48, %p49
    %p51 = scmp.ne.s32.totalorder %s43, %s45
    %p52 = scmp.eq.s32.totalorder %s14, 1
    %p53 = por %p51, %p52
    %p54 = scmp.ne.s32.totalorder %s45, %s46
    %p55 = scmp.eq.s32.totalorder %s14, 0
    %p56 = por %p54, %p55
    %p57 = scmp.ne.s32.totalorder %s45, %s46
    %p58 = scmp.eq.s32.totalorder %s15, 1
    %p59 = por %p57, %p58
    %p61 = scmp.ne.s32.totalorder %s46, %s60
    %p62 = scmp.eq.s32.totalorder %s15, 0
    %p63 = por %p61, %p62
    %s65 = sadd.s32 %s64, 1
    %p68 = scmp.eq.s32.totalorder %s9, 1
    %p69 = scmp.ne.s32.totalorder %s64, %s66
    %p70 = scmp.eq.s32.totalorder %s9, 0
    %p71 = por %p69, %p70
    %p72 = scmp.ne.s32.totalorder %s64, %s66
    %p73 = scmp.eq.s32.totalorder %s14, 1
    %p74 = por %p72, %p73
    %p75 = scmp.ne.s32.totalorder %s66, %s67
    %p76 = scmp.eq.s32.totalorder %s14, 0
    %p77 = por %p75, %p76
    %p78 = scmp.ne.s32.totalorder %s66, %s67
    %p79 = scmp.eq.s32.totalorder %s15, 1
    %p80 = por %p78, %p79
    %p82 = scmp.ne.s32.totalorder %s67, %s81
    %p83 = scmp.eq.s32.totalorder %s15, 0
    %p84 = por %p82, %p83
    %s85 = ssub.s32 %s9, %s16
    %p86 = scmp.eq.s32.totalorder %s85, 0
    %s88 = sadd.s32 %s87, 1
    %s89 = scalar_select %p86, %s87, %s88
    %p92 = pneg %p86
    %p93 = scmp.eq.s32.totalorder %s9, 1
    %p94 = por %p92, %p93
    %p95 = scmp.ne.s32.totalorder %s87, %s90
    %p96 = scmp.eq.s32.totalorder %s9, 0
    %p97 = por %p95, %p96
    %p98 = scmp.ne.s32.totalorder %s87, %s90
    %p99 = scmp.eq.s32.totalorder %s14, 1
    %p100 = por %p98, %p99
    %p101 = scmp.ne.s32.totalorder %s90, %s91
    %p102 = scmp.eq.s32.totalorder %s14, 0
    %p103 = por %p101, %p102
    %p104 = scmp.ne.s32.totalorder %s90, %s91
    %p105 = scmp.eq.s32.totalorder %s15, 1
    %p106 = por %p104, %p105
    %p108 = scmp.ne.s32.totalorder %s91, %s107
    %p109 = scmp.eq.s32.totalorder %s15, 0
    %p110 = por %p108, %p109
    %p111 = scmp.le.s32.totalorder 1, %s9
    %p112 = scmp.lt.s32.totalorder %s9, 3
    %p113 = pnand %p111, %p112
    %p114 = pneg %p113
    // Predicated region
    $region9: #{custom_cnn_forward.4} parent=5 // pred_check
      _
    $region10: #{custom_cnn_forward.4} parent=5 // pred_check_branch
      %116 = sbr.rel (%p113) target = $region12
    $region11: #{custom_cnn_forward.4} parent=5 // pred_region
      %s117 = ssub.s32 %s9, 1
      // Predicated region
      $region13: #{custom_cnn_forward.4} parent=11 // pred_check
        %p118 = pneg %p56
      $region14: #{custom_cnn_forward.4} parent=11 // pred_check_branch
        %120 = sbr.rel (%p118) target = $region16
      $region15: #{custom_cnn_forward.4} parent=11 // pred_region
        _
      $region16: #{custom_cnn_forward.4} parent=11 // pred_fallthru
        _
      // Predicated region
      $region17: #{custom_cnn_forward.4} parent=11 // pred_check
        %p121 = pneg %p77
      $region18: #{custom_cnn_forward.4} parent=11 // pred_check_branch
        %123 = sbr.rel (%p121) target = $region20
      $region19: #{custom_cnn_forward.4} parent=11 // pred_region
        _
      $region20: #{custom_cnn_forward.4} parent=11 // pred_fallthru
        _
    $region12: #{custom_cnn_forward.4} parent=5 // pred_fallthru
      _
    %p124 = scmp.lt.s32.totalorder %s9, 2
    // Predicated region
    $region21: #{custom_cnn_forward.4} parent=5 // pred_check
      %p125 = pneg %p124
    $region22: #{custom_cnn_forward.4} parent=5 // pred_check_branch
      %127 = sbr.rel (%p125) target = $region24
    $region23: #{custom_cnn_forward.4} parent=5 // pred_region
      // Predicated region
      $region25: #{custom_cnn_forward.4} parent=23 // pred_check
        %p128 = pneg %p29
      $region26: #{custom_cnn_forward.4} parent=23 // pred_check_branch
        %130 = sbr.rel (%p128) target = $region28
      $region27: #{custom_cnn_forward.4} parent=23 // pred_region
        %s131 = smul.u32 29, %s9
        %p132 = scmp.lt.s32.totalorder %s131, 57
        %s133 = scalar_select %p132, %s131, 57
        %s134 = smul.addr %s133, 2
        %s135 = smul.addr %s134, 4
        %s136 = scalar_lea.vmem %s0, %s135
        %s137 = smul.u32 29, %s9
      $region28: #{custom_cnn_forward.4} parent=23 // pred_fallthru
        _
    $region24: #{custom_cnn_forward.4} parent=5 // pred_fallthru
      _
    %p138 = scmp.le.s32.totalorder 1, %s9
    %p139 = scmp.lt.s32.totalorder %s9, 3
    %p140 = pnand %p138, %p139
    %p141 = pneg %p140
    // Predicated region
    $region29: #{custom_cnn_forward.4} parent=5 // pred_check
      _
    $region30: #{custom_cnn_forward.4} parent=5 // pred_check_branch
      %143 = sbr.rel (%p140) target = $region32
    $region31: #{custom_cnn_forward.4} parent=5 // pred_region
      %s144 = ssub.s32 %s9, 1
      %s145 = smul.u32 29, %s14
      %p146 = scmp.lt.s32.totalorder %s145, 57
      %s147 = scalar_select %p146, %s145, 57
      %s148 = smul.addr %s147, 2
      %s149 = smul.addr %s148, 4
      %s150 = scalar_lea.vmem %s0, %s149
      %p151 = pneg %p35
      %p152 = pneg %p32
      %p153 = pneg %p56
      %p154 = pneg %p53
      %p155 = pneg %p77
      %p156 = pneg %p74
      %p157 = pneg %p103
      %p158 = pneg %p100
      %s159 = smul.u32 29, %s14
      %p160 = scmp.lt.s32.totalorder %s159, 57
      %s161 = scalar_select %p160, %s159, 57
      %s162 = smul.addr %s161, 8
      %s163 = scalar_lea.vmem %s3, %s162
      %s164 = smul.u32 29, %s14
      %p165 = scmp.lt.s32.totalorder %s164, 57
      %s166 = scalar_select %p165, %s164, 57
      %s167 = smul.addr %s166, 2
      %s168 = smul.addr %s167, 4
      %s169 = scalar_lea.vmem %s0, %s168
      %s170 = smul.u32 29, %s14
      %s171 = smul.u32 29, %s14
      %p172 = scmp.lt.s32.totalorder %s171, 57
      %s173 = scalar_select %p172, %s171, 57
      %s174 = smul.addr %s173, 8
      %s175 = scalar_lea.vmem %s3, %s174
      %s176 = smul.u32 29, %s14
      %v178 = vld [vmem:[%s169] sm:$0xff]
      %v179 = vld [vmem:[%s169 + $0x8] sm:$0xff]
      %v180 = vld [vmem:[%s169 + $0x10] sm:$0xff]
      %v181 = vld [vmem:[%s169 + $0x18] sm:$0xff]
      %v182 = vld [vmem:[%s169 + $0x20] sm:$0xff]
      %v183 = vld [vmem:[%s169 + $0x28] sm:$0xff]
      %v184 = vld [vmem:[%s169 + $0x30] sm:$0xff]
      %v185 = vld [vmem:[%s169 + $0x38] sm:$0xff]
      %v186 = vld [vmem:[%s169 + $0x40] sm:$0xff]
      %v187 = vld [vmem:[%s169 + $0x48] sm:$0xff]
      %v188 = vld [vmem:[%s169 + $0x50] sm:$0xff]
      %v189 = vld [vmem:[%s169 + $0x58] sm:$0xff]
      %v190 = vld [vmem:[%s169 + $0x60] sm:$0xff]
      %v191 = vld [vmem:[%s169 + $0x68] sm:$0xff]
      %v192 = vld [vmem:[%s169 + $0x70] sm:$0xff]
      %v193 = vld [vmem:[%s169 + $0x78] sm:$0xff]
      %v194 = vld [vmem:[%s169 + $0x80] sm:$0xff]
      %v195 = vld [vmem:[%s169 + $0x88] sm:$0xff]
      %v196 = vld [vmem:[%s169 + $0x90] sm:$0xff]
      %v197 = vld [vmem:[%s169 + $0x98] sm:$0xff]
      %v198 = vld [vmem:[%s169 + $0xa0] sm:$0xff]
      %v199 = vld [vmem:[%s169 + $0xa8] sm:$0xff]
      %v200 = vld [vmem:[%s169 + $0xb0] sm:$0xff]
      %v201 = vld [vmem:[%s169 + $0xb8] sm:$0xff]
      %v202 = vld [vmem:[%s169 + $0xc0] sm:$0xff]
      %v203 = vld [vmem:[%s169 + $0xc8] sm:$0xff]
      %v204 = vld [vmem:[%s169 + $0xd0] sm:$0xff]
      %v205 = vld [vmem:[%s169 + $0xd8] sm:$0xff]
      %v206 = vld [vmem:[%s169 + $0xe0] sm:$0xff]
      %v207 = vld [vmem:[%s1] sm:$0xf]
      %v208 = vld [vmem:[%s1 + $0x4] sm:$0xf]
      %v209 = vld [vmem:[%s1 + $0x8] sm:$0xf]
      %v210 = vld [vmem:[%s1 + $0xc] sm:$0xf]
      %v211 = vld [vmem:[%s1 + $0x10] sm:$0xf]
      %v212 = vld [vmem:[%s1 + $0x14] sm:$0xf]
      %v213 = vld [vmem:[%s1 + $0x18] sm:$0xf]
      %v214 = vld [vmem:[%s1 + $0x1c] sm:$0xf]
      %v215 = vld [vmem:[%s1 + $0x20] sm:$0xf]
      %v216 = vld [vmem:[%s1 + $0x24] sm:$0xf]
      %v217 = vld [vmem:[%s1 + $0x28] sm:$0xf]
      %v218 = vld [vmem:[%s1 + $0x2c] sm:$0xf]
      %v219 = vld [vmem:[%s1 + $0x30] sm:$0xf]
      %v220 = vld [vmem:[%s1 + $0x34] sm:$0xf]
      %v221 = vld [vmem:[%s1 + $0x38] sm:$0xf]
      %v222 = vld [vmem:[%s1 + $0x3c] sm:$0xf]
      %v223 = vld [vmem:[%s1 + $0x40] sm:$0xf]
      %v224 = vld [vmem:[%s1 + $0x44] sm:$0xf]
      %v225 = vld [vmem:[%s2] sm:$0x1]
      %v227 = vlaneseq
      %v228 = vshrl.u32 %v227, 7
      %v229 = vsub.s32 0, %v228
      %v230 = vrot.slane %v225, %v229
      %v261 = vunpack.c.l.b16 %v178
      %v262 = vunpack.c.h.b16 %v178
      %v263 = vunpack.c.l.b16 %v179
      %v264 = vunpack.c.h.b16 %v179
      %v265 = vunpack.c.l.b16 %v180
      %v266 = vunpack.c.h.b16 %v180
      %v267 = vunpack.c.l.b16 %v181
      %v268 = vunpack.c.h.b16 %v181
      %v269 = vunpack.c.l.b16 %v182
      %v270 = vunpack.c.h.b16 %v182
      %v271 = vunpack.c.l.b16 %v183
      %v272 = vunpack.c.h.b16 %v183
      %v273 = vunpack.c.l.b16 %v184
      %v274 = vunpack.c.h.b16 %v184
      %v275 = vunpack.c.l.b16 %v185
      %v276 = vunpack.c.h.b16 %v185
      %v277 = vunpack.c.l.b16 %v186
      %v278 = vunpack.c.h.b16 %v186
      %v279 = vunpack.c.l.b16 %v187
      %v280 = vunpack.c.h.b16 %v187
      %v281 = vunpack.c.l.b16 %v188
      %v282 = vunpack.c.h.b16 %v188
      %v283 = vunpack.c.l.b16 %v189
      %v284 = vunpack.c.h.b16 %v189
      %v285 = vunpack.c.l.b16 %v190
      %v286 = vunpack.c.h.b16 %v190
      %v287 = vunpack.c.l.b16 %v191
      %v288 = vunpack.c.h.b16 %v191
      %v289 = vunpack.c.l.b16 %v192
      %v290 = vunpack.c.h.b16 %v192
      %v291 = vunpack.c.l.b16 %v193
      %v292 = vunpack.c.h.b16 %v193
      %v293 = vunpack.c.l.b16 %v194
      %v294 = vunpack.c.h.b16 %v194
      %v295 = vunpack.c.l.b16 %v195
      %v296 = vunpack.c.h.b16 %v195
      %v297 = vunpack.c.l.b16 %v196
      %v298 = vunpack.c.h.b16 %v196
      %v299 = vunpack.c.l.b16 %v197
      %v300 = vunpack.c.h.b16 %v197
      %v301 = vunpack.c.l.b16 %v198
      %v302 = vunpack.c.h.b16 %v198
      %v303 = vunpack.c.l.b16 %v199
      %v304 = vunpack.c.h.b16 %v199
      %v305 = vunpack.c.l.b16 %v200
      %v306 = vunpack.c.h.b16 %v200
      %v307 = vunpack.c.l.b16 %v201
      %v308 = vunpack.c.h.b16 %v201
      %v309 = vunpack.c.l.b16 %v202
      %v310 = vunpack.c.h.b16 %v202
      %v311 = vunpack.c.l.b16 %v203
      %v312 = vunpack.c.h.b16 %v203
      %v313 = vunpack.c.l.b16 %v204
      %v314 = vunpack.c.h.b16 %v204
      %v315 = vunpack.c.l.b16 %v205
      %v316 = vunpack.c.h.b16 %v205
      %v317 = vunpack.c.l.b16 %v206
      %v318 = vunpack.c.h.b16 %v206
      %v319 = vpack.c.b16 %v263, %v261
      %v320 = vpack.c.b16 %v264, %v262
      %v321 = vpack.c.b16 %v267, %v265
      %v322 = vpack.c.b16 %v268, %v266
      %v323 = vpack.c.b16 %v271, %v269
      %v324 = vpack.c.b16 %v272, %v270
      %v325 = vpack.c.b16 %v275, %v273
      %v326 = vpack.c.b16 %v276, %v274
      %v327 = vpack.c.b16 %v279, %v277
      %v328 = vpack.c.b16 %v280, %v278
      %v329 = vpack.c.b16 %v283, %v281
      %v330 = vpack.c.b16 %v284, %v282
      %v331 = vpack.c.b16 %v287, %v285
      %v332 = vpack.c.b16 %v288, %v286
      %v333 = vpack.c.b16 %v291, %v289
      %v334 = vpack.c.b16 %v292, %v290
      %v335 = vpack.c.b16 %v295, %v293
      %v336 = vpack.c.b16 %v296, %v294
      %v337 = vpack.c.b16 %v299, %v297
      %v338 = vpack.c.b16 %v300, %v298
      %v339 = vpack.c.b16 %v303, %v301
      %v340 = vpack.c.b16 %v304, %v302
      %v341 = vpack.c.b16 %v307, %v305
      %v342 = vpack.c.b16 %v308, %v306
      %v343 = vpack.c.b16 %v311, %v309
      %v344 = vpack.c.b16 %v312, %v310
      %v345 = vpack.c.b16 %v315, %v313
      %v346 = vpack.c.b16 %v316, %v314
      %v347 = vpack.c.b16 %v317, %v317
      %v348 = vpack.c.b16 %v318, %v318
      %v382 = vunpack.c.l.b16 %v207
      %v383 = vunpack.c.l.b16 %v208
      %v384 = vunpack.c.l.b16 %v209
      %v385 = vunpack.c.l.b16 %v210
      %v386 = vunpack.c.l.b16 %v211
      %v387 = vunpack.c.l.b16 %v212
      %v388 = vunpack.c.l.b16 %v213
      %v389 = vunpack.c.l.b16 %v214
      %v390 = vunpack.c.l.b16 %v215
      %v391 = vunpack.c.l.b16 %v216
      %v392 = vunpack.c.l.b16 %v217
      %v393 = vunpack.c.l.b16 %v218
      %v394 = vunpack.c.l.b16 %v219
      %v395 = vunpack.c.l.b16 %v220
      %v396 = vunpack.c.l.b16 %v221
      %v397 = vunpack.c.l.b16 %v222
      %v398 = vunpack.c.l.b16 %v223
      %v399 = vunpack.c.l.b16 %v224
      %v400 = vpack.c.b16 %v383, %v382
      %v401 = vpack.c.b16 %v385, %v384
      %v402 = vpack.c.b16 %v387, %v386
      %v403 = vpack.c.b16 %v389, %v388
      %v404 = vpack.c.b16 %v391, %v390
      %v405 = vpack.c.b16 %v393, %v392
      %v406 = vpack.c.b16 %v395, %v394
      %v407 = vpack.c.b16 %v397, %v396
      %v408 = vpack.c.b16 %v399, %v398
      %vm418 = vcmask 130048
      %v420 = vsel %vm418, %v320, 0
      %v423 = vsel %vm418, %v322, 0
      %v426 = vsel %vm418, %v324, 0
      %v429 = vsel %vm418, %v326, 0
      %v432 = vsel %vm418, %v328, 0
      %v435 = vsel %vm418, %v330, 0
      %v438 = vsel %vm418, %v332, 0
      %v441 = vsel %vm418, %v334, 0
      %v444 = vsel %vm418, %v336, 0
      %v447 = vsel %vm418, %v338, 0
      %v450 = vsel %vm418, %v340, 0
      %v453 = vsel %vm418, %v342, 0
      %v456 = vsel %vm418, %v344, 0
      %v459 = vsel %vm418, %v346, 0
      %v462 = vsel %vm418, %v348, 0
      %464 = vmatprep.subr.bf16.mxu0 0
      %465 = vmatpush1.bf16.msra.mxu0 %v400
      %466 = vmatprep.subr.bf16.mxu0 0
      %467 = vmatpush1.bf16.msra.mxu0 %v401
      %468 = vmatprep.subr.bf16.mxu0 0
      %469 = vmatpush1.bf16.msra.mxu0 %v402
      %470 = vmatprep.subr.bf16.mxu0 0
      %471 = vmatpush1.bf16.msra.mxu0 %v403
      %472 = vmatprep.subr.bf16.mxu0 0
      %473 = vmatpush1.bf16.msra.mxu0 %v404
      %474 = vmatprep.subr.bf16.mxu0 0
      %475 = vmatpush1.bf16.msra.mxu0 %v405
      %476 = vmatprep.subr.bf16.mxu0 0
      %477 = vmatpush1.bf16.msra.mxu0 %v406
      %478 = vmatprep.subr.bf16.mxu0 0
      %479 = vmatpush1.bf16.msra.mxu0 %v407
      %480 = vmatprep.subr.bf16.mxu0 0
      %481 = vmatpush1.bf16.msra.mxu0 %v408
      %482 = vmatprep.subr.bf16.mxu0 0
      %483 = vmatpush1.bf16.msra.mxu0 0
      %484 = vmatprep.subr.bf16.mxu0 0
      %485 = vmatpush1.bf16.msra.mxu0 0
      %486 = vmatprep.subr.bf16.mxu0 0
      %487 = vmatpush1.bf16.msra.mxu0 0
      %488 = vmatprep.subr.bf16.mxu0 0
      %489 = vmatpush1.bf16.msra.mxu0 0
      %490 = vmatprep.subr.bf16.mxu0 0
      %491 = vmatpush1.bf16.msra.mxu0 0
      %492 = vmatprep.subr.bf16.mxu0 0
      %493 = vmatpush1.bf16.msra.mxu0 0
      %494 = vmatprep.subr.bf16.mxu0 0
      %495 = vmatpush1.bf16.msra.mxu0 0
      %496 = vmatprep.mubr.bf16.mxu0 %v420
      %497 = vmatmul.mubr.bf16.gmra.mrb[0].mxu0 %v319
      %v498 = vpop.f32.mrb[0].mxu0
      %v499 = vadd.f32 %v230, %v498
      %v500 = vpop.f32.mrb[0].mxu0
      %v501 = vpop.f32.mrb[0].mxu0
      %v502 = vadd.f32 %v230, %v501
      %v503 = vpop.f32.mrb[0].mxu0
      %504 = vmatprep.mubr.bf16.mxu0 %v423
      %505 = vmatmul.mubr.bf16.gmra.mrb[0].mxu0 %v321
      %v506 = vpop.f32.mrb[0].mxu0
      %v507 = vadd.f32 %v230, %v506
      %v508 = vpop.f32.mrb[0].mxu0
      %v509 = vpop.f32.mrb[0].mxu0
      %v510 = vadd.f32 %v230, %v509
      %v511 = vpop.f32.mrb[0].mxu0
      %512 = vmatprep.mubr.bf16.mxu0 %v426
      %513 = vmatmul.mubr.bf16.gmra.mrb[0].mxu0 %v323
      %v514 = vpop.f32.mrb[0].mxu0
      %v515 = vadd.f32 %v230, %v514
      %v516 = vpop.f32.mrb[0].mxu0
      %v517 = vpop.f32.mrb[0].mxu0
      %v518 = vadd.f32 %v230, %v517
      %v519 = vpop.f32.mrb[0].mxu0
      %520 = vmatprep.mubr.bf16.mxu0 %v429
      %521 = vmatmul.mubr.bf16.gmra.mrb[0].mxu0 %v325
      %v522 = vpop.f32.mrb[0].mxu0
      %v523 = vadd.f32 %v230, %v522
      %v524 = vpop.f32.mrb[0].mxu0
      %v525 = vpop.f32.mrb[0].mxu0
      %v526 = vadd.f32 %v230, %v525
      %v527 = vpop.f32.mrb[0].mxu0
      %528 = vmatprep.mubr.bf16.mxu0 %v432
      %529 = vmatmul.mubr.bf16.gmra.mrb[0].mxu0 %v327
      %v530 = vpop.f32.mrb[0].mxu0
      %v531 = vadd.f32 %v230, %v530
      %v532 = vpop.f32.mrb[0].mxu0
      %v533 = vpop.f32.mrb[0].mxu0
      %v534 = vadd.f32 %v230, %v533
      %v535 = vpop.f32.mrb[0].mxu0
      %536 = vmatprep.mubr.bf16.mxu0 %v435
      %537 = vmatmul.mubr.bf16.gmra.mrb[0].mxu0 %v329
      %v538 = vpop.f32.mrb[0].mxu0
      %v539 = vadd.f32 %v230, %v538
      %v540 = vpop.f32.mrb[0].mxu0
      %v541 = vpop.f32.mrb[0].mxu0
      %v542 = vadd.f32 %v230, %v541
      %v543 = vpop.f32.mrb[0].mxu0
      %544 = vmatprep.mubr.bf16.mxu0 %v438
      %545 = vmatmul.mubr.bf16.gmra.mrb[0].mxu0 %v331
      %v546 = vpop.f32.mrb[0].mxu0
      %v547 = vadd.f32 %v230, %v546
      %v548 = vpop.f32.mrb[0].mxu0
      %v549 = vpop.f32.mrb[0].mxu0
      %v550 = vadd.f32 %v230, %v549
      %v551 = vpop.f32.mrb[0].mxu0
      %552 = vmatprep.mubr.bf16.mxu0 %v441
      %553 = vmatmul.mubr.bf16.gmra.mrb[0].mxu0 %v333
      %v554 = vpop.f32.mrb[0].mxu0
      %v555 = vadd.f32 %v230, %v554
      %v556 = vpop.f32.mrb[0].mxu0
      %v557 = vpop.f32.mrb[0].mxu0
      %v558 = vadd.f32 %v230, %v557
      %v559 = vpop.f32.mrb[0].mxu0
      %560 = vmatprep.mubr.bf16.mxu0 %v444
      %561 = vmatmul.mubr.bf16.gmra.mrb[0].mxu0 %v335
      %v562 = vpop.f32.mrb[0].mxu0
      %v563 = vadd.f32 %v230, %v562
      %v564 = vpop.f32.mrb[0].mxu0
      %v565 = vpop.f32.mrb[0].mxu0
      %v566 = vadd.f32 %v230, %v565
      %v567 = vpop.f32.mrb[0].mxu0
      %568 = vmatprep.mubr.bf16.mxu0 %v447
      %569 = vmatmul.mubr.bf16.gmra.mrb[0].mxu0 %v337
      %v570 = vpop.f32.mrb[0].mxu0
      %v571 = vadd.f32 %v230, %v570
      %v572 = vpop.f32.mrb[0].mxu0
      %v573 = vpop.f32.mrb[0].mxu0
      %v574 = vadd.f32 %v230, %v573
      %v575 = vpop.f32.mrb[0].mxu0
      %576 = vmatprep.mubr.bf16.mxu0 %v450
      %577 = vmatmul.mubr.bf16.gmra.mrb[0].mxu0 %v339
      %v578 = vpop.f32.mrb[0].mxu0
      %v579 = vadd.f32 %v230, %v578
      %v580 = vpop.f32.mrb[0].mxu0
      %v581 = vpop.f32.mrb[0].mxu0
      %v582 = vadd.f32 %v230, %v581
      %v583 = vpop.f32.mrb[0].mxu0
      %584 = vmatprep.mubr.bf16.mxu0 %v453
      %585 = vmatmul.mubr.bf16.gmra.mrb[0].mxu0 %v341
      %v586 = vpop.f32.mrb[0].mxu0
      %v587 = vadd.f32 %v230, %v586
      %v588 = vpop.f32.mrb[0].mxu0
      %v589 = vpop.f32.mrb[0].mxu0
      %v590 = vadd.f32 %v230, %v589
      %v591 = vpop.f32.mrb[0].mxu0
      %592 = vmatprep.mubr.bf16.mxu0 %v456
      %593 = vmatmul.mubr.bf16.gmra.mrb[0].mxu0 %v343
      %v594 = vpop.f32.mrb[0].mxu0
      %v595 = vadd.f32 %v230, %v594
      %v596 = vpop.f32.mrb[0].mxu0
      %v597 = vpop.f32.mrb[0].mxu0
      %v598 = vadd.f32 %v230, %v597
      %v599 = vpop.f32.mrb[0].mxu0
      %600 = vmatprep.mubr.bf16.mxu0 %v459
      %601 = vmatmul.mubr.bf16.gmra.mrb[0].mxu0 %v345
      %v602 = vpop.f32.mrb[0].mxu0
      %v603 = vadd.f32 %v230, %v602
      %v604 = vpop.f32.mrb[0].mxu0
      %v605 = vpop.f32.mrb[0].mxu0
      %v606 = vadd.f32 %v230, %v605
      %v607 = vpop.f32.mrb[0].mxu0
      %608 = vmatprep.mubr.bf16.mxu0 %v462
      %609 = vmatmul.mubr.bf16.gmra.mrb[0].mxu0 %v347
      %v610 = vpop.f32.mrb[0].mxu0
      %v611 = vadd.f32 %v230, %v610
      %v612 = vpop.f32.mrb[0].mxu0
      %v613 = vpop.f32.mrb[0].mxu0
      %v614 = vpop.f32.mrb[0].mxu0
      %615 = vdwg.mxu0
      %v616 = vmax.f32 %v499, 0.0
      %v617 = vmax.f32 %v502, 0.0
      %v618 = vmax.f32 %v507, 0.0
      %v619 = vmax.f32 %v510, 0.0
      %v620 = vmax.f32 %v515, 0.0
      %v621 = vmax.f32 %v518, 0.0
      %v622 = vmax.f32 %v523, 0.0
      %v623 = vmax.f32 %v526, 0.0
      %v624 = vmax.f32 %v531, 0.0
      %v625 = vmax.f32 %v534, 0.0
      %v626 = vmax.f32 %v539, 0.0
      %v627 = vmax.f32 %v542, 0.0
      %v628 = vmax.f32 %v547, 0.0
      %v629 = vmax.f32 %v550, 0.0
      %v630 = vmax.f32 %v555, 0.0
      %v631 = vmax.f32 %v558, 0.0
      %v632 = vmax.f32 %v563, 0.0
      %v633 = vmax.f32 %v566, 0.0
      %v634 = vmax.f32 %v571, 0.0
      %v635 = vmax.f32 %v574, 0.0
      %v636 = vmax.f32 %v579, 0.0
      %v637 = vmax.f32 %v582, 0.0
      %v638 = vmax.f32 %v587, 0.0
      %v639 = vmax.f32 %v590, 0.0
      %v640 = vmax.f32 %v595, 0.0
      %v641 = vmax.f32 %v598, 0.0
      %v642 = vmax.f32 %v603, 0.0
      %v643 = vmax.f32 %v606, 0.0
      %v644 = vmax.f32 %v611, 0.0
      %645 = vst [vmem:[%s175] sm:$0xff] %v616
      %646 = vst [vmem:[%s175 + $0x8] sm:$0xff] %v617
      %647 = vst [vmem:[%s175 + $0x10] sm:$0xff] %v618
      %648 = vst [vmem:[%s175 + $0x18] sm:$0xff] %v619
      %649 = vst [vmem:[%s175 + $0x20] sm:$0xff] %v620
      %650 = vst [vmem:[%s175 + $0x28] sm:$0xff] %v621
      %651 = vst [vmem:[%s175 + $0x30] sm:$0xff] %v622
      %652 = vst [vmem:[%s175 + $0x38] sm:$0xff] %v623
      %653 = vst [vmem:[%s175 + $0x40] sm:$0xff] %v624
      %654 = vst [vmem:[%s175 + $0x48] sm:$0xff] %v625
      %655 = vst [vmem:[%s175 + $0x50] sm:$0xff] %v626
      %656 = vst [vmem:[%s175 + $0x58] sm:$0xff] %v627
      %657 = vst [vmem:[%s175 + $0x60] sm:$0xff] %v628
      %658 = vst [vmem:[%s175 + $0x68] sm:$0xff] %v629
      %659 = vst [vmem:[%s175 + $0x70] sm:$0xff] %v630
      %660 = vst [vmem:[%s175 + $0x78] sm:$0xff] %v631
      %661 = vst [vmem:[%s175 + $0x80] sm:$0xff] %v632
      %662 = vst [vmem:[%s175 + $0x88] sm:$0xff] %v633
      %663 = vst [vmem:[%s175 + $0x90] sm:$0xff] %v634
      %664 = vst [vmem:[%s175 + $0x98] sm:$0xff] %v635
      %665 = vst [vmem:[%s175 + $0xa0] sm:$0xff] %v636
      %666 = vst [vmem:[%s175 + $0xa8] sm:$0xff] %v637
      %667 = vst [vmem:[%s175 + $0xb0] sm:$0xff] %v638
      %668 = vst [vmem:[%s175 + $0xb8] sm:$0xff] %v639
      %669 = vst [vmem:[%s175 + $0xc0] sm:$0xff] %v640
      %670 = vst [vmem:[%s175 + $0xc8] sm:$0xff] %v641
      %671 = vst [vmem:[%s175 + $0xd0] sm:$0xff] %v642
      %672 = vst [vmem:[%s175 + $0xd8] sm:$0xff] %v643
      %673 = vst [vmem:[%s175 + $0xe0] sm:$0xff] %v644
      %s674 = smul.u32 29, %s14
      %p675 = scmp.lt.s32.totalorder %s674, 57
      %s676 = scalar_select %p675, %s674, 57
      %s677 = smul.addr %s676, 8
      %s678 = scalar_lea.vmem %s3, %s677
      // Predicated region
      $region33: #{custom_cnn_forward.4} parent=31 // pred_check
        %p679 = pneg %p100
      $region34: #{custom_cnn_forward.4} parent=31 // pred_check_branch
        %681 = sbr.rel (%p679) target = $region36
      $region35: #{custom_cnn_forward.4} parent=31 // pred_region
        %s682 = smul.u32 29, %s14
      $region36: #{custom_cnn_forward.4} parent=31 // pred_fallthru
        _
    $region32: #{custom_cnn_forward.4} parent=5 // pred_fallthru
      _
    %p683 = scmp.le.s32.totalorder 2, %s9
    // Predicated region
    $region37: #{custom_cnn_forward.4} parent=5 // pred_check
      %p684 = pneg %p683
    $region38: #{custom_cnn_forward.4} parent=5 // pred_check_branch
      %686 = sbr.rel (%p684) target = $region40
    $region39: #{custom_cnn_forward.4} parent=5 // pred_region
      %s687 = ssub.s32 %s9, 2
      // Predicated region
      $region41: #{custom_cnn_forward.4} parent=39 // pred_check
        %p688 = pneg %p106
      $region42: #{custom_cnn_forward.4} parent=39 // pred_check_branch
        %690 = sbr.rel (%p688) target = $region44
      $region43: #{custom_cnn_forward.4} parent=39 // pred_region
        %s691 = smul.u32 29, %s15
        %p692 = scmp.lt.s32.totalorder %s691, 57
        %s693 = scalar_select %p692, %s691, 57
        %s694 = smul.addr %s693, 8
        %s695 = scalar_lea.vmem %s3, %s694
      $region44: #{custom_cnn_forward.4} parent=39 // pred_fallthru
        _
    $region40: #{custom_cnn_forward.4} parent=5 // pred_fallthru
      _
  $region6: #{custom_cnn_forward.4} parent=0 // loop_footer
    %s13 = sadd.s32 1, %s9
  $region7: #{custom_cnn_forward.4} parent=0 // loop_footer_branch
    %8 = sbr.rel target = $region3
  $region8: #{custom_cnn_forward.4} parent=0 // loop_exit
    _

// kernel: custom_cnn_forward.5
$region0: #{custom_cnn_forward.5}
  #allocation0 [shape = 'u32[]', space=smem, size = 0x4, offset = 0x4, fixed_abs, tag = 'smem constant byte address 0x4 - core index']
  #allocation1 [shape = 'u32[144,128]{1,0:T(1,128)}', space=vmem, size = 0x12000, scoped, tag = 'internal scratch']
  %s0 = inlined_call_operand.vmem [shape: bf16[8,1568], index: 0, kind: input, shape index: {}]
  %s1 = inlined_call_operand.vmem [shape: bf16[1568,128], index: 1, kind: input, shape index: {}]
  %s2 = inlined_call_operand.vmem [shape: f32[1,128], index: 2, kind: input, shape index: {}]
  %s3 = inlined_call_operand.vmem [shape: bf16[128,128], index: 3, kind: input, shape index: {}]
  %s4 = inlined_call_operand.vmem [shape: f32[1,128], index: 4, kind: input, shape index: {}]
  %s5 = inlined_call_operand.vmem [shape: bf16[128,128], index: 5, kind: input, shape index: {}]
  %s6 = inlined_call_operand.vmem [shape: f32[1,128], index: 6, kind: input, shape index: {}]
  %s7 = inlined_call_operand.vmem [shape: f32[8,128], index: 7, kind: output, shape index: {}]
  %s8 = sld [smem:[#allocation0]]
  $region38: #{custom_cnn_forward.5} parent=0
    _
  %s10 = ssub.s32 1, %s8
  %s11 = scalar_select 0, %s10, %s8
  // Predicated region
  $region2: #{custom_cnn_forward.5} parent=0 // pred_check
    _
  $region3: #{custom_cnn_forward.5} parent=0 // pred_check_branch
    %13 = sbr.rel (0) target = $region5
  $region4: #{custom_cnn_forward.5} parent=0 // pred_region
    _
  $region5: #{custom_cnn_forward.5} parent=0 // pred_fallthru
    _
  // Predicated region
  $region6: #{custom_cnn_forward.5} parent=0 // pred_check
    _
  $region7: #{custom_cnn_forward.5} parent=0 // pred_check_branch
    %15 = sbr.rel (0) target = $region9
  $region8: #{custom_cnn_forward.5} parent=0 // pred_region
    _
  $region9: #{custom_cnn_forward.5} parent=0 // pred_fallthru
    _
  // Predicated region
  $region10: #{custom_cnn_forward.5} parent=0 // pred_check
    _
  $region11: #{custom_cnn_forward.5} parent=0 // pred_check_branch
    %17 = sbr.rel (0) target = $region13
  $region12: #{custom_cnn_forward.5} parent=0 // pred_region
    _
  $region13: #{custom_cnn_forward.5} parent=0 // pred_fallthru
    _
  // Predicated region
  $region14: #{custom_cnn_forward.5} parent=0 // pred_check
    _
  $region15: #{custom_cnn_forward.5} parent=0 // pred_check_branch
    %19 = sbr.rel (0) target = $region17
  $region16: #{custom_cnn_forward.5} parent=0 // pred_region
    _
  $region17: #{custom_cnn_forward.5} parent=0 // pred_fallthru
    _
  // Predicated region
  $region18: #{custom_cnn_forward.5} parent=0 // pred_check
    _
  $region19: #{custom_cnn_forward.5} parent=0 // pred_check_branch
    %21 = sbr.rel (0) target = $region21
  $region20: #{custom_cnn_forward.5} parent=0 // pred_region
    _
  $region21: #{custom_cnn_forward.5} parent=0 // pred_fallthru
    _
  // Predicated region
  $region22: #{custom_cnn_forward.5} parent=0 // pred_check
    _
  $region23: #{custom_cnn_forward.5} parent=0 // pred_check_branch
    %23 = sbr.rel (0) target = $region25
  $region24: #{custom_cnn_forward.5} parent=0 // pred_region
    _
  $region25: #{custom_cnn_forward.5} parent=0 // pred_fallthru
    _
  // Predicated region
  $region26: #{custom_cnn_forward.5} parent=0 // pred_check
    _
  $region27: #{custom_cnn_forward.5} parent=0 // pred_check_branch
    %25 = sbr.rel (0) target = $region29
  $region28: #{custom_cnn_forward.5} parent=0 // pred_region
    _
  $region29: #{custom_cnn_forward.5} parent=0 // pred_fallthru
    _
  %v27 = vld [vmem:[%s0] sm:$0xff]
  %v28 = vld [vmem:[%s0 + $0x8] sm:$0xff]
  %v29 = vld [vmem:[%s0 + $0x10] sm:$0xff]
  %v30 = vld [vmem:[%s0 + $0x18] sm:$0xff]
  %v31 = vld [vmem:[%s0 + $0x20] sm:$0xff]
  %v32 = vld [vmem:[%s0 + $0x28] sm:$0xff]
  %v33 = vld [vmem:[%s0 + $0x30] sm:$0xf]
  %v34 = vld [vmem:[%s1] sm:$0xf]
  %v35 = vld [vmem:[%s1 + $0x4] sm:$0xf]
  %v36 = vld [vmem:[%s1 + $0x8] sm:$0xf]
  %v37 = vld [vmem:[%s1 + $0xc] sm:$0xf]
  %v38 = vld [vmem:[%s1 + $0x10] sm:$0xf]
  %v39 = vld [vmem:[%s1 + $0x14] sm:$0xf]
  %v40 = vld [vmem:[%s1 + $0x18] sm:$0xf]
  %v41 = vld [vmem:[%s1 + $0x1c] sm:$0xf]
  %v42 = vld [vmem:[%s1 + $0x20] sm:$0xf]
  %v43 = vld [vmem:[%s1 + $0x24] sm:$0xf]
  %v44 = vld [vmem:[%s1 + $0x28] sm:$0xf]
  %v45 = vld [vmem:[%s1 + $0x2c] sm:$0xf]
  %v46 = vld [vmem:[%s1 + $0x30] sm:$0xf]
  %v47 = vld [vmem:[%s1 + $0x34] sm:$0xf]
  %v48 = vld [vmem:[%s1 + $0x38] sm:$0xf]
  %v49 = vld [vmem:[%s1 + $0x3c] sm:$0xf]
  %v50 = vld [vmem:[%s1 + $0x40] sm:$0xf]
  %v51 = vld [vmem:[%s1 + $0x44] sm:$0xf]
  %v52 = vld [vmem:[%s1 + $0x48] sm:$0xf]
  %v53 = vld [vmem:[%s1 + $0x4c] sm:$0xf]
  %v54 = vld [vmem:[%s1 + $0x50] sm:$0xf]
  %v55 = vld [vmem:[%s1 + $0x54] sm:$0xf]
  %v56 = vld [vmem:[%s1 + $0x58] sm:$0xf]
  %v57 = vld [vmem:[%s1 + $0x5c] sm:$0xf]
  %v58 = vld [vmem:[%s1 + $0x60] sm:$0xf]
  %v59 = vld [vmem:[%s1 + $0x64] sm:$0xf]
  %v60 = vld [vmem:[%s1 + $0x68] sm:$0xf]
  %v61 = vld [vmem:[%s1 + $0x6c] sm:$0xf]
  %v62 = vld [vmem:[%s1 + $0x70] sm:$0xf]
  %v63 = vld [vmem:[%s1 + $0x74] sm:$0xf]
  %v64 = vld [vmem:[%s1 + $0x78] sm:$0xf]
  %v65 = vld [vmem:[%s1 + $0x7c] sm:$0xf]
  %v66 = vld [vmem:[%s1 + $0x80] sm:$0xf]
  %v67 = vld [vmem:[%s1 + $0x84] sm:$0xf]
  %v68 = vld [vmem:[%s1 + $0x88] sm:$0xf]
  %v69 = vld [vmem:[%s1 + $0x8c] sm:$0xf]
  %v70 = vld [vmem:[%s1 + $0x90] sm:$0xf]
  %v71 = vld [vmem:[%s1 + $0x94] sm:$0xf]
  %v72 = vld [vmem:[%s1 + $0x98] sm:$0xf]
  %v73 = vld [vmem:[%s1 + $0x9c] sm:$0xf]
  %v74 = vld [vmem:[%s1 + $0xa0] sm:$0xf]
  %v75 = vld [vmem:[%s1 + $0xa4] sm:$0xf]
  %v76 = vld [vmem:[%s1 + $0xa8] sm:$0xf]
  %v77 = vld [vmem:[%s1 + $0xac] sm:$0xf]
  %v78 = vld [vmem:[%s1 + $0xb0] sm:$0xf]
  %v79 = vld [vmem:[%s1 + $0xb4] sm:$0xf]
  %v80 = vld [vmem:[%s1 + $0xb8] sm:$0xf]
  %v81 = vld [vmem:[%s1 + $0xbc] sm:$0xf]
  %v82 = vld [vmem:[%s1 + $0xc0] sm:$0xf]
  %v83 = vld [vmem:[%s1 + $0xc4] sm:$0xf]
  %v84 = vld [vmem:[%s1 + $0xc8] sm:$0xf]
  %v85 = vld [vmem:[%s1 + $0xcc] sm:$0xf]
  %v86 = vld [vmem:[%s1 + $0xd0] sm:$0xf]
  %v87 = vld [vmem:[%s1 + $0xd4] sm:$0xf]
  %v88 = vld [vmem:[%s1 + $0xd8] sm:$0xf]
  %v89 = vld [vmem:[%s1 + $0xdc] sm:$0xf]
  %v90 = vld [vmem:[%s1 + $0xe0] sm:$0xf]
  %v91 = vld [vmem:[%s1 + $0xe4] sm:$0xf]
  %v92 = vld [vmem:[%s1 + $0xe8] sm:$0xf]
  %v93 = vld [vmem:[%s1 + $0xec] sm:$0xf]
  %v94 = vld [vmem:[%s1 + $0xf0] sm:$0xf]
  %v95 = vld [vmem:[%s1 + $0xf4] sm:$0xf]
  %v96 = vld [vmem:[%s1 + $0xf8] sm:$0xf]
  %v97 = vld [vmem:[%s1 + $0xfc] sm:$0xf]
  %v98 = vld [vmem:[%s1 + $0x100] sm:$0xf]
  %v99 = vld [vmem:[%s1 + $0x104] sm:$0xf]
  %v100 = vld [vmem:[%s1 + $0x108] sm:$0xf]
  %v101 = vld [vmem:[%s1 + $0x10c] sm:$0xf]
  %v102 = vld [vmem:[%s1 + $0x110] sm:$0xf]
  %v103 = vld [vmem:[%s1 + $0x114] sm:$0xf]
  %v104 = vld [vmem:[%s1 + $0x118] sm:$0xf]
  %v105 = vld [vmem:[%s1 + $0x11c] sm:$0xf]
  %v106 = vld [vmem:[%s1 + $0x120] sm:$0xf]
  %v107 = vld [vmem:[%s1 + $0x124] sm:$0xf]
  %v108 = vld [vmem:[%s1 + $0x128] sm:$0xf]
  %v109 = vld [vmem:[%s1 + $0x12c] sm:$0xf]
  %v110 = vld [vmem:[%s1 + $0x130] sm:$0xf]
  %v111 = vld [vmem:[%s1 + $0x134] sm:$0xf]
  %v112 = vld [vmem:[%s1 + $0x138] sm:$0xf]
  %v113 = vld [vmem:[%s1 + $0x13c] sm:$0xf]
  %v114 = vld [vmem:[%s1 + $0x140] sm:$0xf]
  %v115 = vld [vmem:[%s1 + $0x144] sm:$0xf]
  %v116 = vld [vmem:[%s1 + $0x148] sm:$0xf]
  %v117 = vld [vmem:[%s1 + $0x14c] sm:$0xf]
  %v118 = vld [vmem:[%s1 + $0x150] sm:$0xf]
  %v119 = vld [vmem:[%s1 + $0x154] sm:$0xf]
  %v120 = vld [vmem:[%s1 + $0x158] sm:$0xf]
  %v121 = vld [vmem:[%s1 + $0x15c] sm:$0xf]
  %v122 = vld [vmem:[%s1 + $0x160] sm:$0xf]
  %v123 = vld [vmem:[%s1 + $0x164] sm:$0xf]
  %v124 = vld [vmem:[%s1 + $0x168] sm:$0xf]
  %v125 = vld [vmem:[%s1 + $0x16c] sm:$0xf]
  %v126 = vld [vmem:[%s1 + $0x170] sm:$0xf]
  %v127 = vld [vmem:[%s1 + $0x174] sm:$0xf]
  %v128 = vld [vmem:[%s1 + $0x178] sm:$0xf]
  %v129 = vld [vmem:[%s1 + $0x17c] sm:$0xf]
  %v130 = vld [vmem:[%s1 + $0x180] sm:$0xf]
  %v131 = vld [vmem:[%s1 + $0x184] sm:$0xf]
  %v132 = vld [vmem:[%s1 + $0x188] sm:$0xf]
  %v133 = vld [vmem:[%s1 + $0x18c] sm:$0xf]
  %v134 = vld [vmem:[%s1 + $0x190] sm:$0xf]
  %v135 = vld [vmem:[%s1 + $0x194] sm:$0xf]
  %v136 = vld [vmem:[%s1 + $0x198] sm:$0xf]
  %v137 = vld [vmem:[%s1 + $0x19c] sm:$0xf]
  %v138 = vld [vmem:[%s1 + $0x1a0] sm:$0xf]
  %v139 = vld [vmem:[%s1 + $0x1a4] sm:$0xf]
  %v140 = vld [vmem:[%s1 + $0x1a8] sm:$0xf]
  %v141 = vld [vmem:[%s1 + $0x1ac] sm:$0xf]
  %v142 = vld [vmem:[%s1 + $0x1b0] sm:$0xf]
  %v143 = vld [vmem:[%s1 + $0x1b4] sm:$0xf]
  %v144 = vld [vmem:[%s1 + $0x1b8] sm:$0xf]
  %v145 = vld [vmem:[%s1 + $0x1bc] sm:$0xf]
  %v146 = vld [vmem:[%s1 + $0x1c0] sm:$0xf]
  %v147 = vld [vmem:[%s1 + $0x1c4] sm:$0xf]
  %v148 = vld [vmem:[%s1 + $0x1c8] sm:$0xf]
  %v149 = vld [vmem:[%s1 + $0x1cc] sm:$0xf]
  %v150 = vld [vmem:[%s1 + $0x1d0] sm:$0xf]
  %v151 = vld [vmem:[%s1 + $0x1d4] sm:$0xf]
  %v152 = vld [vmem:[%s1 + $0x1d8] sm:$0xf]
  %v153 = vld [vmem:[%s1 + $0x1dc] sm:$0xf]
  %v154 = vld [vmem:[%s1 + $0x1e0] sm:$0xf]
  %v155 = vld [vmem:[%s1 + $0x1e4] sm:$0xf]
  %v156 = vld [vmem:[%s1 + $0x1e8] sm:$0xf]
  %v157 = vld [vmem:[%s1 + $0x1ec] sm:$0xf]
  %v158 = vld [vmem:[%s1 + $0x1f0] sm:$0xf]
  %v159 = vld [vmem:[%s1 + $0x1f4] sm:$0xf]
  %v160 = vld [vmem:[%s1 + $0x1f8] sm:$0xf]
  %v161 = vld [vmem:[%s1 + $0x1fc] sm:$0xf]
  %v162 = vld [vmem:[%s1 + $0x200] sm:$0xf]
  %v163 = vld [vmem:[%s1 + $0x204] sm:$0xf]
  %v164 = vld [vmem:[%s1 + $0x208] sm:$0xf]
  %v165 = vld [vmem:[%s1 + $0x20c] sm:$0xf]
  %v166 = vld [vmem:[%s1 + $0x210] sm:$0xf]
  %v167 = vld [vmem:[%s1 + $0x214] sm:$0xf]
  %v168 = vld [vmem:[%s1 + $0x218] sm:$0xf]
  %v169 = vld [vmem:[%s1 + $0x21c] sm:$0xf]
  %v170 = vld [vmem:[%s1 + $0x220] sm:$0xf]
  %v171 = vld [vmem:[%s1 + $0x224] sm:$0xf]
  %v172 = vld [vmem:[%s1 + $0x228] sm:$0xf]
  %v173 = vld [vmem:[%s1 + $0x22c] sm:$0xf]
  %v174 = vld [vmem:[%s1 + $0x230] sm:$0xf]
  %v175 = vld [vmem:[%s1 + $0x234] sm:$0xf]
  %v176 = vld [vmem:[%s1 + $0x238] sm:$0xf]
  %v177 = vld [vmem:[%s1 + $0x23c] sm:$0xf]
  %v178 = vld [vmem:[%s1 + $0x240] sm:$0xf]
  %v179 = vld [vmem:[%s1 + $0x244] sm:$0xf]
  %v180 = vld [vmem:[%s1 + $0x248] sm:$0xf]
  %v181 = vld [vmem:[%s1 + $0x24c] sm:$0xf]
  %v182 = vld [vmem:[%s1 + $0x250] sm:$0xf]
  %v183 = vld [vmem:[%s1 + $0x254] sm:$0xf]
  %v184 = vld [vmem:[%s1 + $0x258] sm:$0xf]
  %v185 = vld [vmem:[%s1 + $0x25c] sm:$0xf]
  %v186 = vld [vmem:[%s1 + $0x260] sm:$0xf]
  %v187 = vld [vmem:[%s1 + $0x264] sm:$0xf]
  %v188 = vld [vmem:[%s1 + $0x268] sm:$0xf]
  %v189 = vld [vmem:[%s1 + $0x26c] sm:$0xf]
  %v190 = vld [vmem:[%s1 + $0x270] sm:$0xf]
  %v191 = vld [vmem:[%s1 + $0x274] sm:$0xf]
  %v192 = vld [vmem:[%s1 + $0x278] sm:$0xf]
  %v193 = vld [vmem:[%s1 + $0x27c] sm:$0xf]
  %v194 = vld [vmem:[%s1 + $0x280] sm:$0xf]
  %v195 = vld [vmem:[%s1 + $0x284] sm:$0xf]
  %v196 = vld [vmem:[%s1 + $0x288] sm:$0xf]
  %v197 = vld [vmem:[%s1 + $0x28c] sm:$0xf]
  %v198 = vld [vmem:[%s1 + $0x290] sm:$0xf]
  %v199 = vld [vmem:[%s1 + $0x294] sm:$0xf]
  %v200 = vld [vmem:[%s1 + $0x298] sm:$0xf]
  %v201 = vld [vmem:[%s1 + $0x29c] sm:$0xf]
  %v202 = vld [vmem:[%s1 + $0x2a0] sm:$0xf]
  %v203 = vld [vmem:[%s1 + $0x2a4] sm:$0xf]
  %v204 = vld [vmem:[%s1 + $0x2a8] sm:$0xf]
  %v205 = vld [vmem:[%s1 + $0x2ac] sm:$0xf]
  %v206 = vld [vmem:[%s1 + $0x2b0] sm:$0xf]
  %v207 = vld [vmem:[%s1 + $0x2b4] sm:$0xf]
  %v208 = vld [vmem:[%s1 + $0x2b8] sm:$0xf]
  %v209 = vld [vmem:[%s1 + $0x2bc] sm:$0xf]
  %v210 = vld [vmem:[%s1 + $0x2c0] sm:$0xf]
  %v211 = vld [vmem:[%s1 + $0x2c4] sm:$0xf]
  %v212 = vld [vmem:[%s1 + $0x2c8] sm:$0xf]
  %v213 = vld [vmem:[%s1 + $0x2cc] sm:$0xf]
  %v214 = vld [vmem:[%s1 + $0x2d0] sm:$0xf]
  %v215 = vld [vmem:[%s1 + $0x2d4] sm:$0xf]
  %v216 = vld [vmem:[%s1 + $0x2d8] sm:$0xf]
  %v217 = vld [vmem:[%s1 + $0x2dc] sm:$0xf]
  %v218 = vld [vmem:[%s1 + $0x2e0] sm:$0xf]
  %v219 = vld [vmem:[%s1 + $0x2e4] sm:$0xf]
  %v220 = vld [vmem:[%s1 + $0x2e8] sm:$0xf]
  %v221 = vld [vmem:[%s1 + $0x2ec] sm:$0xf]
  %v222 = vld [vmem:[%s1 + $0x2f0] sm:$0xf]
  %v223 = vld [vmem:[%s1 + $0x2f4] sm:$0xf]
  %v224 = vld [vmem:[%s1 + $0x2f8] sm:$0xf]
  %v225 = vld [vmem:[%s1 + $0x2fc] sm:$0xf]
  %v226 = vld [vmem:[%s1 + $0x300] sm:$0xf]
  %v227 = vld [vmem:[%s1 + $0x304] sm:$0xf]
  %v228 = vld [vmem:[%s1 + $0x308] sm:$0xf]
  %v229 = vld [vmem:[%s1 + $0x30c] sm:$0xf]
  %v230 = vld [vmem:[%s2] sm:$0x1]
  %v232 = vlaneseq
  %v233 = vshrl.u32 %v232, 7
  %v234 = vsub.s32 0, %v233
  %v235 = vrot.slane %v230, %v234
  %v244 = vunpack.c.l.b16 %v27
  %v245 = vunpack.c.h.b16 %v27
  %v246 = vunpack.c.l.b16 %v28
  %v247 = vunpack.c.h.b16 %v28
  %v248 = vunpack.c.l.b16 %v29
  %v249 = vunpack.c.h.b16 %v29
  %v250 = vunpack.c.l.b16 %v30
  %v251 = vunpack.c.h.b16 %v30
  %v252 = vunpack.c.l.b16 %v31
  %v253 = vunpack.c.h.b16 %v31
  %v254 = vunpack.c.l.b16 %v32
  %v255 = vunpack.c.h.b16 %v32
  %v256 = vunpack.c.l.b16 %v33
  %v257 = vpack.c.b16 %v244, %v244
  %v258 = vpack.c.b16 %v245, %v245
  %v259 = vpack.c.b16 %v246, %v246
  %v260 = vpack.c.b16 %v247, %v247
  %v261 = vpack.c.b16 %v248, %v248
  %v262 = vpack.c.b16 %v249, %v249
  %v263 = vpack.c.b16 %v250, %v250
  %v264 = vpack.c.b16 %v251, %v251
  %v265 = vpack.c.b16 %v252, %v252
  %v266 = vpack.c.b16 %v253, %v253
  %v267 = vpack.c.b16 %v254, %v254
  %v268 = vpack.c.b16 %v255, %v255
  %v269 = vpack.c.b16 %v256, %v256
  %v478 = vunpack.c.l.b16 %v34
  %v479 = vunpack.c.l.b16 %v35
  %v480 = vunpack.c.l.b16 %v36
  %v481 = vunpack.c.l.b16 %v37
  %v482 = vunpack.c.l.b16 %v38
  %v483 = vunpack.c.l.b16 %v39
  %v484 = vunpack.c.l.b16 %v40
  %v485 = vunpack.c.l.b16 %v41
  %v486 = vunpack.c.l.b16 %v42
  %v487 = vunpack.c.l.b16 %v43
  %v488 = vunpack.c.l.b16 %v44
  %v489 = vunpack.c.l.b16 %v45
  %v490 = vunpack.c.l.b16 %v46
  %v491 = vunpack.c.l.b16 %v47
  %v492 = vunpack.c.l.b16 %v48
  %v493 = vunpack.c.l.b16 %v49
  %v494 = vunpack.c.l.b16 %v50
  %v495 = vunpack.c.l.b16 %v51
  %v496 = vunpack.c.l.b16 %v52
  %v497 = vunpack.c.l.b16 %v53
  %v498 = vunpack.c.l.b16 %v54
  %v499 = vunpack.c.l.b16 %v55
  %v500 = vunpack.c.l.b16 %v56
  %v501 = vunpack.c.l.b16 %v57
  %v502 = vunpack.c.l.b16 %v58
  %v503 = vunpack.c.l.b16 %v59
  %v504 = vunpack.c.l.b16 %v60
  %v505 = vunpack.c.l.b16 %v61
  %v506 = vunpack.c.l.b16 %v62
  %v507 = vunpack.c.l.b16 %v63
  %v508 = vunpack.c.l.b16 %v64
  %v509 = vunpack.c.l.b16 %v65
  %v510 = vunpack.c.l.b16 %v66
  %v511 = vunpack.c.l.b16 %v67
  %v512 = vunpack.c.l.b16 %v68
  %v513 = vunpack.c.l.b16 %v69
  %v514 = vunpack.c.l.b16 %v70
  %v515 = vunpack.c.l.b16 %v71
  %v516 = vunpack.c.l.b16 %v72
  %v517 = vunpack.c.l.b16 %v73
  %v518 = vunpack.c.l.b16 %v74
  %v519 = vunpack.c.l.b16 %v75
  %v520 = vunpack.c.l.b16 %v76
  %v521 = vunpack.c.l.b16 %v77
  %v522 = vunpack.c.l.b16 %v78
  %v523 = vunpack.c.l.b16 %v79
  %v524 = vunpack.c.l.b16 %v80
  %v525 = vunpack.c.l.b16 %v81
  %v526 = vunpack.c.l.b16 %v82
  %v527 = vunpack.c.l.b16 %v83
  %v528 = vunpack.c.l.b16 %v84
  %v529 = vunpack.c.l.b16 %v85
  %v530 = vunpack.c.l.b16 %v86
  %v531 = vunpack.c.l.b16 %v87
  %v532 = vunpack.c.l.b16 %v88
  %v533 = vunpack.c.l.b16 %v89
  %v534 = vunpack.c.l.b16 %v90
  %v535 = vunpack.c.l.b16 %v91
  %v536 = vunpack.c.l.b16 %v92
  %v537 = vunpack.c.l.b16 %v93
  %v538 = vunpack.c.l.b16 %v94
  %v539 = vunpack.c.l.b16 %v95
  %v540 = vunpack.c.l.b16 %v96
  %v541 = vunpack.c.l.b16 %v97
  %v542 = vunpack.c.l.b16 %v98
  %v543 = vunpack.c.l.b16 %v99
  %v544 = vunpack.c.l.b16 %v100
  %v545 = vunpack.c.l.b16 %v101
  %v546 = vunpack.c.l.b16 %v102
  %v547 = vunpack.c.l.b16 %v103
  %v548 = vunpack.c.l.b16 %v104
  %v549 = vunpack.c.l.b16 %v105
  %v550 = vunpack.c.l.b16 %v106
  %v551 = vunpack.c.l.b16 %v107
  %v552 = vunpack.c.l.b16 %v108
  %v553 = vunpack.c.l.b16 %v109
  %v554 = vunpack.c.l.b16 %v110
  %v555 = vunpack.c.l.b16 %v111
  %v556 = vunpack.c.l.b16 %v112
  %v557 = vunpack.c.l.b16 %v113
  %v558 = vunpack.c.l.b16 %v114
  %v559 = vunpack.c.l.b16 %v115
  %v560 = vunpack.c.l.b16 %v116
  %v561 = vunpack.c.l.b16 %v117
  %v562 = vunpack.c.l.b16 %v118
  %v563 = vunpack.c.l.b16 %v119
  %v564 = vunpack.c.l.b16 %v120
  %v565 = vunpack.c.l.b16 %v121
  %v566 = vunpack.c.l.b16 %v122
  %v567 = vunpack.c.l.b16 %v123
  %v568 = vunpack.c.l.b16 %v124
  %v569 = vunpack.c.l.b16 %v125
  %v570 = vunpack.c.l.b16 %v126
  %v571 = vunpack.c.l.b16 %v127
  %v572 = vunpack.c.l.b16 %v128
  %v573 = vunpack.c.l.b16 %v129
  %v574 = vunpack.c.l.b16 %v130
  %v575 = vunpack.c.l.b16 %v131
  %v576 = vunpack.c.l.b16 %v132
  %v577 = vunpack.c.l.b16 %v133
  %v578 = vunpack.c.l.b16 %v134
  %v579 = vunpack.c.l.b16 %v135
  %v580 = vunpack.c.l.b16 %v136
  %v581 = vunpack.c.l.b16 %v137
  %v582 = vunpack.c.l.b16 %v138
  %v583 = vunpack.c.l.b16 %v139
  %v584 = vunpack.c.l.b16 %v140
  %v585 = vunpack.c.l.b16 %v141
  %v586 = vunpack.c.l.b16 %v142
  %v587 = vunpack.c.l.b16 %v143
  %v588 = vunpack.c.l.b16 %v144
  %v589 = vunpack.c.l.b16 %v145
  %v590 = vunpack.c.l.b16 %v146
  %v591 = vunpack.c.l.b16 %v147
  %v592 = vunpack.c.l.b16 %v148
  %v593 = vunpack.c.l.b16 %v149
  %v594 = vunpack.c.l.b16 %v150
  %v595 = vunpack.c.l.b16 %v151
  %v596 = vunpack.c.l.b16 %v152
  %v597 = vunpack.c.l.b16 %v153
  %v598 = vunpack.c.l.b16 %v154
  %v599 = vunpack.c.l.b16 %v155
  %v600 = vunpack.c.l.b16 %v156
  %v601 = vunpack.c.l.b16 %v157
  %v602 = vunpack.c.l.b16 %v158
  %v603 = vunpack.c.l.b16 %v159
  %v604 = vunpack.c.l.b16 %v160
  %v605 = vunpack.c.l.b16 %v161
  %v606 = vunpack.c.l.b16 %v162
  %v607 = vunpack.c.l.b16 %v163
  %v608 = vunpack.c.l.b16 %v164
  %v609 = vunpack.c.l.b16 %v165
  %v610 = vunpack.c.l.b16 %v166
  %v611 = vunpack.c.l.b16 %v167
  %v612 = vunpack.c.l.b16 %v168
  %v613 = vunpack.c.l.b16 %v169
  %v614 = vunpack.c.l.b16 %v170
  %v615 = vunpack.c.l.b16 %v171
  %v616 = vunpack.c.l.b16 %v172
  %v617 = vunpack.c.l.b16 %v173
  %v618 = vunpack.c.l.b16 %v174
  %v619 = vunpack.c.l.b16 %v175
  %v620 = vunpack.c.l.b16 %v176
  %v621 = vunpack.c.l.b16 %v177
  %v622 = vunpack.c.l.b16 %v178
  %v623 = vunpack.c.l.b16 %v179
  %v624 = vunpack.c.l.b16 %v180
  %v625 = vunpack.c.l.b16 %v181
  %v626 = vunpack.c.l.b16 %v182
  %v627 = vunpack.c.l.b16 %v183
  %v628 = vunpack.c.l.b16 %v184
  %v629 = vunpack.c.l.b16 %v185
  %v630 = vunpack.c.l.b16 %v186
  %v631 = vunpack.c.l.b16 %v187
  %v632 = vunpack.c.l.b16 %v188
  %v633 = vunpack.c.l.b16 %v189
  %v634 = vunpack.c.l.b16 %v190
  %v635 = vunpack.c.l.b16 %v191
  %v636 = vunpack.c.l.b16 %v192
  %v637 = vunpack.c.l.b16 %v193
  %v638 = vunpack.c.l.b16 %v194
  %v639 = vunpack.c.l.b16 %v195
  %v640 = vunpack.c.l.b16 %v196
  %v641 = vunpack.c.l.b16 %v197
  %v642 = vunpack.c.l.b16 %v198
  %v643 = vunpack.c.l.b16 %v199
  %v644 = vunpack.c.l.b16 %v200
  %v645 = vunpack.c.l.b16 %v201
  %v646 = vunpack.c.l.b16 %v202
  %v647 = vunpack.c.l.b16 %v203
  %v648 = vunpack.c.l.b16 %v204
  %v649 = vunpack.c.l.b16 %v205
  %v650 = vunpack.c.l.b16 %v206
  %v651 = vunpack.c.l.b16 %v207
  %v652 = vunpack.c.l.b16 %v208
  %v653 = vunpack.c.l.b16 %v209
  %v654 = vunpack.c.l.b16 %v210
  %v655 = vunpack.c.l.b16 %v211
  %v656 = vunpack.c.l.b16 %v212
  %v657 = vunpack.c.l.b16 %v213
  %v658 = vunpack.c.l.b16 %v214
  %v659 = vunpack.c.l.b16 %v215
  %v660 = vunpack.c.l.b16 %v216
  %v661 = vunpack.c.l.b16 %v217
  %v662 = vunpack.c.l.b16 %v218
  %v663 = vunpack.c.l.b16 %v219
  %v664 = vunpack.c.l.b16 %v220
  %v665 = vunpack.c.l.b16 %v221
  %v666 = vunpack.c.l.b16 %v222
  %v667 = vunpack.c.l.b16 %v223
  %v668 = vunpack.c.l.b16 %v224
  %v669 = vunpack.c.l.b16 %v225
  %v670 = vunpack.c.l.b16 %v226
  %v671 = vunpack.c.l.b16 %v227
  %v672 = vunpack.c.l.b16 %v228
  %v673 = vunpack.c.l.b16 %v229
  %v674 = vpack.c.b16 %v479, %v478
  %v675 = vpack.c.b16 %v481, %v480
  %v676 = vpack.c.b16 %v483, %v482
  %v677 = vpack.c.b16 %v485, %v484
  %v678 = vpack.c.b16 %v487, %v486
  %v679 = vpack.c.b16 %v489, %v488
  %v680 = vpack.c.b16 %v491, %v490
  %v681 = vpack.c.b16 %v493, %v492
  %v682 = vpack.c.b16 %v495, %v494
  %v683 = vpack.c.b16 %v497, %v496
  %v684 = vpack.c.b16 %v499, %v498
  %v685 = vpack.c.b16 %v501, %v500
  %v686 = vpack.c.b16 %v503, %v502
  %v687 = vpack.c.b16 %v505, %v504
  %v688 = vpack.c.b16 %v507, %v506
  %v689 = vpack.c.b16 %v509, %v508
  %v690 = vpack.c.b16 %v511, %v510
  %v691 = vpack.c.b16 %v513, %v512
  %v692 = vpack.c.b16 %v515, %v514
  %v693 = vpack.c.b16 %v517, %v516
  %v694 = vpack.c.b16 %v519, %v518
  %v695 = vpack.c.b16 %v521, %v520
  %v696 = vpack.c.b16 %v523, %v522
  %v697 = vpack.c.b16 %v525, %v524
  %v698 = vpack.c.b16 %v527, %v526
  %v699 = vpack.c.b16 %v529, %v528
  %v700 = vpack.c.b16 %v531, %v530
  %v701 = vpack.c.b16 %v533, %v532
  %v702 = vpack.c.b16 %v535, %v534
  %v703 = vpack.c.b16 %v537, %v536
  %v704 = vpack.c.b16 %v539, %v538
  %v705 = vpack.c.b16 %v541, %v540
  %v706 = vpack.c.b16 %v543, %v542
  %v707 = vpack.c.b16 %v545, %v544
  %v708 = vpack.c.b16 %v547, %v546
  %v709 = vpack.c.b16 %v549, %v548
  %v710 = vpack.c.b16 %v551, %v550
  %v711 = vpack.c.b16 %v553, %v552
  %v712 = vpack.c.b16 %v555, %v554
  %v713 = vpack.c.b16 %v557, %v556
  %v714 = vpack.c.b16 %v559, %v558
  %v715 = vpack.c.b16 %v561, %v560
  %v716 = vpack.c.b16 %v563, %v562
  %v717 = vpack.c.b16 %v565, %v564
  %v718 = vpack.c.b16 %v567, %v566
  %v719 = vpack.c.b16 %v569, %v568
  %v720 = vpack.c.b16 %v571, %v570
  %v721 = vpack.c.b16 %v573, %v572
  %v722 = vpack.c.b16 %v575, %v574
  %v723 = vpack.c.b16 %v577, %v576
  %v724 = vpack.c.b16 %v579, %v578
  %v725 = vpack.c.b16 %v581, %v580
  %v726 = vpack.c.b16 %v583, %v582
  %v727 = vpack.c.b16 %v585, %v584
  %v728 = vpack.c.b16 %v587, %v586
  %v729 = vpack.c.b16 %v589, %v588
  %v730 = vpack.c.b16 %v591, %v590
  %v731 = vpack.c.b16 %v593, %v592
  %v732 = vpack.c.b16 %v595, %v594
  %v733 = vpack.c.b16 %v597, %v596
  %v734 = vpack.c.b16 %v599, %v598
  %v735 = vpack.c.b16 %v601, %v600
  %v736 = vpack.c.b16 %v603, %v602
  %v737 = vpack.c.b16 %v605, %v604
  %v738 = vpack.c.b16 %v607, %v606
  %v739 = vpack.c.b16 %v609, %v608
  %v740 = vpack.c.b16 %v611, %v610
  %v741 = vpack.c.b16 %v613, %v612
  %v742 = vpack.c.b16 %v615, %v614
  %v743 = vpack.c.b16 %v617, %v616
  %v744 = vpack.c.b16 %v619, %v618
  %v745 = vpack.c.b16 %v621, %v620
  %v746 = vpack.c.b16 %v623, %v622
  %v747 = vpack.c.b16 %v625, %v624
  %v748 = vpack.c.b16 %v627, %v626
  %v749 = vpack.c.b16 %v629, %v628
  %v750 = vpack.c.b16 %v631, %v630
  %v751 = vpack.c.b16 %v633, %v632
  %v752 = vpack.c.b16 %v635, %v634
  %v753 = vpack.c.b16 %v637, %v636
  %v754 = vpack.c.b16 %v639, %v638
  %v755 = vpack.c.b16 %v641, %v640
  %v756 = vpack.c.b16 %v643, %v642
  %v757 = vpack.c.b16 %v645, %v644
  %v758 = vpack.c.b16 %v647, %v646
  %v759 = vpack.c.b16 %v649, %v648
  %v760 = vpack.c.b16 %v651, %v650
  %v761 = vpack.c.b16 %v653, %v652
  %v762 = vpack.c.b16 %v655, %v654
  %v763 = vpack.c.b16 %v657, %v656
  %v764 = vpack.c.b16 %v659, %v658
  %v765 = vpack.c.b16 %v661, %v660
  %v766 = vpack.c.b16 %v663, %v662
  %v767 = vpack.c.b16 %v665, %v664
  %v768 = vpack.c.b16 %v667, %v666
  %v769 = vpack.c.b16 %v669, %v668
  %v770 = vpack.c.b16 %v671, %v670
  %v771 = vpack.c.b16 %v673, %v672
  %vm870 = vcmask 261120
  %v872 = vsel %vm870, %v269, 0
  %874 = vmatprep.subr.bf16.mxu0 0
  %875 = vmatpush1.bf16.msra.mxu0 %v674
  %876 = vmatprep.subr.bf16.mxu0 0
  %877 = vmatpush1.bf16.msra.mxu0 %v675
  %878 = vmatprep.subr.bf16.mxu0 0
  %879 = vmatpush1.bf16.msra.mxu0 %v676
  %880 = vmatprep.subr.bf16.mxu0 0
  %881 = vmatpush1.bf16.msra.mxu0 %v677
  %882 = vmatprep.subr.bf16.mxu0 0
  %883 = vmatpush1.bf16.msra.mxu0 %v678
  %884 = vmatprep.subr.bf16.mxu0 0
  %885 = vmatpush1.bf16.msra.mxu0 %v679
  %886 = vmatprep.subr.bf16.mxu0 0
  %887 = vmatpush1.bf16.msra.mxu0 %v680
  %888 = vmatprep.subr.bf16.mxu0 0
  %889 = vmatpush1.bf16.msra.mxu0 %v681
  %890 = vmatprep.subr.bf16.mxu0 0
  %891 = vmatpush1.bf16.msra.mxu0 %v682
  %892 = vmatprep.subr.bf16.mxu0 0
  %893 = vmatpush1.bf16.msra.mxu0 %v683
  %894 = vmatprep.subr.bf16.mxu0 0
  %895 = vmatpush1.bf16.msra.mxu0 %v684
  %896 = vmatprep.subr.bf16.mxu0 0
  %897 = vmatpush1.bf16.msra.mxu0 %v685
  %898 = vmatprep.subr.bf16.mxu0 0
  %899 = vmatpush1.bf16.msra.mxu0 %v686
  %900 = vmatprep.subr.bf16.mxu0 0
  %901 = vmatpush1.bf16.msra.mxu0 %v687
  %902 = vmatprep.subr.bf16.mxu0 0
  %903 = vmatpush1.bf16.msra.mxu0 %v688
  %904 = vmatprep.subr.bf16.mxu0 0
  %905 = vmatpush1.bf16.msra.mxu0 %v689
  %906 = vmatprep.mubr.bf16.mxu0 %v258
  %907 = vmatmul.mubr.bf16.gmra.mrb[0].mxu0 %v257
  %v908 = vpop.f32.mrb[0].mxu0
  %v909 = vadd.f32 %v235, %v908
  %v910 = vpop.f32.mrb[0].mxu0
  %v911 = vpop.f32.mrb[0].mxu0
  %v912 = vpop.f32.mrb[0].mxu0
  %913 = vdwg.mxu0
  %914 = vmatprep.subr.bf16.mxu0 0
  %915 = vmatpush1.bf16.msra.mxu0 %v690
  %916 = vmatprep.subr.bf16.mxu0 0
  %917 = vmatpush1.bf16.msra.mxu0 %v691
  %918 = vmatprep.subr.bf16.mxu0 0
  %919 = vmatpush1.bf16.msra.mxu0 %v692
  %920 = vmatprep.subr.bf16.mxu0 0
  %921 = vmatpush1.bf16.msra.mxu0 %v693
  %922 = vmatprep.subr.bf16.mxu0 0
  %923 = vmatpush1.bf16.msra.mxu0 %v694
  %924 = vmatprep.subr.bf16.mxu0 0
  %925 = vmatpush1.bf16.msra.mxu0 %v695
  %926 = vmatprep.subr.bf16.mxu0 0
  %927 = vmatpush1.bf16.msra.mxu0 %v696
  %928 = vmatprep.subr.bf16.mxu0 0
  %929 = vmatpush1.bf16.msra.mxu0 %v697
  %930 = vmatprep.subr.bf16.mxu0 0
  %931 = vmatpush1.bf16.msra.mxu0 %v698
  %932 = vmatprep.subr.bf16.mxu0 0
  %933 = vmatpush1.bf16.msra.mxu0 %v699
  %934 = vmatprep.subr.bf16.mxu0 0
  %935 = vmatpush1.bf16.msra.mxu0 %v700
  %936 = vmatprep.subr.bf16.mxu0 0
  %937 = vmatpush1.bf16.msra.mxu0 %v701
  %938 = vmatprep.subr.bf16.mxu0 0
  %939 = vmatpush1.bf16.msra.mxu0 %v702
  %940 = vmatprep.subr.bf16.mxu0 0
  %941 = vmatpush1.bf16.msra.mxu0 %v703
  %942 = vmatprep.subr.bf16.mxu0 0
  %943 = vmatpush1.bf16.msra.mxu0 %v704
  %944 = vmatprep.subr.bf16.mxu0 0
  %945 = vmatpush1.bf16.msra.mxu0 %v705
  %946 = vmatprep.mubr.bf16.mxu0 %v260
  %947 = vmatmul.mubr.bf16.gmra.mrb[0].mxu0 %v259
  %v948 = vpop.f32.mrb[0].mxu0
  %v949 = vadd.f32 %v909, %v948
  %v950 = vpop.f32.mrb[0].mxu0
  %v951 = vpop.f32.mrb[0].mxu0
  %v952 = vpop.f32.mrb[0].mxu0
  %953 = vdwg.mxu0
  %954 = vmatprep.subr.bf16.mxu0 0
  %955 = vmatpush1.bf16.msra.mxu0 %v706
  %956 = vmatprep.subr.bf16.mxu0 0
  %957 = vmatpush1.bf16.msra.mxu0 %v707
  %958 = vmatprep.subr.bf16.mxu0 0
  %959 = vmatpush1.bf16.msra.mxu0 %v708
  %960 = vmatprep.subr.bf16.mxu0 0
  %961 = vmatpush1.bf16.msra.mxu0 %v709
  %962 = vmatprep.subr.bf16.mxu0 0
  %963 = vmatpush1.bf16.msra.mxu0 %v710
  %964 = vmatprep.subr.bf16.mxu0 0
  %965 = vmatpush1.bf16.msra.mxu0 %v711
  %966 = vmatprep.subr.bf16.mxu0 0
  %967 = vmatpush1.bf16.msra.mxu0 %v712
  %968 = vmatprep.subr.bf16.mxu0 0
  %969 = vmatpush1.bf16.msra.mxu0 %v713
  %970 = vmatprep.subr.bf16.mxu0 0
  %971 = vmatpush1.bf16.msra.mxu0 %v714
  %972 = vmatprep.subr.bf16.mxu0 0
  %973 = vmatpush1.bf16.msra.mxu0 %v715
  %974 = vmatprep.subr.bf16.mxu0 0
  %975 = vmatpush1.bf16.msra.mxu0 %v716
  %976 = vmatprep.subr.bf16.mxu0 0
  %977 = vmatpush1.bf16.msra.mxu0 %v717
  %978 = vmatprep.subr.bf16.mxu0 0
  %979 = vmatpush1.bf16.msra.mxu0 %v718
  %980 = vmatprep.subr.bf16.mxu0 0
  %981 = vmatpush1.bf16.msra.mxu0 %v719
  %982 = vmatprep.subr.bf16.mxu0 0
  %983 = vmatpush1.bf16.msra.mxu0 %v720
  %984 = vmatprep.subr.bf16.mxu0 0
  %985 = vmatpush1.bf16.msra.mxu0 %v721
  %986 = vmatprep.mubr.bf16.mxu0 %v262
  %987 = vmatmul.mubr.bf16.gmra.mrb[0].mxu0 %v261
  %v988 = vpop.f32.mrb[0].mxu0
  %v989 = vadd.f32 %v949, %v988
  %v990 = vpop.f32.mrb[0].mxu0
  %v991 = vpop.f32.mrb[0].mxu0
  %v992 = vpop.f32.mrb[0].mxu0
  %993 = vdwg.mxu0
  %994 = vmatprep.subr.bf16.mxu0 0
  %995 = vmatpush1.bf16.msra.mxu0 %v722
  %996 = vmatprep.subr.bf16.mxu0 0
  %997 = vmatpush1.bf16.msra.mxu0 %v723
  %998 = vmatprep.subr.bf16.mxu0 0
  %999 = vmatpush1.bf16.msra.mxu0 %v724
  %1000 = vmatprep.subr.bf16.mxu0 0
  %1001 = vmatpush1.bf16.msra.mxu0 %v725
  %1002 = vmatprep.subr.bf16.mxu0 0
  %1003 = vmatpush1.bf16.msra.mxu0 %v726
  %1004 = vmatprep.subr.bf16.mxu0 0
  %1005 = vmatpush1.bf16.msra.mxu0 %v727
  %1006 = vmatprep.subr.bf16.mxu0 0
  %1007 = vmatpush1.bf16.msra.mxu0 %v728
  %1008 = vmatprep.subr.bf16.mxu0 0
  %1009 = vmatpush1.bf16.msra.mxu0 %v729
  %1010 = vmatprep.subr.bf16.mxu0 0
  %1011 = vmatpush1.bf16.msra.mxu0 %v730
  %1012 = vmatprep.subr.bf16.mxu0 0
  %1013 = vmatpush1.bf16.msra.mxu0 %v731
  %1014 = vmatprep.subr.bf16.mxu0 0
  %1015 = vmatpush1.bf16.msra.mxu0 %v732
  %1016 = vmatprep.subr.bf16.mxu0 0
  %1017 = vmatpush1.bf16.msra.mxu0 %v733
  %1018 = vmatprep.subr.bf16.mxu0 0
  %1019 = vmatpush1.bf16.msra.mxu0 %v734
  %1020 = vmatprep.subr.bf16.mxu0 0
  %1021 = vmatpush1.bf16.msra.mxu0 %v735
  %1022 = vmatprep.subr.bf16.mxu0 0
  %1023 = vmatpush1.bf16.msra.mxu0 %v736
  %1024 = vmatprep.subr.bf16.mxu0 0
  %1025 = vmatpush1.bf16.msra.mxu0 %v737
  %1026 = vmatprep.mubr.bf16.mxu0 %v264
  %1027 = vmatmul.mubr.bf16.gmra.mrb[0].mxu0 %v263
  %v1028 = vpop.f32.mrb[0].mxu0
  %v1029 = vadd.f32 %v989, %v1028
  %v1030 = vpop.f32.mrb[0].mxu0
  %v1031 = vpop.f32.mrb[0].mxu0
  %v1032 = vpop.f32.mrb[0].mxu0
  %1033 = vdwg.mxu0
  %1034 = vmatprep.subr.bf16.mxu0 0
  %1035 = vmatpush1.bf16.msra.mxu0 %v738
  %1036 = vmatprep.subr.bf16.mxu0 0
  %1037 = vmatpush1.bf16.msra.mxu0 %v739
  %1038 = vmatprep.subr.bf16.mxu0 0
  %1039 = vmatpush1.bf16.msra.mxu0 %v740
  %1040 = vmatprep.subr.bf16.mxu0 0
  %1041 = vmatpush1.bf16.msra.mxu0 %v741
  %1042 = vmatprep.subr.bf16.mxu0 0
  %1043 = vmatpush1.bf16.msra.mxu0 %v742
  %1044 = vmatprep.subr.bf16.mxu0 0
  %1045 = vmatpush1.bf16.msra.mxu0 %v743
  %1046 = vmatprep.subr.bf16.mxu0 0
  %1047 = vmatpush1.bf16.msra.mxu0 %v744
  %1048 = vmatprep.subr.bf16.mxu0 0
  %1049 = vmatpush1.bf16.msra.mxu0 %v745
  %1050 = vmatprep.subr.bf16.mxu0 0
  %1051 = vmatpush1.bf16.msra.mxu0 %v746
  %1052 = vmatprep.subr.bf16.mxu0 0
  %1053 = vmatpush1.bf16.msra.mxu0 %v747
  %1054 = vmatprep.subr.bf16.mxu0 0
  %1055 = vmatpush1.bf16.msra.mxu0 %v748
  %1056 = vmatprep.subr.bf16.mxu0 0
  %1057 = vmatpush1.bf16.msra.mxu0 %v749
  %1058 = vmatprep.subr.bf16.mxu0 0
  %1059 = vmatpush1.bf16.msra.mxu0 %v750
  %1060 = vmatprep.subr.bf16.mxu0 0
  %1061 = vmatpush1.bf16.msra.mxu0 %v751
  %1062 = vmatprep.subr.bf16.mxu0 0
  %1063 = vmatpush1.bf16.msra.mxu0 %v752
  %1064 = vmatprep.subr.bf16.mxu0 0
  %1065 = vmatpush1.bf16.msra.mxu0 %v753
  %1066 = vmatprep.mubr.bf16.mxu0 %v266
  %1067 = vmatmul.mubr.bf16.gmra.mrb[0].mxu0 %v265
  %v1068 = vpop.f32.mrb[0].mxu0
  %v1069 = vadd.f32 %v1029, %v1068
  %v1070 = vpop.f32.mrb[0].mxu0
  %v1071 = vpop.f32.mrb[0].mxu0
  %v1072 = vpop.f32.mrb[0].mxu0
  %1073 = vdwg.mxu0
  %1074 = vmatprep.subr.bf16.mxu0 0
  %1075 = vmatpush1.bf16.msra.mxu0 %v754
  %1076 = vmatprep.subr.bf16.mxu0 0
  %1077 = vmatpush1.bf16.msra.mxu0 %v755
  %1078 = vmatprep.subr.bf16.mxu0 0
  %1079 = vmatpush1.bf16.msra.mxu0 %v756
  %1080 = vmatprep.subr.bf16.mxu0 0
  %1081 = vmatpush1.bf16.msra.mxu0 %v757
  %1082 = vmatprep.subr.bf16.mxu0 0
  %1083 = vmatpush1.bf16.msra.mxu0 %v758
  %1084 = vmatprep.subr.bf16.mxu0 0
  %1085 = vmatpush1.bf16.msra.mxu0 %v759
  %1086 = vmatprep.subr.bf16.mxu0 0
  %1087 = vmatpush1.bf16.msra.mxu0 %v760
  %1088 = vmatprep.subr.bf16.mxu0 0
  %1089 = vmatpush1.bf16.msra.mxu0 %v761
  %1090 = vmatprep.subr.bf16.mxu0 0
  %1091 = vmatpush1.bf16.msra.mxu0 %v762
  %1092 = vmatprep.subr.bf16.mxu0 0
  %1093 = vmatpush1.bf16.msra.mxu0 %v763
  %1094 = vmatprep.subr.bf16.mxu0 0
  %1095 = vmatpush1.bf16.msra.mxu0 %v764
  %1096 = vmatprep.subr.bf16.mxu0 0
  %1097 = vmatpush1.bf16.msra.mxu0 %v765
  %1098 = vmatprep.subr.bf16.mxu0 0
  %1099 = vmatpush1.bf16.msra.mxu0 %v766
  %1100 = vmatprep.subr.bf16.mxu0 0
  %1101 = vmatpush1.bf16.msra.mxu0 %v767
  %1102 = vmatprep.subr.bf16.mxu0 0
  %1103 = vmatpush1.bf16.msra.mxu0 %v768
  %1104 = vmatprep.subr.bf16.mxu0 0
  %1105 = vmatpush1.bf16.msra.mxu0 %v769
  %1106 = vmatprep.mubr.bf16.mxu0 %v268
  %1107 = vmatmul.mubr.bf16.gmra.mrb[0].mxu0 %v267
  %v1108 = vpop.f32.mrb[0].mxu0
  %v1109 = vadd.f32 %v1069, %v1108
  %v1110 = vpop.f32.mrb[0].mxu0
  %v1111 = vpop.f32.mrb[0].mxu0
  %v1112 = vpop.f32.mrb[0].mxu0
  %1113 = vdwg.mxu0
  %1114 = vmatprep.subr.bf16.mxu0 0
  %1115 = vmatpush1.bf16.msra.mxu0 %v770
  %1116 = vmatprep.subr.bf16.mxu0 0
  %1117 = vmatpush1.bf16.msra.mxu0 %v771
  %1118 = vmatprep.subr.bf16.mxu0 0
  %1119 = vmatpush1.bf16.msra.mxu0 0
  %1120 = vmatprep.subr.bf16.mxu0 0
  %1121 = vmatpush1.bf16.msra.mxu0 0
  %1122 = vmatprep.subr.bf16.mxu0 0
  %1123 = vmatpush1.bf16.msra.mxu0 0
  %1124 = vmatprep.subr.bf16.mxu0 0
  %1125 = vmatpush1.bf16.msra.mxu0 0
  %1126 = vmatprep.subr.bf16.mxu0 0
  %1127 = vmatpush1.bf16.msra.mxu0 0
  %1128 = vmatprep.subr.bf16.mxu0 0
  %1129 = vmatpush1.bf16.msra.mxu0 0
  %1130 = vmatprep.subr.bf16.mxu0 0
  %1131 = vmatpush1.bf16.msra.mxu0 0
  %1132 = vmatprep.subr.bf16.mxu0 0
  %1133 = vmatpush1.bf16.msra.mxu0 0
  %1134 = vmatprep.subr.bf16.mxu0 0
  %1135 = vmatpush1.bf16.msra.mxu0 0
  %1136 = vmatprep.subr.bf16.mxu0 0
  %1137 = vmatpush1.bf16.msra.mxu0 0
  %1138 = vmatprep.subr.bf16.mxu0 0
  %1139 = vmatpush1.bf16.msra.mxu0 0
  %1140 = vmatprep.subr.bf16.mxu0 0
  %1141 = vmatpush1.bf16.msra.mxu0 0
  %1142 = vmatprep.subr.bf16.mxu0 0
  %1143 = vmatpush1.bf16.msra.mxu0 0
  %1144 = vmatprep.subr.bf16.mxu0 0
  %1145 = vmatpush1.bf16.msra.mxu0 0
  %1146 = vmatprep.mubr.bf16.mxu0 0
  %1147 = vmatmul.mubr.bf16.gmra.mrb[0].mxu0 %v872
  %v1148 = vpop.f32.mrb[0].mxu0
  %v1149 = vadd.f32 %v1109, %v1148
  %v1150 = vpop.f32.mrb[0].mxu0
  %v1151 = vpop.f32.mrb[0].mxu0
  %v1152 = vpop.f32.mrb[0].mxu0
  %1153 = vdwg.mxu0
  %v1154 = vmax.f32 %v1149, 0.0
  %v1155 = vpack.c.bf16 %v1154, %v1154
  %v1156 = vld [vmem:[%s3] sm:$0xf]
  %v1157 = vld [vmem:[%s3 + $0x4] sm:$0xf]
  %v1158 = vld [vmem:[%s3 + $0x8] sm:$0xf]
  %v1159 = vld [vmem:[%s3 + $0xc] sm:$0xf]
  %v1160 = vld [vmem:[%s3 + $0x10] sm:$0xf]
  %v1161 = vld [vmem:[%s3 + $0x14] sm:$0xf]
  %v1162 = vld [vmem:[%s3 + $0x18] sm:$0xf]
  %v1163 = vld [vmem:[%s3 + $0x1c] sm:$0xf]
  %v1164 = vld [vmem:[%s3 + $0x20] sm:$0xf]
  %v1165 = vld [vmem:[%s3 + $0x24] sm:$0xf]
  %v1166 = vld [vmem:[%s3 + $0x28] sm:$0xf]
  %v1167 = vld [vmem:[%s3 + $0x2c] sm:$0xf]
  %v1168 = vld [vmem:[%s3 + $0x30] sm:$0xf]
  %v1169 = vld [vmem:[%s3 + $0x34] sm:$0xf]
  %v1170 = vld [vmem:[%s3 + $0x38] sm:$0xf]
  %v1171 = vld [vmem:[%s3 + $0x3c] sm:$0xf]
  %v1172 = vld [vmem:[%s4] sm:$0x1]
  %v1174 = vlaneseq
  %v1175 = vshrl.u32 %v1174, 7
  %v1176 = vsub.s32 0, %v1175
  %v1177 = vrot.slane %v1172, %v1176
  %v1195 = vunpack.c.l.b16 %v1156
  %v1196 = vunpack.c.l.b16 %v1157
  %v1197 = vunpack.c.l.b16 %v1158
  %v1198 = vunpack.c.l.b16 %v1159
  %v1199 = vunpack.c.l.b16 %v1160
  %v1200 = vunpack.c.l.b16 %v1161
  %v1201 = vunpack.c.l.b16 %v1162
  %v1202 = vunpack.c.l.b16 %v1163
  %v1203 = vunpack.c.l.b16 %v1164
  %v1204 = vunpack.c.l.b16 %v1165
  %v1205 = vunpack.c.l.b16 %v1166
  %v1206 = vunpack.c.l.b16 %v1167
  %v1207 = vunpack.c.l.b16 %v1168
  %v1208 = vunpack.c.l.b16 %v1169
  %v1209 = vunpack.c.l.b16 %v1170
  %v1210 = vunpack.c.l.b16 %v1171
  %v1211 = vpack.c.b16 %v1196, %v1195
  %v1212 = vpack.c.b16 %v1198, %v1197
  %v1213 = vpack.c.b16 %v1200, %v1199
  %v1214 = vpack.c.b16 %v1202, %v1201
  %v1215 = vpack.c.b16 %v1204, %v1203
  %v1216 = vpack.c.b16 %v1206, %v1205
  %v1217 = vpack.c.b16 %v1208, %v1207
  %v1218 = vpack.c.b16 %v1210, %v1209
  %1227 = vmatprep.subr.bf16.mxu0 0
  %1228 = vmatpush1.bf16.msra.mxu0 %v1211
  %1229 = vmatprep.subr.bf16.mxu0 0
  %1230 = vmatpush1.bf16.msra.mxu0 %v1212
  %1231 = vmatprep.subr.bf16.mxu0 0
  %1232 = vmatpush1.bf16.msra.mxu0 %v1213
  %1233 = vmatprep.subr.bf16.mxu0 0
  %1234 = vmatpush1.bf16.msra.mxu0 %v1214
  %1235 = vmatprep.subr.bf16.mxu0 0
  %1236 = vmatpush1.bf16.msra.mxu0 %v1215
  %1237 = vmatprep.subr.bf16.mxu0 0
  %1238 = vmatpush1.bf16.msra.mxu0 %v1216
  %1239 = vmatprep.subr.bf16.mxu0 0
  %1240 = vmatpush1.bf16.msra.mxu0 %v1217
  %1241 = vmatprep.subr.bf16.mxu0 0
  %1242 = vmatpush1.bf16.msra.mxu0 %v1218
  %1243 = vmatprep.subr.bf16.mxu0 0
  %1244 = vmatpush1.bf16.msra.mxu0 0
  %1245 = vmatprep.subr.bf16.mxu0 0
  %1246 = vmatpush1.bf16.msra.mxu0 0
  %1247 = vmatprep.subr.bf16.mxu0 0
  %1248 = vmatpush1.bf16.msra.mxu0 0
  %1249 = vmatprep.subr.bf16.mxu0 0
  %1250 = vmatpush1.bf16.msra.mxu0 0
  %1251 = vmatprep.subr.bf16.mxu0 0
  %1252 = vmatpush1.bf16.msra.mxu0 0
  %1253 = vmatprep.subr.bf16.mxu0 0
  %1254 = vmatpush1.bf16.msra.mxu0 0
  %1255 = vmatprep.subr.bf16.mxu0 0
  %1256 = vmatpush1.bf16.msra.mxu0 0
  %1257 = vmatprep.subr.bf16.mxu0 0
  %1258 = vmatpush1.bf16.msra.mxu0 0
  %1259 = vmatprep.mubr.bf16.mxu0 0
  %1260 = vmatmul.mubr.bf16.gmra.mrb[0].mxu0 %v1155
  %v1261 = vpop.f32.mrb[0].mxu0
  %v1262 = vadd.f32 %v1177, %v1261
  %v1263 = vpop.f32.mrb[0].mxu0
  %v1264 = vpop.f32.mrb[0].mxu0
  %v1265 = vpop.f32.mrb[0].mxu0
  %1266 = vdwg.mxu0
  %v1267 = vmax.f32 %v1262, 0.0
  %v1268 = vpack.c.bf16 %v1267, %v1267
  %v1269 = vld [vmem:[%s5] sm:$0xf]
  %v1270 = vld [vmem:[%s5 + $0x4] sm:$0xf]
  %v1271 = vld [vmem:[%s5 + $0x8] sm:$0xf]
  %v1272 = vld [vmem:[%s5 + $0xc] sm:$0xf]
  %v1273 = vld [vmem:[%s5 + $0x10] sm:$0xf]
  %v1274 = vld [vmem:[%s5 + $0x14] sm:$0xf]
  %v1275 = vld [vmem:[%s5 + $0x18] sm:$0xf]
  %v1276 = vld [vmem:[%s5 + $0x1c] sm:$0xf]
  %v1277 = vld [vmem:[%s5 + $0x20] sm:$0xf]
  %v1278 = vld [vmem:[%s5 + $0x24] sm:$0xf]
  %v1279 = vld [vmem:[%s5 + $0x28] sm:$0xf]
  %v1280 = vld [vmem:[%s5 + $0x2c] sm:$0xf]
  %v1281 = vld [vmem:[%s5 + $0x30] sm:$0xf]
  %v1282 = vld [vmem:[%s5 + $0x34] sm:$0xf]
  %v1283 = vld [vmem:[%s5 + $0x38] sm:$0xf]
  %v1284 = vld [vmem:[%s5 + $0x3c] sm:$0xf]
  %v1285 = vld [vmem:[%s6] sm:$0x1]
  %v1287 = vlaneseq
  %v1288 = vshrl.u32 %v1287, 7
  %v1289 = vsub.s32 0, %v1288
  %v1290 = vrot.slane %v1285, %v1289
  %v1308 = vunpack.c.l.b16 %v1269
  %v1309 = vunpack.c.l.b16 %v1270
  %v1310 = vunpack.c.l.b16 %v1271
  %v1311 = vunpack.c.l.b16 %v1272
  %v1312 = vunpack.c.l.b16 %v1273
  %v1313 = vunpack.c.l.b16 %v1274
  %v1314 = vunpack.c.l.b16 %v1275
  %v1315 = vunpack.c.l.b16 %v1276
  %v1316 = vunpack.c.l.b16 %v1277
  %v1317 = vunpack.c.l.b16 %v1278
  %v1318 = vunpack.c.l.b16 %v1279
  %v1319 = vunpack.c.l.b16 %v1280
  %v1320 = vunpack.c.l.b16 %v1281
  %v1321 = vunpack.c.l.b16 %v1282
  %v1322 = vunpack.c.l.b16 %v1283
  %v1323 = vunpack.c.l.b16 %v1284
  %v1324 = vpack.c.b16 %v1309, %v1308
  %v1325 = vpack.c.b16 %v1311, %v1310
  %v1326 = vpack.c.b16 %v1313, %v1312
  %v1327 = vpack.c.b16 %v1315, %v1314
  %v1328 = vpack.c.b16 %v1317, %v1316
  %v1329 = vpack.c.b16 %v1319, %v1318
  %v1330 = vpack.c.b16 %v1321, %v1320
  %v1331 = vpack.c.b16 %v1323, %v1322
  %1340 = vmatprep.subr.bf16.mxu0 0
  %1341 = vmatpush1.bf16.msra.mxu0 %v1324
  %1342 = vmatprep.subr.bf16.mxu0 0
  %1343 = vmatpush1.bf16.msra.mxu0 %v1325
  %1344 = vmatprep.subr.bf16.mxu0 0
  %1345 = vmatpush1.bf16.msra.mxu0 %v1326
  %1346 = vmatprep.subr.bf16.mxu0 0
  %1347 = vmatpush1.bf16.msra.mxu0 %v1327
  %1348 = vmatprep.subr.bf16.mxu0 0
  %1349 = vmatpush1.bf16.msra.mxu0 %v1328
  %1350 = vmatprep.subr.bf16.mxu0 0
  %1351 = vmatpush1.bf16.msra.mxu0 %v1329
  %1352 = vmatprep.subr.bf16.mxu0 0
  %1353 = vmatpush1.bf16.msra.mxu0 %v1330
  %1354 = vmatprep.subr.bf16.mxu0 0
  %1355 = vmatpush1.bf16.msra.mxu0 %v1331
  %1356 = vmatprep.subr.bf16.mxu0 0
  %1357 = vmatpush1.bf16.msra.mxu0 0
  %1358 = vmatprep.subr.bf16.mxu0 0
  %1359 = vmatpush1.bf16.msra.mxu0 0
  %1360 = vmatprep.subr.bf16.mxu0 0
  %1361 = vmatpush1.bf16.msra.mxu0 0
  %1362 = vmatprep.subr.bf16.mxu0 0
  %1363 = vmatpush1.bf16.msra.mxu0 0
  %1364 = vmatprep.subr.bf16.mxu0 0
  %1365 = vmatpush1.bf16.msra.mxu0 0
  %1366 = vmatprep.subr.bf16.mxu0 0
  %1367 = vmatpush1.bf16.msra.mxu0 0
  %1368 = vmatprep.subr.bf16.mxu0 0
  %1369 = vmatpush1.bf16.msra.mxu0 0
  %1370 = vmatprep.subr.bf16.mxu0 0
  %1371 = vmatpush1.bf16.msra.mxu0 0
  %1372 = vmatprep.mubr.bf16.mxu0 0
  %1373 = vmatmul.mubr.bf16.gmra.mrb[0].mxu0 %v1268
  %v1374 = vpop.f32.mrb[0].mxu0
  %v1375 = vadd.f32 %v1290, %v1374
  %v1376 = vpop.f32.mrb[0].mxu0
  %v1377 = vpop.f32.mrb[0].mxu0
  %v1378 = vpop.f32.mrb[0].mxu0
  %1379 = vdwg.mxu0
  %1380 = vst [vmem:[%s7] sm:$0xff] %v1375
  // Predicated region
  $region30: #{custom_cnn_forward.5} parent=0 // pred_check
    _
  $region31: #{custom_cnn_forward.5} parent=0 // pred_check_branch
    %1382 = sbr.rel (0) target = $region33
  $region32: #{custom_cnn_forward.5} parent=0 // pred_region
    _
  $region33: #{custom_cnn_forward.5} parent=0 // pred_fallthru
    _
  // Predicated region
  $region34: #{custom_cnn_forward.5} parent=0 // pred_check
    _
  $region35: #{custom_cnn_forward.5} parent=0 // pred_check_branch
    %1384 = sbr.rel (0) target = $region37
  $region36: #{custom_cnn_forward.5} parent=0 // pred_region
    _
  $region37: #{custom_cnn_forward.5} parent=0 // pred_fallthru
    _

</llo_original>
